<compile_context>
chip_gen: v7x
topology: tpu7x:2x2x1
jax: 0.10.0
libtpu: 0.0.40
codegen_flags: <defaults>
</compile_context>

<pallas_src>
import functools

import jax
import jax.numpy as jnp
from jax.experimental import pallas as pl
from jax.experimental.pallas import tpu as pltpu


def gcn_kernel(x_ref, k_ref, w2t_ref, o_ref, h_ref, *, n_sub, sub):
    """One grid step over Rt = n_sub * sub rows of the flattened (B*N*H, Cp) activations.

    x_ref  : (Rt, Cp)   bf16  activation rows (row = flattened (batch, node, h))
    k_ref  : (sub, sub) bf16  block-diag kron(I_bt, kron(W1, I_H))  (conv1, no residual)
    w2t_ref: (Cp, Cp)   bf16  conv2 Linear weight, pre-transposed (in, out), zero-padded
    o_ref  : (Rt, Cp)   bf16  output rows
    h_ref  : (Rt, Cp)   bf16  VMEM scratch holding relu(conv1(x) + x)
    """
    # conv1 (+ exact residual) on `sub`-row sub-slabs: keeps the kron weight at
    # (sub, sub) while conv2 below still sees the full Rt-row (M=256) slab.
    for j in range(n_sub):                      # static, fully unrolled
        r0 = j * sub                            # static, 16-row aligned offset
        xj = x_ref[pl.ds(r0, sub), :]
        hj = jnp.dot(k_ref[...], xj, preferred_element_type=jnp.float32)
        hj = jnp.maximum(hj + xj.astype(jnp.float32), 0.0)     # residual + ReLU (VPU)
        h_ref[pl.ds(r0, sub), :] = hj.astype(jnp.bfloat16)
    # conv2 = Linear over the last axis: one lane-dense, M=Rt MXU matmul.
    out = jnp.dot(h_ref[...], w2t_ref[...], preferred_element_type=jnp.float32)
    o_ref[...] = out.astype(o_ref.dtype)


def _round_up(v, m):
    return (v + m - 1) // m * m


def prepare_gcn_params(w1, w2, *, H, batch_tile, c_pad=None,
                       compute_dtype=jnp.bfloat16):
    """One-time parameter prep (hoisted out of the per-call forward path).

    w1: (N, N) conv1 1x1 weight (out_node, in_node).  Residual is NOT folded in.
    w2: (C, C) conv2 Linear weight, torch layout (out, in).
    Returns (k_blk (sub, sub), w2t (Cp, Cp)) in compute_dtype, Cp = round_up(C, 128).
    """
    C = w2.shape[0]
    if c_pad is None:
        c_pad = _round_up(C, 128)
    k = jnp.kron(w1, jnp.eye(H, dtype=w1.dtype))                  # (N*H, N*H)
    if batch_tile > 1:
        k = jnp.kron(jnp.eye(batch_tile, dtype=w1.dtype), k)      # block-diag over batches
    w2t = w2.T                                                    # (C_in, C_out)
    if c_pad != C:
        w2t = jnp.pad(w2t, ((0, c_pad - C), (0, c_pad - C)))      # zero pad 720 -> 768
    # TODO(synk): on v7x, optionally quantize w2t to fp8 with per-output-channel
    # scales folded into a post-matmul VPU multiply (conv2 is ~90% of the FLOPs).
    return k.astype(compute_dtype), w2t.astype(compute_dtype)


def default_rows_target():
    """MXU M-dim fill target per TPU generation (128-wide vs 256-wide MXU rows)."""
    kind = jax.devices()[0].device_kind.lower()
    if any(t in kind for t in ("v2", "v3", "v4", "v5")):
        return 128                  # 128-wide MXU: M=128 already fills the array
    return 256                      # v6e / v7x: 2x256^2 MXU


def choose_tiling(B, N, H, *, sub_target=128, rows_target=256):
    """Pick (batch_tile, sub, n_sub).

    sub   = batch_tile * N * H : rows handled by one (sub, sub) kron conv1 block,
            kept <= sub_target so the block-diagonal zero-FLOP waste stays ~2x conv1
            (conv1 is ~10% of total FLOPs) instead of growing with the row tile.
    n_sub : kron sub-slabs per grid step; Rt = n_sub * sub rows fill the MXU M dim
            for the dominant conv2 matmul (256 on v6e/v7x, 128 on older chips).
    """
    NH = N * H
    # sub must cover whole batches and stay 16-row aligned (bf16 sublane tile).
    cands = [bt for bt in range(1, B + 1) if B % bt == 0 and (bt * NH) % 16 == 0]
    if not cands:
        cands = [bt for bt in range(1, B + 1) if B % bt == 0 and (bt * NH) % 8 == 0]
    assert cands, "B*N*H rows cannot be 8-row aligned; pad the batch"
    fit = [bt for bt in cands if bt * NH <= sub_target]
    bt = max(fit) if fit else min(cands)
    sub = bt * NH
    nb = B // bt                               # total number of kron sub-slabs
    n_sub = 1
    for n in range(1, nb + 1):
        if nb % n == 0 and n * sub <= max(rows_target, sub):
            n_sub = n
    return bt, sub, n_sub


@functools.partial(jax.jit, static_argnames=("n_sub", "sub"))
def gcn_forward(x, k_blk, w2t, *, n_sub, sub):
    """x: (B, N, H, C) f32; k_blk: (sub, sub); w2t: (Cp, Cp), Cp = round_up(C, 128).

    Returns (B, N, H, C) bf16 (the kernel's HBM writeback is bf16; cast in the
    caller only if the consumer really needs f32 — that cast is the biggest stream).
    """
    B, N, H, C = x.shape
    Cp = w2t.shape[0]
    R = B * N * H
    Rt = n_sub * sub
    assert R % Rt == 0, f"rows {R} must tile by {Rt}"
    assert k_blk.shape == (sub, sub)
    assert Cp % 128 == 0 and Cp >= C

    # Flatten (B, N, H) -> rows; cast to bf16 and zero-pad C -> Cp in one XLA fusion.
    x2 = x.reshape(R, C).astype(k_blk.dtype)
    if Cp != C:
        x2 = jnp.pad(x2, ((0, 0), (0, Cp - C)))

    out2 = pl.pallas_call(
        functools.partial(gcn_kernel, n_sub=n_sub, sub=sub),
        out_shape=jax.ShapeDtypeStruct((R, Cp), jnp.bfloat16),
        grid_spec=pltpu.PrefetchScalarGridSpec(
            num_scalar_prefetch=0,
            grid=(R // Rt,),
            in_specs=[
                pl.BlockSpec((Rt, Cp), lambda i: (i, 0)),
                # Constant-index weights: the pipeline fetches them once; the idle
                # second buffer costs ~1.2 MB VMEM out of a ~5 MB total footprint,
                # so single-buffering is not needed at these sizes.
                # TODO(synk): on v7x with large Rt, add pipeline_mode=pl.Buffered(1)
                # to these two weight specs (and Buffered(3) on the x/out streams if
                # xprof still shows exposed DMA) to reclaim VMEM headroom.
                pl.BlockSpec((sub, sub), lambda i: (0, 0)),
                pl.BlockSpec((Cp, Cp), lambda i: (0, 0)),
            ],
            out_specs=pl.BlockSpec((Rt, Cp), lambda i: (i, 0)),
            scratch_shapes=[pltpu.VMEM((Rt, Cp), jnp.bfloat16)],
        ),
        compiler_params=pltpu.CompilerParams(
            dimension_semantics=("parallel",),   # shards grid steps across v7x's 2 TCs
        ),
    )(x2, k_blk, w2t)

    # Un-pad and restore (B, N, H, C); this slice fuses into the consumer.
    return out2[:, :C].reshape(B, N, H, C)


def gcn_reference(x, w1, w2):
    # conv1: 1x1 conv over the node axis
    y = jnp.einsum("nm,bmhc->bnhc", w1, x)
    r = jnp.maximum(y + x, 0.0)
    # conv2: Linear over the last axis with torch weight layout (out, in)
    return jnp.einsum("bnhc,dc->bnhd", r, w2)


if __name__ == "__main__":
    # Module config: bin_size_h=2, bin_size_w=4 -> num_node = 8; num_channel = 720.
    bin_size_h, bin_size_w = 2, 4
    N = bin_size_h * bin_size_w     # num_node = 8
    C = 720                         # num_channel (hard-coded in the module)
    B, H = 8, 16                    # R = B*N*H = 1024 rows -> >= 4 pipelined grid steps

    key = jax.random.PRNGKey(0)
    kx, k1, k2 = jax.random.split(key, 3)
    x = jax.random.normal(kx, (B, N, H, C), dtype=jnp.float32)
    # conv1.weight: (num_node, num_node, 1, 1) squeezed to (N, N)
    # conv2.weight: (num_channel, num_channel), torch Linear layout (out, in)
    w1 = jax.random.normal(k1, (N, N), dtype=jnp.float32) * 0.1
    w2 = jax.random.normal(k2, (C, C), dtype=jnp.float32) * 0.05

    bt, sub, n_sub = choose_tiling(B, N, H, rows_target=default_rows_target())
    k_blk, w2t = prepare_gcn_params(w1, w2, H=H, batch_tile=bt)   # one-time weight prep
    k_blk, w2t = jax.block_until_ready((k_blk, w2t))

    out = gcn_forward(x, k_blk, w2t, n_sub=n_sub, sub=sub)
    out = jax.block_until_ready(out)

    ref = gcn_reference(x, w1, w2)
    assert out.shape == (B, N, H, C)
    assert out.dtype == jnp.bfloat16
    # bf16 matmul operands + bf16 output (f32 accumulation) vs f32 reference.
    assert jnp.allclose(out.astype(jnp.float32), ref, atol=5e-2, rtol=5e-2), \
        "mismatch vs JAX reference"

    print("KERNEL_OK")
</pallas_src>

<mosaic_0001>
module attributes {stable_mosaic.version = 11 : i64} {
  func.func @gcn_kernel(%arg0: i32, %arg1: memref<256x768xbf16, #tpu.memory_space<vmem>>, %arg2: memref<128x128xbf16, #tpu.memory_space<vmem>>, %arg3: memref<768x768xbf16, #tpu.memory_space<vmem>>, %arg4: memref<256x768xbf16, #tpu.memory_space<vmem>>, %arg5: memref<256x768xbf16, #tpu.memory_space<vmem>>) attributes {dimension_semantics = [#tpu.dimension_semantics<parallel>], iteration_bounds = array<i64: 4>, scalar_prefetch = 0 : i64, scratch_operands = 1 : i64, tpu.core_type = #tpu.core_type<tc>, window_params = [{transform_indices = @transform_0, window_bounds = array<i64: 256, 768>}, {pipeline_mode = #tpu.pipeline_mode<synchronous>, transform_indices = @transform_1, window_bounds = array<i64: 128, 128>}, {pipeline_mode = #tpu.pipeline_mode<synchronous>, transform_indices = @transform_2, window_bounds = array<i64: 768, 768>}, {transform_indices = @transform_3, window_bounds = array<i64: 256, 768>}]} {
    %c0 = arith.constant 0 : index
    %c0_0 = arith.constant 0 : index
    %0 = vector.load %arg1[%c0, %c0_0] : memref<256x768xbf16, #tpu.memory_space<vmem>>, vector<128x768xbf16>
    %c0_1 = arith.constant 0 : index
    %c0_2 = arith.constant 0 : index
    %1 = vector.load %arg2[%c0_1, %c0_2] : memref<128x128xbf16, #tpu.memory_space<vmem>>, vector<128x128xbf16>
    %cst = arith.constant dense<0.000000e+00> : vector<128x768xf32>
    %2 = tpu.matmul %1, %0, %cst {dimension_numbers = #tpu.dot_dimension_numbers<[1], [0], [0], [1], [0, 0, 1, 1], [], []>} : vector<128x128xbf16>, vector<128x768xbf16>, vector<128x768xf32> -> vector<128x768xf32>
    %3 = arith.extf %0 : vector<128x768xbf16> to vector<128x768xf32>
    %4 = arith.addf %2, %3 : vector<128x768xf32>
    %cst_3 = arith.constant 0.000000e+00 : f32
    %5 = vector.broadcast %cst_3 : f32 to vector<128x768xf32>
    %6 = arith.maximumf %4, %5 : vector<128x768xf32>
    %7 = arith.truncf %6 : vector<128x768xf32> to vector<128x768xbf16>
    %c0_4 = arith.constant 0 : index
    %c0_5 = arith.constant 0 : index
    %8 = vector.load %arg5[%c0_4, %c0_5] : memref<256x768xbf16, #tpu.memory_space<vmem>>, vector<128x768xbf16>
    tpu.vector_store %arg5[%c0_4, %c0_5], %7 {strides = array<i32>} : memref<256x768xbf16, #tpu.memory_space<vmem>>, vector<128x768xbf16>,
    %c128 = arith.constant 128 : index
    %c0_6 = arith.constant 0 : index
    %9 = vector.load %arg1[%c128, %c0_6] : memref<256x768xbf16, #tpu.memory_space<vmem>>, vector<128x768xbf16>
    %c0_7 = arith.constant 0 : index
    %c0_8 = arith.constant 0 : index
    %10 = vector.load %arg2[%c0_7, %c0_8] : memref<128x128xbf16, #tpu.memory_space<vmem>>, vector<128x128xbf16>
    %cst_9 = arith.constant dense<0.000000e+00> : vector<128x768xf32>
    %11 = tpu.matmul %10, %9, %cst_9 {dimension_numbers = #tpu.dot_dimension_numbers<[1], [0], [0], [1], [0, 0, 1, 1], [], []>} : vector<128x128xbf16>, vector<128x768xbf16>, vector<128x768xf32> -> vector<128x768xf32>
    %12 = arith.extf %9 : vector<128x768xbf16> to vector<128x768xf32>
    %13 = arith.addf %11, %12 : vector<128x768xf32>
    %cst_10 = arith.constant 0.000000e+00 : f32
    %14 = vector.broadcast %cst_10 : f32 to vector<128x768xf32>
    %15 = arith.maximumf %13, %14 : vector<128x768xf32>
    %16 = arith.truncf %15 : vector<128x768xf32> to vector<128x768xbf16>
    %c128_11 = arith.constant 128 : index
    %c0_12 = arith.constant 0 : index
    %17 = vector.load %arg5[%c128_11, %c0_12] : memref<256x768xbf16, #tpu.memory_space<vmem>>, vector<128x768xbf16>
    tpu.vector_store %arg5[%c128_11, %c0_12], %16 {strides = array<i32>} : memref<256x768xbf16, #tpu.memory_space<vmem>>, vector<128x768xbf16>,
    %c0_13 = arith.constant 0 : index
    %c0_14 = arith.constant 0 : index
    %18 = vector.load %arg5[%c0_13, %c0_14] : memref<256x768xbf16, #tpu.memory_space<vmem>>, vector<256x768xbf16>
    %c0_15 = arith.constant 0 : index
    %c0_16 = arith.constant 0 : index
    %19 = vector.load %arg3[%c0_15, %c0_16] : memref<768x768xbf16, #tpu.memory_space<vmem>>, vector<768x768xbf16>
    %cst_17 = arith.constant dense<0.000000e+00> : vector<256x768xf32>
    %20 = tpu.matmul %18, %19, %cst_17 {dimension_numbers = #tpu.dot_dimension_numbers<[1], [0], [0], [1], [0, 0, 1, 1], [], []>} : vector<256x768xbf16>, vector<768x768xbf16>, vector<256x768xf32> -> vector<256x768xf32>
    %21 = arith.truncf %20 : vector<256x768xf32> to vector<256x768xbf16>
    %c0_18 = arith.constant 0 : index
    %c0_19 = arith.constant 0 : index
    %22 = vector.load %arg4[%c0_18, %c0_19] : memref<256x768xbf16, #tpu.memory_space<vmem>>, vector<256x768xbf16>
    tpu.vector_store %arg4[%c0_18, %c0_19], %21 {strides = array<i32>} : memref<256x768xbf16, #tpu.memory_space<vmem>>, vector<256x768xbf16>,
    return
  }
  func.func @transform_0(%arg0: i32) -> (i32, i32) {
    %c0_i32 = arith.constant 0 : i32
    %c0_i32_0 = arith.constant 0 : i32
    return %arg0, %c0_i32 : i32, i32
  }
  func.func @transform_1(%arg0: i32) -> (i32, i32) {
    %c0_i32 = arith.constant 0 : i32
    %c0_i32_0 = arith.constant 0 : i32
    %c0_i32_1 = arith.constant 0 : i32
    return %c0_i32, %c0_i32_0 : i32, i32
  }
  func.func @transform_2(%arg0: i32) -> (i32, i32) {
    %c0_i32 = arith.constant 0 : i32
    %c0_i32_0 = arith.constant 0 : i32
    %c0_i32_1 = arith.constant 0 : i32
    return %c0_i32, %c0_i32_0 : i32, i32
  }
  func.func @transform_3(%arg0: i32) -> (i32, i32) {
    %c0_i32 = arith.constant 0 : i32
    %c0_i32_0 = arith.constant 0 : i32
    return %arg0, %c0_i32 : i32, i32
  }
}

</mosaic_0001>

<llo_original>
// kernel: gcn_forward.1
$region0: #{gcn_forward.1}
  #allocation0 [shape = 'u32[]', space=smem, size = 0x4, offset = 0x4, fixed_abs, tag = 'smem constant byte address 0x4 - core index']
  #allocation1 [shape = 'u32[144,128]{1,0:T(1,128)}', space=vmem, size = 0x12000, scoped, tag = 'internal scratch']
  #allocation2 [shape = 'bf16[256,768]{1,0:T(16,128)(2,1)}', space=vmem, size = 0x60000, scoped, tag = 'scratch operand']
  %s0 = inlined_call_operand.vmem [shape: bf16[1024,768], index: 0, kind: input, shape index: {}]
  %s1 = inlined_call_operand.vmem [shape: bf16[128,128], index: 1, kind: input, shape index: {}]
  %s2 = inlined_call_operand.vmem [shape: bf16[768,768], index: 2, kind: input, shape index: {}]
  %s3 = inlined_call_operand.hbm [shape: bf16[1024,768], index: 3, kind: output, shape index: {}]
  %s4 = sld [smem:[#allocation0]]
  $region45: #{gcn_forward.1} parent=0
    _
  %s6 = ssub.s32 1, %s4
  %s7 = scalar_select 0, %s6, %s4
  $region1: #{gcn_forward.1} parent=0
    #allocation3 [shape = 'u8[786432]{0}', space=vmem, size = 0xc0000, scoped, tag = 'output window, operand 0']
    #allocation4 [shape = 's32[2]{0}', space=sflag, size = 0x8, scoped, tag = 'scoped memory for gcn_forward.1']
    %8 = vsyncpa [#allocation4], 0
    %s9 = scalar_lea.sflag [#allocation4], 1
    %10 = vsyncpa %s9, 0
    loop: start=0, step=1, limit=6
    $region2: #{gcn_forward.1} parent=1 // loop_pre_header
      _
    $region3: #{gcn_forward.1} parent=1 // loop_header
      %s12 = sphi 0, %s16
      %p13 = scmp.ge.s32.totalorder %s12, 6
      %s22 = sphi 0, %s24
      %s25 = sphi 0, %s22
      %s26 = sphi 0, %s25
      %s42 = sphi 0, %s26
      %s46 = sphi 0, %s46
      %s48 = sphi 0, %s46
      %s49 = sphi 0, %s48
      %s63 = sphi 0, %s49
      %s67 = sphi 0, %s67
      %s69 = sphi 0, %s67
      %s70 = sphi 0, %s69
      %s84 = sphi 0, %s70
      %s90 = sphi 0, %s92
      %s93 = sphi 0, %s90
      %s94 = sphi 0, %s93
      %s110 = sphi 0, %s94
    $region4: #{gcn_forward.1} parent=1 // loop_header_branch
      %15 = sbr.rel (%p13) target = $region8
    $region5: #{gcn_forward.1} parent=1 // loop_body
      %s17 = ssub.s32 %s12, 1
      %s18 = ssub.s32 %s12, 2
      %s19 = sadd.s32 %s12, 1
      %s20 = ssub.s32 %s12, %s19
      %p21 = scmp.eq.s32.totalorder %s20, 0
      %s23 = sadd.s32 %s22, 1
      %s24 = scalar_select %p21, %s22, %s23
      %p27 = pneg %p21
      %p28 = scmp.eq.s32.totalorder %s12, 3
      %p29 = por %p27, %p28
      %p30 = scmp.ne.s32.totalorder %s22, %s25
      %p31 = scmp.eq.s32.totalorder %s12, 0
      %p32 = por %p30, %p31
      %p33 = scmp.ne.s32.totalorder %s22, %s25
      %p34 = scmp.eq.s32.totalorder %s17, 3
      %p35 = por %p33, %p34
      %p36 = scmp.ne.s32.totalorder %s25, %s26
      %p37 = scmp.eq.s32.totalorder %s17, 0
      %p38 = por %p36, %p37
      %p39 = scmp.ne.s32.totalorder %s25, %s26
      %p40 = scmp.eq.s32.totalorder %s18, 3
      %p41 = por %p39, %p40
      %p43 = scmp.ne.s32.totalorder %s26, %s42
      %p44 = scmp.eq.s32.totalorder %s18, 0
      %p45 = por %p43, %p44
      %s47 = sadd.s32 %s46, 1
      %p50 = scmp.eq.s32.totalorder %s12, 3
      %p51 = scmp.ne.s32.totalorder %s46, %s48
      %p52 = scmp.eq.s32.totalorder %s12, 0
      %p53 = por %p51, %p52
      %p54 = scmp.ne.s32.totalorder %s46, %s48
      %p55 = scmp.eq.s32.totalorder %s17, 3
      %p56 = por %p54, %p55
      %p57 = scmp.ne.s32.totalorder %s48, %s49
      %p58 = scmp.eq.s32.totalorder %s17, 0
      %p59 = por %p57, %p58
      %p60 = scmp.ne.s32.totalorder %s48, %s49
      %p61 = scmp.eq.s32.totalorder %s18, 3
      %p62 = por %p60, %p61
      %p64 = scmp.ne.s32.totalorder %s49, %s63
      %p65 = scmp.eq.s32.totalorder %s18, 0
      %p66 = por %p64, %p65
      %s68 = sadd.s32 %s67, 1
      %p71 = scmp.eq.s32.totalorder %s12, 3
      %p72 = scmp.ne.s32.totalorder %s67, %s69
      %p73 = scmp.eq.s32.totalorder %s12, 0
      %p74 = por %p72, %p73
      %p75 = scmp.ne.s32.totalorder %s67, %s69
      %p76 = scmp.eq.s32.totalorder %s17, 3
      %p77 = por %p75, %p76
      %p78 = scmp.ne.s32.totalorder %s69, %s70
      %p79 = scmp.eq.s32.totalorder %s17, 0
      %p80 = por %p78, %p79
      %p81 = scmp.ne.s32.totalorder %s69, %s70
      %p82 = scmp.eq.s32.totalorder %s18, 3
      %p83 = por %p81, %p82
      %p85 = scmp.ne.s32.totalorder %s70, %s84
      %p86 = scmp.eq.s32.totalorder %s18, 0
      %p87 = por %p85, %p86
      %s88 = ssub.s32 %s12, %s19
      %p89 = scmp.eq.s32.totalorder %s88, 0
      %s91 = sadd.s32 %s90, 1
      %s92 = scalar_select %p89, %s90, %s91
      %p95 = pneg %p89
      %p96 = scmp.eq.s32.totalorder %s12, 3
      %p97 = por %p95, %p96
      %p98 = scmp.ne.s32.totalorder %s90, %s93
      %p99 = scmp.eq.s32.totalorder %s12, 0
      %p100 = por %p98, %p99
      %p101 = scmp.ne.s32.totalorder %s90, %s93
      %p102 = scmp.eq.s32.totalorder %s17, 3
      %p103 = por %p101, %p102
      %p104 = scmp.ne.s32.totalorder %s93, %s94
      %p105 = scmp.eq.s32.totalorder %s17, 0
      %p106 = por %p104, %p105
      %p107 = scmp.ne.s32.totalorder %s93, %s94
      %p108 = scmp.eq.s32.totalorder %s18, 3
      %p109 = por %p107, %p108
      %p111 = scmp.ne.s32.totalorder %s94, %s110
      %p112 = scmp.eq.s32.totalorder %s18, 0
      %p113 = por %p111, %p112
      %p114 = scmp.le.s32.totalorder 1, %s12
      %p115 = scmp.lt.s32.totalorder %s12, 5
      %p116 = pnand %p114, %p115
      %p117 = pneg %p116
      // Predicated region
      $region9: #{gcn_forward.1} parent=5 // pred_check
        _
      $region10: #{gcn_forward.1} parent=5 // pred_check_branch
        %119 = sbr.rel (%p116) target = $region12
      $region11: #{gcn_forward.1} parent=5 // pred_region
        %s120 = ssub.s32 %s12, 1
        // Predicated region
        $region13: #{gcn_forward.1} parent=11 // pred_check
          %p121 = pneg %p59
        $region14: #{gcn_forward.1} parent=11 // pred_check_branch
          %123 = sbr.rel (%p121) target = $region16
        $region15: #{gcn_forward.1} parent=11 // pred_region
          _
        $region16: #{gcn_forward.1} parent=11 // pred_fallthru
          _
        // Predicated region
        $region17: #{gcn_forward.1} parent=11 // pred_check
          %p124 = pneg %p80
        $region18: #{gcn_forward.1} parent=11 // pred_check_branch
          %126 = sbr.rel (%p124) target = $region20
        $region19: #{gcn_forward.1} parent=11 // pred_region
          _
        $region20: #{gcn_forward.1} parent=11 // pred_fallthru
          _
      $region12: #{gcn_forward.1} parent=5 // pred_fallthru
        _
      %p127 = scmp.lt.s32.totalorder %s12, 4
      // Predicated region
      $region21: #{gcn_forward.1} parent=5 // pred_check
        %p128 = pneg %p127
      $region22: #{gcn_forward.1} parent=5 // pred_check_branch
        %130 = sbr.rel (%p128) target = $region24
      $region23: #{gcn_forward.1} parent=5 // pred_region
        // Predicated region
        $region25: #{gcn_forward.1} parent=23 // pred_check
          %p131 = pneg %p32
        $region26: #{gcn_forward.1} parent=23 // pred_check_branch
          %133 = sbr.rel (%p131) target = $region28
        $region27: #{gcn_forward.1} parent=23 // pred_region
          %s134 = smul.u32 32, %s12
          %p135 = scmp.lt.s32.totalorder %s134, 127
          %s136 = scalar_select %p135, %s134, 127
          %s137 = smul.addr %s136, 6
          %s138 = smul.addr %s137, 4
          %s139 = scalar_lea.vmem %s0, %s138
          %s140 = smul.u32 32, %s12
        $region28: #{gcn_forward.1} parent=23 // pred_fallthru
          _
      $region24: #{gcn_forward.1} parent=5 // pred_fallthru
        _
      %p141 = scmp.le.s32.totalorder 1, %s12
      %p142 = scmp.lt.s32.totalorder %s12, 5
      %p143 = pnand %p141, %p142
      %p144 = pneg %p143
      // Predicated region
      $region29: #{gcn_forward.1} parent=5 // pred_check
        _
      $region30: #{gcn_forward.1} parent=5 // pred_check_branch
        %146 = sbr.rel (%p143) target = $region32
      $region31: #{gcn_forward.1} parent=5 // pred_region
        %s147 = ssub.s32 %s12, 1
        %s148 = smul.u32 32, %s17
        %p149 = scmp.lt.s32.totalorder %s148, 127
        %s150 = scalar_select %p149, %s148, 127
        %s151 = smul.addr %s150, 6
        %s152 = smul.addr %s151, 4
        %s153 = scalar_lea.vmem %s0, %s152
        %p154 = pneg %p38
        %p155 = pneg %p35
        %p156 = pneg %p59
        %p157 = pneg %p56
        %p158 = pneg %p80
        %p159 = pneg %p77
        %p160 = pneg %p106
        %p161 = pneg %p103
        %s162 = sand.u32 %s93, 1
        %s163 = scalar_lea.sflag [#allocation4], %s162
        %s164 = sand.u32 %s93, 1
        %s165 = smul.addr %s164, 768
        %s166 = scalar_lea.vmem [#allocation3], %s165
        %s167 = smul.u32 32, %s17
        %p168 = scmp.lt.s32.totalorder %s167, 127
        %s169 = scalar_select %p168, %s167, 127
        %s170 = smul.addr %s169, 6
        %s171 = smul.addr %s170, 4
        %s172 = scalar_lea.vmem %s0, %s171
        %s173 = smul.u32 32, %s17
        %s174 = smul.u32 32, %s17
        %v176 = vld [vmem:[%s172] sm:$0xff]
        %v177 = vld [vmem:[%s172 + $0x8] sm:$0xff]
        %v178 = vld [vmem:[%s172 + $0x10] sm:$0xff]
        %v179 = vld [vmem:[%s172 + $0x18] sm:$0xff]
        %v180 = vld [vmem:[%s172 + $0x20] sm:$0xff]
        %v181 = vld [vmem:[%s172 + $0x28] sm:$0xff]
        %v182 = vld [vmem:[%s172 + $0x30] sm:$0xff]
        %v183 = vld [vmem:[%s172 + $0x38] sm:$0xff]
        %v184 = vld [vmem:[%s172 + $0x40] sm:$0xff]
        %v185 = vld [vmem:[%s172 + $0x48] sm:$0xff]
        %v186 = vld [vmem:[%s172 + $0x50] sm:$0xff]
        %v187 = vld [vmem:[%s172 + $0x58] sm:$0xff]
        %v188 = vld [vmem:[%s172 + $0x60] sm:$0xff]
        %v189 = vld [vmem:[%s172 + $0x68] sm:$0xff]
        %v190 = vld [vmem:[%s172 + $0x70] sm:$0xff]
        %v191 = vld [vmem:[%s172 + $0x78] sm:$0xff]
        %v192 = vld [vmem:[%s172 + $0x80] sm:$0xff]
        %v193 = vld [vmem:[%s172 + $0x88] sm:$0xff]
        %v194 = vld [vmem:[%s172 + $0x90] sm:$0xff]
        %v195 = vld [vmem:[%s172 + $0x98] sm:$0xff]
        %v196 = vld [vmem:[%s172 + $0xa0] sm:$0xff]
        %v197 = vld [vmem:[%s172 + $0xa8] sm:$0xff]
        %v198 = vld [vmem:[%s172 + $0xb0] sm:$0xff]
        %v199 = vld [vmem:[%s172 + $0xb8] sm:$0xff]
        %v200 = vld [vmem:[%s172 + $0xc0] sm:$0xff]
        %v201 = vld [vmem:[%s172 + $0xc8] sm:$0xff]
        %v202 = vld [vmem:[%s172 + $0xd0] sm:$0xff]
        %v203 = vld [vmem:[%s172 + $0xd8] sm:$0xff]
        %v204 = vld [vmem:[%s172 + $0xe0] sm:$0xff]
        %v205 = vld [vmem:[%s172 + $0xe8] sm:$0xff]
        %v206 = vld [vmem:[%s172 + $0xf0] sm:$0xff]
        %v207 = vld [vmem:[%s172 + $0xf8] sm:$0xff]
        %v208 = vld [vmem:[%s172 + $0x100] sm:$0xff]
        %v209 = vld [vmem:[%s172 + $0x108] sm:$0xff]
        %v210 = vld [vmem:[%s172 + $0x110] sm:$0xff]
        %v211 = vld [vmem:[%s172 + $0x118] sm:$0xff]
        %v212 = vld [vmem:[%s172 + $0x120] sm:$0xff]
        %v213 = vld [vmem:[%s172 + $0x128] sm:$0xff]
        %v214 = vld [vmem:[%s172 + $0x130] sm:$0xff]
        %v215 = vld [vmem:[%s172 + $0x138] sm:$0xff]
        %v216 = vld [vmem:[%s172 + $0x140] sm:$0xff]
        %v217 = vld [vmem:[%s172 + $0x148] sm:$0xff]
        %v218 = vld [vmem:[%s172 + $0x150] sm:$0xff]
        %v219 = vld [vmem:[%s172 + $0x158] sm:$0xff]
        %v220 = vld [vmem:[%s172 + $0x160] sm:$0xff]
        %v221 = vld [vmem:[%s172 + $0x168] sm:$0xff]
        %v222 = vld [vmem:[%s172 + $0x170] sm:$0xff]
        %v223 = vld [vmem:[%s172 + $0x178] sm:$0xff]
        %v224 = vld [vmem:[%s1] sm:$0xf]
        %v225 = vld [vmem:[%s1 + $0x4] sm:$0xf]
        %v226 = vld [vmem:[%s1 + $0x8] sm:$0xf]
        %v227 = vld [vmem:[%s1 + $0xc] sm:$0xf]
        %v228 = vld [vmem:[%s1 + $0x10] sm:$0xf]
        %v229 = vld [vmem:[%s1 + $0x14] sm:$0xf]
        %v230 = vld [vmem:[%s1 + $0x18] sm:$0xf]
        %v231 = vld [vmem:[%s1 + $0x1c] sm:$0xf]
        %v232 = vld [vmem:[%s1 + $0x20] sm:$0xf]
        %v233 = vld [vmem:[%s1 + $0x24] sm:$0xf]
        %v234 = vld [vmem:[%s1 + $0x28] sm:$0xf]
        %v235 = vld [vmem:[%s1 + $0x2c] sm:$0xf]
        %v236 = vld [vmem:[%s1 + $0x30] sm:$0xf]
        %v237 = vld [vmem:[%s1 + $0x34] sm:$0xf]
        %v238 = vld [vmem:[%s1 + $0x38] sm:$0xf]
        %v239 = vld [vmem:[%s1 + $0x3c] sm:$0xf]
        %v240 = vunpack.c.l.bf16 %v176
        %v241 = vunpack.c.h.bf16 %v176
        %v242 = vunpack.c.l.bf16 %v177
        %v243 = vunpack.c.h.bf16 %v177
        %v244 = vunpack.c.l.bf16 %v178
        %v245 = vunpack.c.h.bf16 %v178
        %v246 = vunpack.c.l.bf16 %v179
        %v247 = vunpack.c.h.bf16 %v179
        %v248 = vunpack.c.l.bf16 %v180
        %v249 = vunpack.c.h.bf16 %v180
        %v250 = vunpack.c.l.bf16 %v181
        %v251 = vunpack.c.h.bf16 %v181
        %v252 = vunpack.c.l.bf16 %v182
        %v253 = vunpack.c.h.bf16 %v182
        %v254 = vunpack.c.l.bf16 %v183
        %v255 = vunpack.c.h.bf16 %v183
        %v256 = vunpack.c.l.bf16 %v184
        %v257 = vunpack.c.h.bf16 %v184
        %v258 = vunpack.c.l.bf16 %v185
        %v259 = vunpack.c.h.bf16 %v185
        %v260 = vunpack.c.l.bf16 %v186
        %v261 = vunpack.c.h.bf16 %v186
        %v262 = vunpack.c.l.bf16 %v187
        %v263 = vunpack.c.h.bf16 %v187
        %v264 = vunpack.c.l.bf16 %v188
        %v265 = vunpack.c.h.bf16 %v188
        %v266 = vunpack.c.l.bf16 %v189
        %v267 = vunpack.c.h.bf16 %v189
        %v268 = vunpack.c.l.bf16 %v190
        %v269 = vunpack.c.h.bf16 %v190
        %v270 = vunpack.c.l.bf16 %v191
        %v271 = vunpack.c.h.bf16 %v191
        %v272 = vunpack.c.l.bf16 %v192
        %v273 = vunpack.c.h.bf16 %v192
        %v274 = vunpack.c.l.bf16 %v193
        %v275 = vunpack.c.h.bf16 %v193
        %v276 = vunpack.c.l.bf16 %v194
        %v277 = vunpack.c.h.bf16 %v194
        %v278 = vunpack.c.l.bf16 %v195
        %v279 = vunpack.c.h.bf16 %v195
        %v280 = vunpack.c.l.bf16 %v196
        %v281 = vunpack.c.h.bf16 %v196
        %v282 = vunpack.c.l.bf16 %v197
        %v283 = vunpack.c.h.bf16 %v197
        %v284 = vunpack.c.l.bf16 %v198
        %v285 = vunpack.c.h.bf16 %v198
        %v286 = vunpack.c.l.bf16 %v199
        %v287 = vunpack.c.h.bf16 %v199
        %v288 = vunpack.c.l.bf16 %v200
        %v289 = vunpack.c.h.bf16 %v200
        %v290 = vunpack.c.l.bf16 %v201
        %v291 = vunpack.c.h.bf16 %v201
        %v292 = vunpack.c.l.bf16 %v202
        %v293 = vunpack.c.h.bf16 %v202
        %v294 = vunpack.c.l.bf16 %v203
        %v295 = vunpack.c.h.bf16 %v203
        %v296 = vunpack.c.l.bf16 %v204
        %v297 = vunpack.c.h.bf16 %v204
        %v298 = vunpack.c.l.bf16 %v205
        %v299 = vunpack.c.h.bf16 %v205
        %v300 = vunpack.c.l.bf16 %v206
        %v301 = vunpack.c.h.bf16 %v206
        %v302 = vunpack.c.l.bf16 %v207
        %v303 = vunpack.c.h.bf16 %v207
        %v304 = vunpack.c.l.bf16 %v208
        %v305 = vunpack.c.h.bf16 %v208
        %v306 = vunpack.c.l.bf16 %v209
        %v307 = vunpack.c.h.bf16 %v209
        %v308 = vunpack.c.l.bf16 %v210
        %v309 = vunpack.c.h.bf16 %v210
        %v310 = vunpack.c.l.bf16 %v211
        %v311 = vunpack.c.h.bf16 %v211
        %v312 = vunpack.c.l.bf16 %v212
        %v313 = vunpack.c.h.bf16 %v212
        %v314 = vunpack.c.l.bf16 %v213
        %v315 = vunpack.c.h.bf16 %v213
        %v316 = vunpack.c.l.bf16 %v214
        %v317 = vunpack.c.h.bf16 %v214
        %v318 = vunpack.c.l.bf16 %v215
        %v319 = vunpack.c.h.bf16 %v215
        %v320 = vunpack.c.l.bf16 %v216
        %v321 = vunpack.c.h.bf16 %v216
        %v322 = vunpack.c.l.bf16 %v217
        %v323 = vunpack.c.h.bf16 %v217
        %v324 = vunpack.c.l.bf16 %v218
        %v325 = vunpack.c.h.bf16 %v218
        %v326 = vunpack.c.l.bf16 %v219
        %v327 = vunpack.c.h.bf16 %v219
        %v328 = vunpack.c.l.bf16 %v220
        %v329 = vunpack.c.h.bf16 %v220
        %v330 = vunpack.c.l.bf16 %v221
        %v331 = vunpack.c.h.bf16 %v221
        %v332 = vunpack.c.l.bf16 %v222
        %v333 = vunpack.c.h.bf16 %v222
        %v334 = vunpack.c.l.bf16 %v223
        %v335 = vunpack.c.h.bf16 %v223
        %v352 = vunpack.c.l.b16 %v224
        %v353 = vunpack.c.l.b16 %v225
        %v354 = vunpack.c.l.b16 %v226
        %v355 = vunpack.c.l.b16 %v227
        %v356 = vunpack.c.l.b16 %v228
        %v357 = vunpack.c.l.b16 %v229
        %v358 = vunpack.c.l.b16 %v230
        %v359 = vunpack.c.l.b16 %v231
        %v360 = vunpack.c.l.b16 %v232
        %v361 = vunpack.c.l.b16 %v233
        %v362 = vunpack.c.l.b16 %v234
        %v363 = vunpack.c.l.b16 %v235
        %v364 = vunpack.c.l.b16 %v236
        %v365 = vunpack.c.l.b16 %v237
        %v366 = vunpack.c.l.b16 %v238
        %v367 = vunpack.c.l.b16 %v239
        %v368 = vpack.c.b16 %v353, %v352
        %v369 = vpack.c.b16 %v355, %v354
        %v370 = vpack.c.b16 %v357, %v356
        %v371 = vpack.c.b16 %v359, %v358
        %v372 = vpack.c.b16 %v361, %v360
        %v373 = vpack.c.b16 %v363, %v362
        %v374 = vpack.c.b16 %v365, %v364
        %v375 = vpack.c.b16 %v367, %v366
        %v432 = vunpack.c.l.b16 %v176
        %v433 = vunpack.c.h.b16 %v176
        %v434 = vunpack.c.l.b16 %v177
        %v435 = vunpack.c.h.b16 %v177
        %v436 = vunpack.c.l.b16 %v178
        %v437 = vunpack.c.h.b16 %v178
        %v438 = vunpack.c.l.b16 %v179
        %v439 = vunpack.c.h.b16 %v179
        %v440 = vunpack.c.l.b16 %v180
        %v441 = vunpack.c.h.b16 %v180
        %v442 = vunpack.c.l.b16 %v181
        %v443 = vunpack.c.h.b16 %v181
        %v444 = vunpack.c.l.b16 %v182
        %v445 = vunpack.c.h.b16 %v182
        %v446 = vunpack.c.l.b16 %v183
        %v447 = vunpack.c.h.b16 %v183
        %v448 = vunpack.c.l.b16 %v184
        %v449 = vunpack.c.h.b16 %v184
        %v450 = vunpack.c.l.b16 %v185
        %v451 = vunpack.c.h.b16 %v185
        %v452 = vunpack.c.l.b16 %v186
        %v453 = vunpack.c.h.b16 %v186
        %v454 = vunpack.c.l.b16 %v187
        %v455 = vunpack.c.h.b16 %v187
        %v456 = vunpack.c.l.b16 %v188
        %v457 = vunpack.c.h.b16 %v188
        %v458 = vunpack.c.l.b16 %v189
        %v459 = vunpack.c.h.b16 %v189
        %v460 = vunpack.c.l.b16 %v190
        %v461 = vunpack.c.h.b16 %v190
        %v462 = vunpack.c.l.b16 %v191
        %v463 = vunpack.c.h.b16 %v191
        %v464 = vunpack.c.l.b16 %v192
        %v465 = vunpack.c.h.b16 %v192
        %v466 = vunpack.c.l.b16 %v193
        %v467 = vunpack.c.h.b16 %v193
        %v468 = vunpack.c.l.b16 %v194
        %v469 = vunpack.c.h.b16 %v194
        %v470 = vunpack.c.l.b16 %v195
        %v471 = vunpack.c.h.b16 %v195
        %v472 = vunpack.c.l.b16 %v196
        %v473 = vunpack.c.h.b16 %v196
        %v474 = vunpack.c.l.b16 %v197
        %v475 = vunpack.c.h.b16 %v197
        %v476 = vunpack.c.l.b16 %v198
        %v477 = vunpack.c.h.b16 %v198
        %v478 = vunpack.c.l.b16 %v199
        %v479 = vunpack.c.h.b16 %v199
        %v480 = vunpack.c.l.b16 %v200
        %v481 = vunpack.c.h.b16 %v200
        %v482 = vunpack.c.l.b16 %v201
        %v483 = vunpack.c.h.b16 %v201
        %v484 = vunpack.c.l.b16 %v202
        %v485 = vunpack.c.h.b16 %v202
        %v486 = vunpack.c.l.b16 %v203
        %v487 = vunpack.c.h.b16 %v203
        %v488 = vunpack.c.l.b16 %v204
        %v489 = vunpack.c.h.b16 %v204
        %v490 = vunpack.c.l.b16 %v205
        %v491 = vunpack.c.h.b16 %v205
        %v492 = vunpack.c.l.b16 %v206
        %v493 = vunpack.c.h.b16 %v206
        %v494 = vunpack.c.l.b16 %v207
        %v495 = vunpack.c.h.b16 %v207
        %v496 = vunpack.c.l.b16 %v208
        %v497 = vunpack.c.h.b16 %v208
        %v498 = vunpack.c.l.b16 %v209
        %v499 = vunpack.c.h.b16 %v209
        %v500 = vunpack.c.l.b16 %v210
        %v501 = vunpack.c.h.b16 %v210
        %v502 = vunpack.c.l.b16 %v211
        %v503 = vunpack.c.h.b16 %v211
        %v504 = vunpack.c.l.b16 %v212
        %v505 = vunpack.c.h.b16 %v212
        %v506 = vunpack.c.l.b16 %v213
        %v507 = vunpack.c.h.b16 %v213
        %v508 = vunpack.c.l.b16 %v214
        %v509 = vunpack.c.h.b16 %v214
        %v510 = vunpack.c.l.b16 %v215
        %v511 = vunpack.c.h.b16 %v215
        %v512 = vunpack.c.l.b16 %v216
        %v513 = vunpack.c.h.b16 %v216
        %v514 = vunpack.c.l.b16 %v217
        %v515 = vunpack.c.h.b16 %v217
        %v516 = vunpack.c.l.b16 %v218
        %v517 = vunpack.c.h.b16 %v218
        %v518 = vunpack.c.l.b16 %v219
        %v519 = vunpack.c.h.b16 %v219
        %v520 = vunpack.c.l.b16 %v220
        %v521 = vunpack.c.h.b16 %v220
        %v522 = vunpack.c.l.b16 %v221
        %v523 = vunpack.c.h.b16 %v221
        %v524 = vunpack.c.l.b16 %v222
        %v525 = vunpack.c.h.b16 %v222
        %v526 = vunpack.c.l.b16 %v223
        %v527 = vunpack.c.h.b16 %v223
        %v528 = vpack.c.b16 %v438, %v432
        %v529 = vpack.c.b16 %v439, %v433
        %v530 = vpack.c.b16 %v440, %v434
        %v531 = vpack.c.b16 %v441, %v435
        %v532 = vpack.c.b16 %v442, %v436
        %v533 = vpack.c.b16 %v443, %v437
        %v534 = vpack.c.b16 %v450, %v444
        %v535 = vpack.c.b16 %v451, %v445
        %v536 = vpack.c.b16 %v452, %v446
        %v537 = vpack.c.b16 %v453, %v447
        %v538 = vpack.c.b16 %v454, %v448
        %v539 = vpack.c.b16 %v455, %v449
        %v540 = vpack.c.b16 %v462, %v456
        %v541 = vpack.c.b16 %v463, %v457
        %v542 = vpack.c.b16 %v464, %v458
        %v543 = vpack.c.b16 %v465, %v459
        %v544 = vpack.c.b16 %v466, %v460
        %v545 = vpack.c.b16 %v467, %v461
        %v546 = vpack.c.b16 %v474, %v468
        %v547 = vpack.c.b16 %v475, %v469
        %v548 = vpack.c.b16 %v476, %v470
        %v549 = vpack.c.b16 %v477, %v471
        %v550 = vpack.c.b16 %v478, %v472
        %v551 = vpack.c.b16 %v479, %v473
        %v552 = vpack.c.b16 %v486, %v480
        %v553 = vpack.c.b16 %v487, %v481
        %v554 = vpack.c.b16 %v488, %v482
        %v555 = vpack.c.b16 %v489, %v483
        %v556 = vpack.c.b16 %v490, %v484
        %v557 = vpack.c.b16 %v491, %v485
        %v558 = vpack.c.b16 %v498, %v492
        %v559 = vpack.c.b16 %v499, %v493
        %v560 = vpack.c.b16 %v500, %v494
        %v561 = vpack.c.b16 %v501, %v495
        %v562 = vpack.c.b16 %v502, %v496
        %v563 = vpack.c.b16 %v503, %v497
        %v564 = vpack.c.b16 %v510, %v504
        %v565 = vpack.c.b16 %v511, %v505
        %v566 = vpack.c.b16 %v512, %v506
        %v567 = vpack.c.b16 %v513, %v507
        %v568 = vpack.c.b16 %v514, %v508
        %v569 = vpack.c.b16 %v515, %v509
        %v570 = vpack.c.b16 %v522, %v516
        %v571 = vpack.c.b16 %v523, %v517
        %v572 = vpack.c.b16 %v524, %v518
        %v573 = vpack.c.b16 %v525, %v519
        %v574 = vpack.c.b16 %v526, %v520
        %v575 = vpack.c.b16 %v527, %v521
        %624 = vmatprep.subr.bf16.mxu0 %v529
        %625 = vmatpush1.bf16.msra.mxu0 %v528
        %626 = vmatprep.subr.bf16.mxu0 %v535
        %627 = vmatpush1.bf16.msra.mxu0 %v534
        %628 = vmatprep.subr.bf16.mxu0 %v541
        %629 = vmatpush1.bf16.msra.mxu0 %v540
        %630 = vmatprep.subr.bf16.mxu0 %v547
        %631 = vmatpush1.bf16.msra.mxu0 %v546
        %632 = vmatprep.subr.bf16.mxu0 %v553
        %633 = vmatpush1.bf16.msra.mxu0 %v552
        %634 = vmatprep.subr.bf16.mxu0 %v559
        %635 = vmatpush1.bf16.msra.mxu0 %v558
        %636 = vmatprep.subr.bf16.mxu0 %v565
        %637 = vmatpush1.bf16.msra.mxu0 %v564
        %638 = vmatprep.subr.bf16.mxu0 %v571
        %639 = vmatpush1.bf16.msra.mxu0 %v570
        %640 = vmatprep.subr.bf16.mxu0 0
        %641 = vmatpush1.bf16.msra.mxu0 0
        %642 = vmatprep.subr.bf16.mxu0 0
        %643 = vmatpush1.bf16.msra.mxu0 0
        %644 = vmatprep.subr.bf16.mxu0 0
        %645 = vmatpush1.bf16.msra.mxu0 0
        %646 = vmatprep.subr.bf16.mxu0 0
        %647 = vmatpush1.bf16.msra.mxu0 0
        %648 = vmatprep.subr.bf16.mxu0 0
        %649 = vmatpush1.bf16.msra.mxu0 0
        %650 = vmatprep.subr.bf16.mxu0 0
        %651 = vmatpush1.bf16.msra.mxu0 0
        %652 = vmatprep.subr.bf16.mxu0 0
        %653 = vmatpush1.bf16.msra.mxu0 0
        %654 = vmatprep.subr.bf16.mxu0 0
        %655 = vmatpush1.bf16.msra.mxu0 0
        %656 = vmatprep.mubr.bf16.mxu0 0
        %657 = vmatmul.mubr.bf16.gmra.mrb[0].mxu0 %v368
        %v658 = vpop.f32.mrb[0].mxu0
        %v659 = vadd.f32 %v240, %v658
        %v660 = vpop.f32.mrb[0].mxu0
        %v661 = vadd.f32 %v241, %v660
        %v662 = vpop.f32.mrb[0].mxu0
        %v663 = vadd.f32 %v246, %v662
        %v664 = vpop.f32.mrb[0].mxu0
        %v665 = vadd.f32 %v247, %v664
        %666 = vmatprep.mubr.bf16.mxu0 0
        %667 = vmatmul.mubr.bf16.gmra.mrb[0].mxu0 %v369
        %v668 = vpop.f32.mrb[0].mxu0
        %v669 = vadd.f32 %v252, %v668
        %v670 = vpop.f32.mrb[0].mxu0
        %v671 = vadd.f32 %v253, %v670
        %v672 = vpop.f32.mrb[0].mxu0
        %v673 = vadd.f32 %v258, %v672
        %v674 = vpop.f32.mrb[0].mxu0
        %v675 = vadd.f32 %v259, %v674
        %676 = vmatprep.mubr.bf16.mxu0 0
        %677 = vmatmul.mubr.bf16.gmra.mrb[0].mxu0 %v370
        %v678 = vpop.f32.mrb[0].mxu0
        %v679 = vadd.f32 %v264, %v678
        %v680 = vpop.f32.mrb[0].mxu0
        %v681 = vadd.f32 %v265, %v680
        %v682 = vpop.f32.mrb[0].mxu0
        %v683 = vadd.f32 %v270, %v682
        %v684 = vpop.f32.mrb[0].mxu0
        %v685 = vadd.f32 %v271, %v684
        %686 = vmatprep.mubr.bf16.mxu0 0
        %687 = vmatmul.mubr.bf16.gmra.mrb[0].mxu0 %v371
        %v688 = vpop.f32.mrb[0].mxu0
        %v689 = vadd.f32 %v276, %v688
        %v690 = vpop.f32.mrb[0].mxu0
        %v691 = vadd.f32 %v277, %v690
        %v692 = vpop.f32.mrb[0].mxu0
        %v693 = vadd.f32 %v282, %v692
        %v694 = vpop.f32.mrb[0].mxu0
        %v695 = vadd.f32 %v283, %v694
        %696 = vmatprep.mubr.bf16.mxu0 0
        %697 = vmatmul.mubr.bf16.gmra.mrb[0].mxu0 %v372
        %v698 = vpop.f32.mrb[0].mxu0
        %v699 = vadd.f32 %v288, %v698
        %v700 = vpop.f32.mrb[0].mxu0
        %v701 = vadd.f32 %v289, %v700
        %v702 = vpop.f32.mrb[0].mxu0
        %v703 = vadd.f32 %v294, %v702
        %v704 = vpop.f32.mrb[0].mxu0
        %v705 = vadd.f32 %v295, %v704
        %706 = vmatprep.mubr.bf16.mxu0 0
        %707 = vmatmul.mubr.bf16.gmra.mrb[0].mxu0 %v373
        %v708 = vpop.f32.mrb[0].mxu0
        %v709 = vadd.f32 %v300, %v708
        %v710 = vpop.f32.mrb[0].mxu0
        %v711 = vadd.f32 %v301, %v710
        %v712 = vpop.f32.mrb[0].mxu0
        %v713 = vadd.f32 %v306, %v712
        %v714 = vpop.f32.mrb[0].mxu0
        %v715 = vadd.f32 %v307, %v714
        %716 = vmatprep.mubr.bf16.mxu0 0
        %717 = vmatmul.mubr.bf16.gmra.mrb[0].mxu0 %v374
        %v718 = vpop.f32.mrb[0].mxu0
        %v719 = vadd.f32 %v312, %v718
        %v720 = vpop.f32.mrb[0].mxu0
        %v721 = vadd.f32 %v313, %v720
        %v722 = vpop.f32.mrb[0].mxu0
        %v723 = vadd.f32 %v318, %v722
        %v724 = vpop.f32.mrb[0].mxu0
        %v725 = vadd.f32 %v319, %v724
        %726 = vmatprep.mubr.bf16.mxu0 0
        %727 = vmatmul.mubr.bf16.gmra.mrb[0].mxu0 %v375
        %v728 = vpop.f32.mrb[0].mxu0
        %v729 = vadd.f32 %v324, %v728
        %v730 = vpop.f32.mrb[0].mxu0
        %v731 = vadd.f32 %v325, %v730
        %v732 = vpop.f32.mrb[0].mxu0
        %v733 = vadd.f32 %v330, %v732
        %v734 = vpop.f32.mrb[0].mxu0
        %v735 = vadd.f32 %v331, %v734
        %736 = vdwg.mxu0
        %737 = vmatprep.subr.bf16.mxu0 %v531
        %738 = vmatpush1.bf16.msra.mxu0 %v530
        %739 = vmatprep.subr.bf16.mxu0 %v537
        %740 = vmatpush1.bf16.msra.mxu0 %v536
        %741 = vmatprep.subr.bf16.mxu0 %v543
        %742 = vmatpush1.bf16.msra.mxu0 %v542
        %743 = vmatprep.subr.bf16.mxu0 %v549
        %744 = vmatpush1.bf16.msra.mxu0 %v548
        %745 = vmatprep.subr.bf16.mxu0 %v555
        %746 = vmatpush1.bf16.msra.mxu0 %v554
        %747 = vmatprep.subr.bf16.mxu0 %v561
        %748 = vmatpush1.bf16.msra.mxu0 %v560
        %749 = vmatprep.subr.bf16.mxu0 %v567
        %750 = vmatpush1.bf16.msra.mxu0 %v566
        %751 = vmatprep.subr.bf16.mxu0 %v573
        %752 = vmatpush1.bf16.msra.mxu0 %v572
        %753 = vmatprep.subr.bf16.mxu0 0
        %754 = vmatpush1.bf16.msra.mxu0 0
        %755 = vmatprep.subr.bf16.mxu0 0
        %756 = vmatpush1.bf16.msra.mxu0 0
        %757 = vmatprep.subr.bf16.mxu0 0
        %758 = vmatpush1.bf16.msra.mxu0 0
        %759 = vmatprep.subr.bf16.mxu0 0
        %760 = vmatpush1.bf16.msra.mxu0 0
        %761 = vmatprep.subr.bf16.mxu0 0
        %762 = vmatpush1.bf16.msra.mxu0 0
        %763 = vmatprep.subr.bf16.mxu0 0
        %764 = vmatpush1.bf16.msra.mxu0 0
        %765 = vmatprep.subr.bf16.mxu0 0
        %766 = vmatpush1.bf16.msra.mxu0 0
        %767 = vmatprep.subr.bf16.mxu0 0
        %768 = vmatpush1.bf16.msra.mxu0 0
        %769 = vmatprep.mubr.bf16.mxu0 0
        %770 = vmatmul.mubr.bf16.gmra.mrb[0].mxu0 %v368
        %v771 = vpop.f32.mrb[0].mxu0
        %v772 = vadd.f32 %v242, %v771
        %v773 = vpop.f32.mrb[0].mxu0
        %v774 = vadd.f32 %v243, %v773
        %v775 = vpop.f32.mrb[0].mxu0
        %v776 = vadd.f32 %v248, %v775
        %v777 = vpop.f32.mrb[0].mxu0
        %v778 = vadd.f32 %v249, %v777
        %779 = vmatprep.mubr.bf16.mxu0 0
        %780 = vmatmul.mubr.bf16.gmra.mrb[0].mxu0 %v369
        %v781 = vpop.f32.mrb[0].mxu0
        %v782 = vadd.f32 %v254, %v781
        %v783 = vpop.f32.mrb[0].mxu0
        %v784 = vadd.f32 %v255, %v783
        %v785 = vpop.f32.mrb[0].mxu0
        %v786 = vadd.f32 %v260, %v785
        %v787 = vpop.f32.mrb[0].mxu0
        %v788 = vadd.f32 %v261, %v787
        %789 = vmatprep.mubr.bf16.mxu0 0
        %790 = vmatmul.mubr.bf16.gmra.mrb[0].mxu0 %v370
        %v791 = vpop.f32.mrb[0].mxu0
        %v792 = vadd.f32 %v266, %v791
        %v793 = vpop.f32.mrb[0].mxu0
        %v794 = vadd.f32 %v267, %v793
        %v795 = vpop.f32.mrb[0].mxu0
        %v796 = vadd.f32 %v272, %v795
        %v797 = vpop.f32.mrb[0].mxu0
        %v798 = vadd.f32 %v273, %v797
        %799 = vmatprep.mubr.bf16.mxu0 0
        %800 = vmatmul.mubr.bf16.gmra.mrb[0].mxu0 %v371
        %v801 = vpop.f32.mrb[0].mxu0
        %v802 = vadd.f32 %v278, %v801
        %v803 = vpop.f32.mrb[0].mxu0
        %v804 = vadd.f32 %v279, %v803
        %v805 = vpop.f32.mrb[0].mxu0
        %v806 = vadd.f32 %v284, %v805
        %v807 = vpop.f32.mrb[0].mxu0
        %v808 = vadd.f32 %v285, %v807
        %809 = vmatprep.mubr.bf16.mxu0 0
        %810 = vmatmul.mubr.bf16.gmra.mrb[0].mxu0 %v372
        %v811 = vpop.f32.mrb[0].mxu0
        %v812 = vadd.f32 %v290, %v811
        %v813 = vpop.f32.mrb[0].mxu0
        %v814 = vadd.f32 %v291, %v813
        %v815 = vpop.f32.mrb[0].mxu0
        %v816 = vadd.f32 %v296, %v815
        %v817 = vpop.f32.mrb[0].mxu0
        %v818 = vadd.f32 %v297, %v817
        %819 = vmatprep.mubr.bf16.mxu0 0
        %820 = vmatmul.mubr.bf16.gmra.mrb[0].mxu0 %v373
        %v821 = vpop.f32.mrb[0].mxu0
        %v822 = vadd.f32 %v302, %v821
        %v823 = vpop.f32.mrb[0].mxu0
        %v824 = vadd.f32 %v303, %v823
        %v825 = vpop.f32.mrb[0].mxu0
        %v826 = vadd.f32 %v308, %v825
        %v827 = vpop.f32.mrb[0].mxu0
        %v828 = vadd.f32 %v309, %v827
        %829 = vmatprep.mubr.bf16.mxu0 0
        %830 = vmatmul.mubr.bf16.gmra.mrb[0].mxu0 %v374
        %v831 = vpop.f32.mrb[0].mxu0
        %v832 = vadd.f32 %v314, %v831
        %v833 = vpop.f32.mrb[0].mxu0
        %v834 = vadd.f32 %v315, %v833
        %v835 = vpop.f32.mrb[0].mxu0
        %v836 = vadd.f32 %v320, %v835
        %v837 = vpop.f32.mrb[0].mxu0
        %v838 = vadd.f32 %v321, %v837
        %839 = vmatprep.mubr.bf16.mxu0 0
        %840 = vmatmul.mubr.bf16.gmra.mrb[0].mxu0 %v375
        %v841 = vpop.f32.mrb[0].mxu0
        %v842 = vadd.f32 %v326, %v841
        %v843 = vpop.f32.mrb[0].mxu0
        %v844 = vadd.f32 %v327, %v843
        %v845 = vpop.f32.mrb[0].mxu0
        %v846 = vadd.f32 %v332, %v845
        %v847 = vpop.f32.mrb[0].mxu0
        %v848 = vadd.f32 %v333, %v847
        %849 = vdwg.mxu0
        %850 = vmatprep.subr.bf16.mxu0 %v533
        %851 = vmatpush1.bf16.msra.mxu0 %v532
        %852 = vmatprep.subr.bf16.mxu0 %v539
        %853 = vmatpush1.bf16.msra.mxu0 %v538
        %854 = vmatprep.subr.bf16.mxu0 %v545
        %855 = vmatpush1.bf16.msra.mxu0 %v544
        %856 = vmatprep.subr.bf16.mxu0 %v551
        %857 = vmatpush1.bf16.msra.mxu0 %v550
        %858 = vmatprep.subr.bf16.mxu0 %v557
        %859 = vmatpush1.bf16.msra.mxu0 %v556
        %860 = vmatprep.subr.bf16.mxu0 %v563
        %861 = vmatpush1.bf16.msra.mxu0 %v562
        %862 = vmatprep.subr.bf16.mxu0 %v569
        %863 = vmatpush1.bf16.msra.mxu0 %v568
        %864 = vmatprep.subr.bf16.mxu0 %v575
        %865 = vmatpush1.bf16.msra.mxu0 %v574
        %866 = vmatprep.subr.bf16.mxu0 0
        %867 = vmatpush1.bf16.msra.mxu0 0
        %868 = vmatprep.subr.bf16.mxu0 0
        %869 = vmatpush1.bf16.msra.mxu0 0
        %870 = vmatprep.subr.bf16.mxu0 0
        %871 = vmatpush1.bf16.msra.mxu0 0
        %872 = vmatprep.subr.bf16.mxu0 0
        %873 = vmatpush1.bf16.msra.mxu0 0
        %874 = vmatprep.subr.bf16.mxu0 0
        %875 = vmatpush1.bf16.msra.mxu0 0
        %876 = vmatprep.subr.bf16.mxu0 0
        %877 = vmatpush1.bf16.msra.mxu0 0
        %878 = vmatprep.subr.bf16.mxu0 0
        %879 = vmatpush1.bf16.msra.mxu0 0
        %880 = vmatprep.subr.bf16.mxu0 0
        %881 = vmatpush1.bf16.msra.mxu0 0
        %882 = vmatprep.mubr.bf16.mxu0 0
        %883 = vmatmul.mubr.bf16.gmra.mrb[0].mxu0 %v368
        %v884 = vpop.f32.mrb[0].mxu0
        %v885 = vadd.f32 %v244, %v884
        %v886 = vpop.f32.mrb[0].mxu0
        %v887 = vadd.f32 %v245, %v886
        %v888 = vpop.f32.mrb[0].mxu0
        %v889 = vadd.f32 %v250, %v888
        %v890 = vpop.f32.mrb[0].mxu0
        %v891 = vadd.f32 %v251, %v890
        %892 = vmatprep.mubr.bf16.mxu0 0
        %893 = vmatmul.mubr.bf16.gmra.mrb[0].mxu0 %v369
        %v894 = vpop.f32.mrb[0].mxu0
        %v895 = vadd.f32 %v256, %v894
        %v896 = vpop.f32.mrb[0].mxu0
        %v897 = vadd.f32 %v257, %v896
        %v898 = vpop.f32.mrb[0].mxu0
        %v899 = vadd.f32 %v262, %v898
        %v900 = vpop.f32.mrb[0].mxu0
        %v901 = vadd.f32 %v263, %v900
        %902 = vmatprep.mubr.bf16.mxu0 0
        %903 = vmatmul.mubr.bf16.gmra.mrb[0].mxu0 %v370
        %v904 = vpop.f32.mrb[0].mxu0
        %v905 = vadd.f32 %v268, %v904
        %v906 = vpop.f32.mrb[0].mxu0
        %v907 = vadd.f32 %v269, %v906
        %v908 = vpop.f32.mrb[0].mxu0
        %v909 = vadd.f32 %v274, %v908
        %v910 = vpop.f32.mrb[0].mxu0
        %v911 = vadd.f32 %v275, %v910
        %912 = vmatprep.mubr.bf16.mxu0 0
        %913 = vmatmul.mubr.bf16.gmra.mrb[0].mxu0 %v371
        %v914 = vpop.f32.mrb[0].mxu0
        %v915 = vadd.f32 %v280, %v914
        %v916 = vpop.f32.mrb[0].mxu0
        %v917 = vadd.f32 %v281, %v916
        %v918 = vpop.f32.mrb[0].mxu0
        %v919 = vadd.f32 %v286, %v918
        %v920 = vpop.f32.mrb[0].mxu0
        %v921 = vadd.f32 %v287, %v920
        %922 = vmatprep.mubr.bf16.mxu0 0
        %923 = vmatmul.mubr.bf16.gmra.mrb[0].mxu0 %v372
        %v924 = vpop.f32.mrb[0].mxu0
        %v925 = vadd.f32 %v292, %v924
        %v926 = vpop.f32.mrb[0].mxu0
        %v927 = vadd.f32 %v293, %v926
        %v928 = vpop.f32.mrb[0].mxu0
        %v929 = vadd.f32 %v298, %v928
        %v930 = vpop.f32.mrb[0].mxu0
        %v931 = vadd.f32 %v299, %v930
        %932 = vmatprep.mubr.bf16.mxu0 0
        %933 = vmatmul.mubr.bf16.gmra.mrb[0].mxu0 %v373
        %v934 = vpop.f32.mrb[0].mxu0
        %v935 = vadd.f32 %v304, %v934
        %v936 = vpop.f32.mrb[0].mxu0
        %v937 = vadd.f32 %v305, %v936
        %v938 = vpop.f32.mrb[0].mxu0
        %v939 = vadd.f32 %v310, %v938
        %v940 = vpop.f32.mrb[0].mxu0
        %v941 = vadd.f32 %v311, %v940
        %942 = vmatprep.mubr.bf16.mxu0 0
        %943 = vmatmul.mubr.bf16.gmra.mrb[0].mxu0 %v374
        %v944 = vpop.f32.mrb[0].mxu0
        %v945 = vadd.f32 %v316, %v944
        %v946 = vpop.f32.mrb[0].mxu0
        %v947 = vadd.f32 %v317, %v946
        %v948 = vpop.f32.mrb[0].mxu0
        %v949 = vadd.f32 %v322, %v948
        %v950 = vpop.f32.mrb[0].mxu0
        %v951 = vadd.f32 %v323, %v950
        %952 = vmatprep.mubr.bf16.mxu0 0
        %953 = vmatmul.mubr.bf16.gmra.mrb[0].mxu0 %v375
        %v954 = vpop.f32.mrb[0].mxu0
        %v955 = vadd.f32 %v328, %v954
        %v956 = vpop.f32.mrb[0].mxu0
        %v957 = vadd.f32 %v329, %v956
        %v958 = vpop.f32.mrb[0].mxu0
        %v959 = vadd.f32 %v334, %v958
        %v960 = vpop.f32.mrb[0].mxu0
        %v961 = vadd.f32 %v335, %v960
        %962 = vdwg.mxu0
        %v963 = vmax.f32 %v659, 0.0
        %v964 = vmax.f32 %v661, 0.0
        %v965 = vmax.f32 %v772, 0.0
        %v966 = vmax.f32 %v774, 0.0
        %v967 = vmax.f32 %v885, 0.0
        %v968 = vmax.f32 %v887, 0.0
        %v969 = vmax.f32 %v663, 0.0
        %v970 = vmax.f32 %v665, 0.0
        %v971 = vmax.f32 %v776, 0.0
        %v972 = vmax.f32 %v778, 0.0
        %v973 = vmax.f32 %v889, 0.0
        %v974 = vmax.f32 %v891, 0.0
        %v975 = vmax.f32 %v669, 0.0
        %v976 = vmax.f32 %v671, 0.0
        %v977 = vmax.f32 %v782, 0.0
        %v978 = vmax.f32 %v784, 0.0
        %v979 = vmax.f32 %v895, 0.0
        %v980 = vmax.f32 %v897, 0.0
        %v981 = vmax.f32 %v673, 0.0
        %v982 = vmax.f32 %v675, 0.0
        %v983 = vmax.f32 %v786, 0.0
        %v984 = vmax.f32 %v788, 0.0
        %v985 = vmax.f32 %v899, 0.0
        %v986 = vmax.f32 %v901, 0.0
        %v987 = vmax.f32 %v679, 0.0
        %v988 = vmax.f32 %v681, 0.0
        %v989 = vmax.f32 %v792, 0.0
        %v990 = vmax.f32 %v794, 0.0
        %v991 = vmax.f32 %v905, 0.0
        %v992 = vmax.f32 %v907, 0.0
        %v993 = vmax.f32 %v683, 0.0
        %v994 = vmax.f32 %v685, 0.0
        %v995 = vmax.f32 %v796, 0.0
        %v996 = vmax.f32 %v798, 0.0
        %v997 = vmax.f32 %v909, 0.0
        %v998 = vmax.f32 %v911, 0.0
        %v999 = vmax.f32 %v689, 0.0
        %v1000 = vmax.f32 %v691, 0.0
        %v1001 = vmax.f32 %v802, 0.0
        %v1002 = vmax.f32 %v804, 0.0
        %v1003 = vmax.f32 %v915, 0.0
        %v1004 = vmax.f32 %v917, 0.0
        %v1005 = vmax.f32 %v693, 0.0
        %v1006 = vmax.f32 %v695, 0.0
        %v1007 = vmax.f32 %v806, 0.0
        %v1008 = vmax.f32 %v808, 0.0
        %v1009 = vmax.f32 %v919, 0.0
        %v1010 = vmax.f32 %v921, 0.0
        %v1011 = vmax.f32 %v699, 0.0
        %v1012 = vmax.f32 %v701, 0.0
        %v1013 = vmax.f32 %v812, 0.0
        %v1014 = vmax.f32 %v814, 0.0
        %v1015 = vmax.f32 %v925, 0.0
        %v1016 = vmax.f32 %v927, 0.0
        %v1017 = vmax.f32 %v703, 0.0
        %v1018 = vmax.f32 %v705, 0.0
        %v1019 = vmax.f32 %v816, 0.0
        %v1020 = vmax.f32 %v818, 0.0
        %v1021 = vmax.f32 %v929, 0.0
        %v1022 = vmax.f32 %v931, 0.0
        %v1023 = vmax.f32 %v709, 0.0
        %v1024 = vmax.f32 %v711, 0.0
        %v1025 = vmax.f32 %v822, 0.0
        %v1026 = vmax.f32 %v824, 0.0
        %v1027 = vmax.f32 %v935, 0.0
        %v1028 = vmax.f32 %v937, 0.0
        %v1029 = vmax.f32 %v713, 0.0
        %v1030 = vmax.f32 %v715, 0.0
        %v1031 = vmax.f32 %v826, 0.0
        %v1032 = vmax.f32 %v828, 0.0
        %v1033 = vmax.f32 %v939, 0.0
        %v1034 = vmax.f32 %v941, 0.0
        %v1035 = vmax.f32 %v719, 0.0
        %v1036 = vmax.f32 %v721, 0.0
        %v1037 = vmax.f32 %v832, 0.0
        %v1038 = vmax.f32 %v834, 0.0
        %v1039 = vmax.f32 %v945, 0.0
        %v1040 = vmax.f32 %v947, 0.0
        %v1041 = vmax.f32 %v723, 0.0
        %v1042 = vmax.f32 %v725, 0.0
        %v1043 = vmax.f32 %v836, 0.0
        %v1044 = vmax.f32 %v838, 0.0
        %v1045 = vmax.f32 %v949, 0.0
        %v1046 = vmax.f32 %v951, 0.0
        %v1047 = vmax.f32 %v729, 0.0
        %v1048 = vmax.f32 %v731, 0.0
        %v1049 = vmax.f32 %v842, 0.0
        %v1050 = vmax.f32 %v844, 0.0
        %v1051 = vmax.f32 %v955, 0.0
        %v1052 = vmax.f32 %v957, 0.0
        %v1053 = vmax.f32 %v733, 0.0
        %v1054 = vmax.f32 %v735, 0.0
        %v1055 = vmax.f32 %v846, 0.0
        %v1056 = vmax.f32 %v848, 0.0
        %v1057 = vmax.f32 %v959, 0.0
        %v1058 = vmax.f32 %v961, 0.0
        %v1059 = vpack.c.bf16 %v969, %v963
        %v1060 = vpack.c.bf16 %v970, %v964
        %v1061 = vpack.c.bf16 %v971, %v965
        %v1062 = vpack.c.bf16 %v972, %v966
        %v1063 = vpack.c.bf16 %v973, %v967
        %v1064 = vpack.c.bf16 %v974, %v968
        %v1065 = vpack.c.bf16 %v981, %v975
        %v1066 = vpack.c.bf16 %v982, %v976
        %v1067 = vpack.c.bf16 %v983, %v977
        %v1068 = vpack.c.bf16 %v984, %v978
        %v1069 = vpack.c.bf16 %v985, %v979
        %v1070 = vpack.c.bf16 %v986, %v980
        %v1071 = vpack.c.bf16 %v993, %v987
        %v1072 = vpack.c.bf16 %v994, %v988
        %v1073 = vpack.c.bf16 %v995, %v989
        %v1074 = vpack.c.bf16 %v996, %v990
        %v1075 = vpack.c.bf16 %v997, %v991
        %v1076 = vpack.c.bf16 %v998, %v992
        %v1077 = vpack.c.bf16 %v1005, %v999
        %v1078 = vpack.c.bf16 %v1006, %v1000
        %v1079 = vpack.c.bf16 %v1007, %v1001
        %v1080 = vpack.c.bf16 %v1008, %v1002
        %v1081 = vpack.c.bf16 %v1009, %v1003
        %v1082 = vpack.c.bf16 %v1010, %v1004
        %v1083 = vpack.c.bf16 %v1017, %v1011
        %v1084 = vpack.c.bf16 %v1018, %v1012
        %v1085 = vpack.c.bf16 %v1019, %v1013
        %v1086 = vpack.c.bf16 %v1020, %v1014
        %v1087 = vpack.c.bf16 %v1021, %v1015
        %v1088 = vpack.c.bf16 %v1022, %v1016
        %v1089 = vpack.c.bf16 %v1029, %v1023
        %v1090 = vpack.c.bf16 %v1030, %v1024
        %v1091 = vpack.c.bf16 %v1031, %v1025
        %v1092 = vpack.c.bf16 %v1032, %v1026
        %v1093 = vpack.c.bf16 %v1033, %v1027
        %v1094 = vpack.c.bf16 %v1034, %v1028
        %v1095 = vpack.c.bf16 %v1041, %v1035
        %v1096 = vpack.c.bf16 %v1042, %v1036
        %v1097 = vpack.c.bf16 %v1043, %v1037
        %v1098 = vpack.c.bf16 %v1044, %v1038
        %v1099 = vpack.c.bf16 %v1045, %v1039
        %v1100 = vpack.c.bf16 %v1046, %v1040
        %v1101 = vpack.c.bf16 %v1053, %v1047
        %v1102 = vpack.c.bf16 %v1054, %v1048
        %v1103 = vpack.c.bf16 %v1055, %v1049
        %v1104 = vpack.c.bf16 %v1056, %v1050
        %v1105 = vpack.c.bf16 %v1057, %v1051
        %v1106 = vpack.c.bf16 %v1058, %v1052
        %1107 = vst [vmem:[#allocation2] sm:$0xff] %v1059
        %1108 = vst [vmem:[#allocation2 + $0x8] sm:$0xff] %v1060
        %1109 = vst [vmem:[#allocation2 + $0x10] sm:$0xff] %v1061
        %1110 = vst [vmem:[#allocation2 + $0x18] sm:$0xff] %v1062
        %1111 = vst [vmem:[#allocation2 + $0x20] sm:$0xff] %v1063
        %1112 = vst [vmem:[#allocation2 + $0x28] sm:$0xff] %v1064
        %1113 = vst [vmem:[#allocation2 + $0x30] sm:$0xff] %v1065
        %1114 = vst [vmem:[#allocation2 + $0x38] sm:$0xff] %v1066
        %1115 = vst [vmem:[#allocation2 + $0x40] sm:$0xff] %v1067
        %1116 = vst [vmem:[#allocation2 + $0x48] sm:$0xff] %v1068
        %1117 = vst [vmem:[#allocation2 + $0x50] sm:$0xff] %v1069
        %1118 = vst [vmem:[#allocation2 + $0x58] sm:$0xff] %v1070
        %1119 = vst [vmem:[#allocation2 + $0x60] sm:$0xff] %v1071
        %1120 = vst [vmem:[#allocation2 + $0x68] sm:$0xff] %v1072
        %1121 = vst [vmem:[#allocation2 + $0x70] sm:$0xff] %v1073
        %1122 = vst [vmem:[#allocation2 + $0x78] sm:$0xff] %v1074
        %1123 = vst [vmem:[#allocation2 + $0x80] sm:$0xff] %v1075
        %1124 = vst [vmem:[#allocation2 + $0x88] sm:$0xff] %v1076
        %1125 = vst [vmem:[#allocation2 + $0x90] sm:$0xff] %v1077
        %1126 = vst [vmem:[#allocation2 + $0x98] sm:$0xff] %v1078
        %1127 = vst [vmem:[#allocation2 + $0xa0] sm:$0xff] %v1079
        %1128 = vst [vmem:[#allocation2 + $0xa8] sm:$0xff] %v1080
        %1129 = vst [vmem:[#allocation2 + $0xb0] sm:$0xff] %v1081
        %1130 = vst [vmem:[#allocation2 + $0xb8] sm:$0xff] %v1082
        %1131 = vst [vmem:[#allocation2 + $0xc0] sm:$0xff] %v1083
        %1132 = vst [vmem:[#allocation2 + $0xc8] sm:$0xff] %v1084
        %1133 = vst [vmem:[#allocation2 + $0xd0] sm:$0xff] %v1085
        %1134 = vst [vmem:[#allocation2 + $0xd8] sm:$0xff] %v1086
        %1135 = vst [vmem:[#allocation2 + $0xe0] sm:$0xff] %v1087
        %1136 = vst [vmem:[#allocation2 + $0xe8] sm:$0xff] %v1088
        %1137 = vst [vmem:[#allocation2 + $0xf0] sm:$0xff] %v1089
        %1138 = vst [vmem:[#allocation2 + $0xf8] sm:$0xff] %v1090
        %1139 = vst [vmem:[#allocation2 + $0x100] sm:$0xff] %v1091
        %1140 = vst [vmem:[#allocation2 + $0x108] sm:$0xff] %v1092
        %1141 = vst [vmem:[#allocation2 + $0x110] sm:$0xff] %v1093
        %1142 = vst [vmem:[#allocation2 + $0x118] sm:$0xff] %v1094
        %1143 = vst [vmem:[#allocation2 + $0x120] sm:$0xff] %v1095
        %1144 = vst [vmem:[#allocation2 + $0x128] sm:$0xff] %v1096
        %1145 = vst [vmem:[#allocation2 + $0x130] sm:$0xff] %v1097
        %1146 = vst [vmem:[#allocation2 + $0x138] sm:$0xff] %v1098
        %1147 = vst [vmem:[#allocation2 + $0x140] sm:$0xff] %v1099
        %1148 = vst [vmem:[#allocation2 + $0x148] sm:$0xff] %v1100
        %1149 = vst [vmem:[#allocation2 + $0x150] sm:$0xff] %v1101
        %1150 = vst [vmem:[#allocation2 + $0x158] sm:$0xff] %v1102
        %1151 = vst [vmem:[#allocation2 + $0x160] sm:$0xff] %v1103
        %1152 = vst [vmem:[#allocation2 + $0x168] sm:$0xff] %v1104
        %1153 = vst [vmem:[#allocation2 + $0x170] sm:$0xff] %v1105
        %1154 = vst [vmem:[#allocation2 + $0x178] sm:$0xff] %v1106
        %v1155 = vld [vmem:[%s172 + $0x180] sm:$0xff]
        %v1156 = vld [vmem:[%s172 + $0x188] sm:$0xff]
        %v1157 = vld [vmem:[%s172 + $0x190] sm:$0xff]
        %v1158 = vld [vmem:[%s172 + $0x198] sm:$0xff]
        %v1159 = vld [vmem:[%s172 + $0x1a0] sm:$0xff]
        %v1160 = vld [vmem:[%s172 + $0x1a8] sm:$0xff]
        %v1161 = vld [vmem:[%s172 + $0x1b0] sm:$0xff]
        %v1162 = vld [vmem:[%s172 + $0x1b8] sm:$0xff]
        %v1163 = vld [vmem:[%s172 + $0x1c0] sm:$0xff]
        %v1164 = vld [vmem:[%s172 + $0x1c8] sm:$0xff]
        %v1165 = vld [vmem:[%s172 + $0x1d0] sm:$0xff]
        %v1166 = vld [vmem:[%s172 + $0x1d8] sm:$0xff]
        %v1167 = vld [vmem:[%s172 + $0x1e0] sm:$0xff]
        %v1168 = vld [vmem:[%s172 + $0x1e8] sm:$0xff]
        %v1169 = vld [vmem:[%s172 + $0x1f0] sm:$0xff]
        %v1170 = vld [vmem:[%s172 + $0x1f8] sm:$0xff]
        %v1171 = vld [vmem:[%s172 + $0x200] sm:$0xff]
        %v1172 = vld [vmem:[%s172 + $0x208] sm:$0xff]
        %v1173 = vld [vmem:[%s172 + $0x210] sm:$0xff]
        %v1174 = vld [vmem:[%s172 + $0x218] sm:$0xff]
        %v1175 = vld [vmem:[%s172 + $0x220] sm:$0xff]
        %v1176 = vld [vmem:[%s172 + $0x228] sm:$0xff]
        %v1177 = vld [vmem:[%s172 + $0x230] sm:$0xff]
        %v1178 = vld [vmem:[%s172 + $0x238] sm:$0xff]
        %v1179 = vld [vmem:[%s172 + $0x240] sm:$0xff]
        %v1180 = vld [vmem:[%s172 + $0x248] sm:$0xff]
        %v1181 = vld [vmem:[%s172 + $0x250] sm:$0xff]
        %v1182 = vld [vmem:[%s172 + $0x258] sm:$0xff]
        %v1183 = vld [vmem:[%s172 + $0x260] sm:$0xff]
        %v1184 = vld [vmem:[%s172 + $0x268] sm:$0xff]
        %v1185 = vld [vmem:[%s172 + $0x270] sm:$0xff]
        %v1186 = vld [vmem:[%s172 + $0x278] sm:$0xff]
        %v1187 = vld [vmem:[%s172 + $0x280] sm:$0xff]
        %v1188 = vld [vmem:[%s172 + $0x288] sm:$0xff]
        %v1189 = vld [vmem:[%s172 + $0x290] sm:$0xff]
        %v1190 = vld [vmem:[%s172 + $0x298] sm:$0xff]
        %v1191 = vld [vmem:[%s172 + $0x2a0] sm:$0xff]
        %v1192 = vld [vmem:[%s172 + $0x2a8] sm:$0xff]
        %v1193 = vld [vmem:[%s172 + $0x2b0] sm:$0xff]
        %v1194 = vld [vmem:[%s172 + $0x2b8] sm:$0xff]
        %v1195 = vld [vmem:[%s172 + $0x2c0] sm:$0xff]
        %v1196 = vld [vmem:[%s172 + $0x2c8] sm:$0xff]
        %v1197 = vld [vmem:[%s172 + $0x2d0] sm:$0xff]
        %v1198 = vld [vmem:[%s172 + $0x2d8] sm:$0xff]
        %v1199 = vld [vmem:[%s172 + $0x2e0] sm:$0xff]
        %v1200 = vld [vmem:[%s172 + $0x2e8] sm:$0xff]
        %v1201 = vld [vmem:[%s172 + $0x2f0] sm:$0xff]
        %v1202 = vld [vmem:[%s172 + $0x2f8] sm:$0xff]
        %v1203 = vld [vmem:[%s1] sm:$0xf]
        %v1204 = vld [vmem:[%s1 + $0x4] sm:$0xf]
        %v1205 = vld [vmem:[%s1 + $0x8] sm:$0xf]
        %v1206 = vld [vmem:[%s1 + $0xc] sm:$0xf]
        %v1207 = vld [vmem:[%s1 + $0x10] sm:$0xf]
        %v1208 = vld [vmem:[%s1 + $0x14] sm:$0xf]
        %v1209 = vld [vmem:[%s1 + $0x18] sm:$0xf]
        %v1210 = vld [vmem:[%s1 + $0x1c] sm:$0xf]
        %v1211 = vld [vmem:[%s1 + $0x20] sm:$0xf]
        %v1212 = vld [vmem:[%s1 + $0x24] sm:$0xf]
        %v1213 = vld [vmem:[%s1 + $0x28] sm:$0xf]
        %v1214 = vld [vmem:[%s1 + $0x2c] sm:$0xf]
        %v1215 = vld [vmem:[%s1 + $0x30] sm:$0xf]
        %v1216 = vld [vmem:[%s1 + $0x34] sm:$0xf]
        %v1217 = vld [vmem:[%s1 + $0x38] sm:$0xf]
        %v1218 = vld [vmem:[%s1 + $0x3c] sm:$0xf]
        %v1219 = vunpack.c.l.bf16 %v1155
        %v1220 = vunpack.c.h.bf16 %v1155
        %v1221 = vunpack.c.l.bf16 %v1156
        %v1222 = vunpack.c.h.bf16 %v1156
        %v1223 = vunpack.c.l.bf16 %v1157
        %v1224 = vunpack.c.h.bf16 %v1157
        %v1225 = vunpack.c.l.bf16 %v1158
        %v1226 = vunpack.c.h.bf16 %v1158
        %v1227 = vunpack.c.l.bf16 %v1159
        %v1228 = vunpack.c.h.bf16 %v1159
        %v1229 = vunpack.c.l.bf16 %v1160
        %v1230 = vunpack.c.h.bf16 %v1160
        %v1231 = vunpack.c.l.bf16 %v1161
        %v1232 = vunpack.c.h.bf16 %v1161
        %v1233 = vunpack.c.l.bf16 %v1162
        %v1234 = vunpack.c.h.bf16 %v1162
        %v1235 = vunpack.c.l.bf16 %v1163
        %v1236 = vunpack.c.h.bf16 %v1163
        %v1237 = vunpack.c.l.bf16 %v1164
        %v1238 = vunpack.c.h.bf16 %v1164
        %v1239 = vunpack.c.l.bf16 %v1165
        %v1240 = vunpack.c.h.bf16 %v1165
        %v1241 = vunpack.c.l.bf16 %v1166
        %v1242 = vunpack.c.h.bf16 %v1166
        %v1243 = vunpack.c.l.bf16 %v1167
        %v1244 = vunpack.c.h.bf16 %v1167
        %v1245 = vunpack.c.l.bf16 %v1168
        %v1246 = vunpack.c.h.bf16 %v1168
        %v1247 = vunpack.c.l.bf16 %v1169
        %v1248 = vunpack.c.h.bf16 %v1169
        %v1249 = vunpack.c.l.bf16 %v1170
        %v1250 = vunpack.c.h.bf16 %v1170
        %v1251 = vunpack.c.l.bf16 %v1171
        %v1252 = vunpack.c.h.bf16 %v1171
        %v1253 = vunpack.c.l.bf16 %v1172
        %v1254 = vunpack.c.h.bf16 %v1172
        %v1255 = vunpack.c.l.bf16 %v1173
        %v1256 = vunpack.c.h.bf16 %v1173
        %v1257 = vunpack.c.l.bf16 %v1174
        %v1258 = vunpack.c.h.bf16 %v1174
        %v1259 = vunpack.c.l.bf16 %v1175
        %v1260 = vunpack.c.h.bf16 %v1175
        %v1261 = vunpack.c.l.bf16 %v1176
        %v1262 = vunpack.c.h.bf16 %v1176
        %v1263 = vunpack.c.l.bf16 %v1177
        %v1264 = vunpack.c.h.bf16 %v1177
        %v1265 = vunpack.c.l.bf16 %v1178
        %v1266 = vunpack.c.h.bf16 %v1178
        %v1267 = vunpack.c.l.bf16 %v1179
        %v1268 = vunpack.c.h.bf16 %v1179
        %v1269 = vunpack.c.l.bf16 %v1180
        %v1270 = vunpack.c.h.bf16 %v1180
        %v1271 = vunpack.c.l.bf16 %v1181
        %v1272 = vunpack.c.h.bf16 %v1181
        %v1273 = vunpack.c.l.bf16 %v1182
        %v1274 = vunpack.c.h.bf16 %v1182
        %v1275 = vunpack.c.l.bf16 %v1183
        %v1276 = vunpack.c.h.bf16 %v1183
        %v1277 = vunpack.c.l.bf16 %v1184
        %v1278 = vunpack.c.h.bf16 %v1184
        %v1279 = vunpack.c.l.bf16 %v1185
        %v1280 = vunpack.c.h.bf16 %v1185
        %v1281 = vunpack.c.l.bf16 %v1186
        %v1282 = vunpack.c.h.bf16 %v1186
        %v1283 = vunpack.c.l.bf16 %v1187
        %v1284 = vunpack.c.h.bf16 %v1187
        %v1285 = vunpack.c.l.bf16 %v1188
        %v1286 = vunpack.c.h.bf16 %v1188
        %v1287 = vunpack.c.l.bf16 %v1189
        %v1288 = vunpack.c.h.bf16 %v1189
        %v1289 = vunpack.c.l.bf16 %v1190
        %v1290 = vunpack.c.h.bf16 %v1190
        %v1291 = vunpack.c.l.bf16 %v1191
        %v1292 = vunpack.c.h.bf16 %v1191
        %v1293 = vunpack.c.l.bf16 %v1192
        %v1294 = vunpack.c.h.bf16 %v1192
        %v1295 = vunpack.c.l.bf16 %v1193
        %v1296 = vunpack.c.h.bf16 %v1193
        %v1297 = vunpack.c.l.bf16 %v1194
        %v1298 = vunpack.c.h.bf16 %v1194
        %v1299 = vunpack.c.l.bf16 %v1195
        %v1300 = vunpack.c.h.bf16 %v1195
        %v1301 = vunpack.c.l.bf16 %v1196
        %v1302 = vunpack.c.h.bf16 %v1196
        %v1303 = vunpack.c.l.bf16 %v1197
        %v1304 = vunpack.c.h.bf16 %v1197
        %v1305 = vunpack.c.l.bf16 %v1198
        %v1306 = vunpack.c.h.bf16 %v1198
        %v1307 = vunpack.c.l.bf16 %v1199
        %v1308 = vunpack.c.h.bf16 %v1199
        %v1309 = vunpack.c.l.bf16 %v1200
        %v1310 = vunpack.c.h.bf16 %v1200
        %v1311 = vunpack.c.l.bf16 %v1201
        %v1312 = vunpack.c.h.bf16 %v1201
        %v1313 = vunpack.c.l.bf16 %v1202
        %v1314 = vunpack.c.h.bf16 %v1202
        %v1331 = vunpack.c.l.b16 %v1203
        %v1332 = vunpack.c.l.b16 %v1204
        %v1333 = vunpack.c.l.b16 %v1205
        %v1334 = vunpack.c.l.b16 %v1206
        %v1335 = vunpack.c.l.b16 %v1207
        %v1336 = vunpack.c.l.b16 %v1208
        %v1337 = vunpack.c.l.b16 %v1209
        %v1338 = vunpack.c.l.b16 %v1210
        %v1339 = vunpack.c.l.b16 %v1211
        %v1340 = vunpack.c.l.b16 %v1212
        %v1341 = vunpack.c.l.b16 %v1213
        %v1342 = vunpack.c.l.b16 %v1214
        %v1343 = vunpack.c.l.b16 %v1215
        %v1344 = vunpack.c.l.b16 %v1216
        %v1345 = vunpack.c.l.b16 %v1217
        %v1346 = vunpack.c.l.b16 %v1218
        %v1347 = vpack.c.b16 %v1332, %v1331
        %v1348 = vpack.c.b16 %v1334, %v1333
        %v1349 = vpack.c.b16 %v1336, %v1335
        %v1350 = vpack.c.b16 %v1338, %v1337
        %v1351 = vpack.c.b16 %v1340, %v1339
        %v1352 = vpack.c.b16 %v1342, %v1341
        %v1353 = vpack.c.b16 %v1344, %v1343
        %v1354 = vpack.c.b16 %v1346, %v1345
        %v1411 = vunpack.c.l.b16 %v1155
        %v1412 = vunpack.c.h.b16 %v1155
        %v1413 = vunpack.c.l.b16 %v1156
        %v1414 = vunpack.c.h.b16 %v1156
        %v1415 = vunpack.c.l.b16 %v1157
        %v1416 = vunpack.c.h.b16 %v1157
        %v1417 = vunpack.c.l.b16 %v1158
        %v1418 = vunpack.c.h.b16 %v1158
        %v1419 = vunpack.c.l.b16 %v1159
        %v1420 = vunpack.c.h.b16 %v1159
        %v1421 = vunpack.c.l.b16 %v1160
        %v1422 = vunpack.c.h.b16 %v1160
        %v1423 = vunpack.c.l.b16 %v1161
        %v1424 = vunpack.c.h.b16 %v1161
        %v1425 = vunpack.c.l.b16 %v1162
        %v1426 = vunpack.c.h.b16 %v1162
        %v1427 = vunpack.c.l.b16 %v1163
        %v1428 = vunpack.c.h.b16 %v1163
        %v1429 = vunpack.c.l.b16 %v1164
        %v1430 = vunpack.c.h.b16 %v1164
        %v1431 = vunpack.c.l.b16 %v1165
        %v1432 = vunpack.c.h.b16 %v1165
        %v1433 = vunpack.c.l.b16 %v1166
        %v1434 = vunpack.c.h.b16 %v1166
        %v1435 = vunpack.c.l.b16 %v1167
        %v1436 = vunpack.c.h.b16 %v1167
        %v1437 = vunpack.c.l.b16 %v1168
        %v1438 = vunpack.c.h.b16 %v1168
        %v1439 = vunpack.c.l.b16 %v1169
        %v1440 = vunpack.c.h.b16 %v1169
        %v1441 = vunpack.c.l.b16 %v1170
        %v1442 = vunpack.c.h.b16 %v1170
        %v1443 = vunpack.c.l.b16 %v1171
        %v1444 = vunpack.c.h.b16 %v1171
        %v1445 = vunpack.c.l.b16 %v1172
        %v1446 = vunpack.c.h.b16 %v1172
        %v1447 = vunpack.c.l.b16 %v1173
        %v1448 = vunpack.c.h.b16 %v1173
        %v1449 = vunpack.c.l.b16 %v1174
        %v1450 = vunpack.c.h.b16 %v1174
        %v1451 = vunpack.c.l.b16 %v1175
        %v1452 = vunpack.c.h.b16 %v1175
        %v1453 = vunpack.c.l.b16 %v1176
        %v1454 = vunpack.c.h.b16 %v1176
        %v1455 = vunpack.c.l.b16 %v1177
        %v1456 = vunpack.c.h.b16 %v1177
        %v1457 = vunpack.c.l.b16 %v1178
        %v1458 = vunpack.c.h.b16 %v1178
        %v1459 = vunpack.c.l.b16 %v1179
        %v1460 = vunpack.c.h.b16 %v1179
        %v1461 = vunpack.c.l.b16 %v1180
        %v1462 = vunpack.c.h.b16 %v1180
        %v1463 = vunpack.c.l.b16 %v1181
        %v1464 = vunpack.c.h.b16 %v1181
        %v1465 = vunpack.c.l.b16 %v1182
        %v1466 = vunpack.c.h.b16 %v1182
        %v1467 = vunpack.c.l.b16 %v1183
        %v1468 = vunpack.c.h.b16 %v1183
        %v1469 = vunpack.c.l.b16 %v1184
        %v1470 = vunpack.c.h.b16 %v1184
        %v1471 = vunpack.c.l.b16 %v1185
        %v1472 = vunpack.c.h.b16 %v1185
        %v1473 = vunpack.c.l.b16 %v1186
        %v1474 = vunpack.c.h.b16 %v1186
        %v1475 = vunpack.c.l.b16 %v1187
        %v1476 = vunpack.c.h.b16 %v1187
        %v1477 = vunpack.c.l.b16 %v1188
        %v1478 = vunpack.c.h.b16 %v1188
        %v1479 = vunpack.c.l.b16 %v1189
        %v1480 = vunpack.c.h.b16 %v1189
        %v1481 = vunpack.c.l.b16 %v1190
        %v1482 = vunpack.c.h.b16 %v1190
        %v1483 = vunpack.c.l.b16 %v1191
        %v1484 = vunpack.c.h.b16 %v1191
        %v1485 = vunpack.c.l.b16 %v1192
        %v1486 = vunpack.c.h.b16 %v1192
        %v1487 = vunpack.c.l.b16 %v1193
        %v1488 = vunpack.c.h.b16 %v1193
        %v1489 = vunpack.c.l.b16 %v1194
        %v1490 = vunpack.c.h.b16 %v1194
        %v1491 = vunpack.c.l.b16 %v1195
        %v1492 = vunpack.c.h.b16 %v1195
        %v1493 = vunpack.c.l.b16 %v1196
        %v1494 = vunpack.c.h.b16 %v1196
        %v1495 = vunpack.c.l.b16 %v1197
        %v1496 = vunpack.c.h.b16 %v1197
        %v1497 = vunpack.c.l.b16 %v1198
        %v1498 = vunpack.c.h.b16 %v1198
        %v1499 = vunpack.c.l.b16 %v1199
        %v1500 = vunpack.c.h.b16 %v1199
        %v1501 = vunpack.c.l.b16 %v1200
        %v1502 = vunpack.c.h.b16 %v1200
        %v1503 = vunpack.c.l.b16 %v1201
        %v1504 = vunpack.c.h.b16 %v1201
        %v1505 = vunpack.c.l.b16 %v1202
        %v1506 = vunpack.c.h.b16 %v1202
        %v1507 = vpack.c.b16 %v1417, %v1411
        %v1508 = vpack.c.b16 %v1418, %v1412
        %v1509 = vpack.c.b16 %v1419, %v1413
        %v1510 = vpack.c.b16 %v1420, %v1414
        %v1511 = vpack.c.b16 %v1421, %v1415
        %v1512 = vpack.c.b16 %v1422, %v1416
        %v1513 = vpack.c.b16 %v1429, %v1423
        %v1514 = vpack.c.b16 %v1430, %v1424
        %v1515 = vpack.c.b16 %v1431, %v1425
        %v1516 = vpack.c.b16 %v1432, %v1426
        %v1517 = vpack.c.b16 %v1433, %v1427
        %v1518 = vpack.c.b16 %v1434, %v1428
        %v1519 = vpack.c.b16 %v1441, %v1435
        %v1520 = vpack.c.b16 %v1442, %v1436
        %v1521 = vpack.c.b16 %v1443, %v1437
        %v1522 = vpack.c.b16 %v1444, %v1438
        %v1523 = vpack.c.b16 %v1445, %v1439
        %v1524 = vpack.c.b16 %v1446, %v1440
        %v1525 = vpack.c.b16 %v1453, %v1447
        %v1526 = vpack.c.b16 %v1454, %v1448
        %v1527 = vpack.c.b16 %v1455, %v1449
        %v1528 = vpack.c.b16 %v1456, %v1450
        %v1529 = vpack.c.b16 %v1457, %v1451
        %v1530 = vpack.c.b16 %v1458, %v1452
        %v1531 = vpack.c.b16 %v1465, %v1459
        %v1532 = vpack.c.b16 %v1466, %v1460
        %v1533 = vpack.c.b16 %v1467, %v1461
        %v1534 = vpack.c.b16 %v1468, %v1462
        %v1535 = vpack.c.b16 %v1469, %v1463
        %v1536 = vpack.c.b16 %v1470, %v1464
        %v1537 = vpack.c.b16 %v1477, %v1471
        %v1538 = vpack.c.b16 %v1478, %v1472
        %v1539 = vpack.c.b16 %v1479, %v1473
        %v1540 = vpack.c.b16 %v1480, %v1474
        %v1541 = vpack.c.b16 %v1481, %v1475
        %v1542 = vpack.c.b16 %v1482, %v1476
        %v1543 = vpack.c.b16 %v1489, %v1483
        %v1544 = vpack.c.b16 %v1490, %v1484
        %v1545 = vpack.c.b16 %v1491, %v1485
        %v1546 = vpack.c.b16 %v1492, %v1486
        %v1547 = vpack.c.b16 %v1493, %v1487
        %v1548 = vpack.c.b16 %v1494, %v1488
        %v1549 = vpack.c.b16 %v1501, %v1495
        %v1550 = vpack.c.b16 %v1502, %v1496
        %v1551 = vpack.c.b16 %v1503, %v1497
        %v1552 = vpack.c.b16 %v1504, %v1498
        %v1553 = vpack.c.b16 %v1505, %v1499
        %v1554 = vpack.c.b16 %v1506, %v1500
        %1603 = vmatprep.subr.bf16.mxu0 %v1508
        %1604 = vmatpush1.bf16.msra.mxu0 %v1507
        %1605 = vmatprep.subr.bf16.mxu0 %v1514
        %1606 = vmatpush1.bf16.msra.mxu0 %v1513
        %1607 = vmatprep.subr.bf16.mxu0 %v1520
        %1608 = vmatpush1.bf16.msra.mxu0 %v1519
        %1609 = vmatprep.subr.bf16.mxu0 %v1526
        %1610 = vmatpush1.bf16.msra.mxu0 %v1525
        %1611 = vmatprep.subr.bf16.mxu0 %v1532
        %1612 = vmatpush1.bf16.msra.mxu0 %v1531
        %1613 = vmatprep.subr.bf16.mxu0 %v1538
        %1614 = vmatpush1.bf16.msra.mxu0 %v1537
        %1615 = vmatprep.subr.bf16.mxu0 %v1544
        %1616 = vmatpush1.bf16.msra.mxu0 %v1543
        %1617 = vmatprep.subr.bf16.mxu0 %v1550
        %1618 = vmatpush1.bf16.msra.mxu0 %v1549
        %1619 = vmatprep.subr.bf16.mxu0 0
        %1620 = vmatpush1.bf16.msra.mxu0 0
        %1621 = vmatprep.subr.bf16.mxu0 0
        %1622 = vmatpush1.bf16.msra.mxu0 0
        %1623 = vmatprep.subr.bf16.mxu0 0
        %1624 = vmatpush1.bf16.msra.mxu0 0
        %1625 = vmatprep.subr.bf16.mxu0 0
        %1626 = vmatpush1.bf16.msra.mxu0 0
        %1627 = vmatprep.subr.bf16.mxu0 0
        %1628 = vmatpush1.bf16.msra.mxu0 0
        %1629 = vmatprep.subr.bf16.mxu0 0
        %1630 = vmatpush1.bf16.msra.mxu0 0
        %1631 = vmatprep.subr.bf16.mxu0 0
        %1632 = vmatpush1.bf16.msra.mxu0 0
        %1633 = vmatprep.subr.bf16.mxu0 0
        %1634 = vmatpush1.bf16.msra.mxu0 0
        %1635 = vmatprep.mubr.bf16.mxu0 0
        %1636 = vmatmul.mubr.bf16.gmra.mrb[0].mxu0 %v1347
        %v1637 = vpop.f32.mrb[0].mxu0
        %v1638 = vadd.f32 %v1219, %v1637
        %v1639 = vpop.f32.mrb[0].mxu0
        %v1640 = vadd.f32 %v1220, %v1639
        %v1641 = vpop.f32.mrb[0].mxu0
        %v1642 = vadd.f32 %v1225, %v1641
        %v1643 = vpop.f32.mrb[0].mxu0
        %v1644 = vadd.f32 %v1226, %v1643
        %1645 = vmatprep.mubr.bf16.mxu0 0
        %1646 = vmatmul.mubr.bf16.gmra.mrb[0].mxu0 %v1348
        %v1647 = vpop.f32.mrb[0].mxu0
        %v1648 = vadd.f32 %v1231, %v1647
        %v1649 = vpop.f32.mrb[0].mxu0
        %v1650 = vadd.f32 %v1232, %v1649
        %v1651 = vpop.f32.mrb[0].mxu0
        %v1652 = vadd.f32 %v1237, %v1651
        %v1653 = vpop.f32.mrb[0].mxu0
        %v1654 = vadd.f32 %v1238, %v1653
        %1655 = vmatprep.mubr.bf16.mxu0 0
        %1656 = vmatmul.mubr.bf16.gmra.mrb[0].mxu0 %v1349
        %v1657 = vpop.f32.mrb[0].mxu0
        %v1658 = vadd.f32 %v1243, %v1657
        %v1659 = vpop.f32.mrb[0].mxu0
        %v1660 = vadd.f32 %v1244, %v1659
        %v1661 = vpop.f32.mrb[0].mxu0
        %v1662 = vadd.f32 %v1249, %v1661
        %v1663 = vpop.f32.mrb[0].mxu0
        %v1664 = vadd.f32 %v1250, %v1663
        %1665 = vmatprep.mubr.bf16.mxu0 0
        %1666 = vmatmul.mubr.bf16.gmra.mrb[0].mxu0 %v1350
        %v1667 = vpop.f32.mrb[0].mxu0
        %v1668 = vadd.f32 %v1255, %v1667
        %v1669 = vpop.f32.mrb[0].mxu0
        %v1670 = vadd.f32 %v1256, %v1669
        %v1671 = vpop.f32.mrb[0].mxu0
        %v1672 = vadd.f32 %v1261, %v1671
        %v1673 = vpop.f32.mrb[0].mxu0
        %v1674 = vadd.f32 %v1262, %v1673
        %1675 = vmatprep.mubr.bf16.mxu0 0
        %1676 = vmatmul.mubr.bf16.gmra.mrb[0].mxu0 %v1351
        %v1677 = vpop.f32.mrb[0].mxu0
        %v1678 = vadd.f32 %v1267, %v1677
        %v1679 = vpop.f32.mrb[0].mxu0
        %v1680 = vadd.f32 %v1268, %v1679
        %v1681 = vpop.f32.mrb[0].mxu0
        %v1682 = vadd.f32 %v1273, %v1681
        %v1683 = vpop.f32.mrb[0].mxu0
        %v1684 = vadd.f32 %v1274, %v1683
        %1685 = vmatprep.mubr.bf16.mxu0 0
        %1686 = vmatmul.mubr.bf16.gmra.mrb[0].mxu0 %v1352
        %v1687 = vpop.f32.mrb[0].mxu0
        %v1688 = vadd.f32 %v1279, %v1687
        %v1689 = vpop.f32.mrb[0].mxu0
        %v1690 = vadd.f32 %v1280, %v1689
        %v1691 = vpop.f32.mrb[0].mxu0
        %v1692 = vadd.f32 %v1285, %v1691
        %v1693 = vpop.f32.mrb[0].mxu0
        %v1694 = vadd.f32 %v1286, %v1693
        %1695 = vmatprep.mubr.bf16.mxu0 0
        %1696 = vmatmul.mubr.bf16.gmra.mrb[0].mxu0 %v1353
        %v1697 = vpop.f32.mrb[0].mxu0
        %v1698 = vadd.f32 %v1291, %v1697
        %v1699 = vpop.f32.mrb[0].mxu0
        %v1700 = vadd.f32 %v1292, %v1699
        %v1701 = vpop.f32.mrb[0].mxu0
        %v1702 = vadd.f32 %v1297, %v1701
        %v1703 = vpop.f32.mrb[0].mxu0
        %v1704 = vadd.f32 %v1298, %v1703
        %1705 = vmatprep.mubr.bf16.mxu0 0
        %1706 = vmatmul.mubr.bf16.gmra.mrb[0].mxu0 %v1354
        %v1707 = vpop.f32.mrb[0].mxu0
        %v1708 = vadd.f32 %v1303, %v1707
        %v1709 = vpop.f32.mrb[0].mxu0
        %v1710 = vadd.f32 %v1304, %v1709
        %v1711 = vpop.f32.mrb[0].mxu0
        %v1712 = vadd.f32 %v1309, %v1711
        %v1713 = vpop.f32.mrb[0].mxu0
        %v1714 = vadd.f32 %v1310, %v1713
        %1715 = vdwg.mxu0
        %1716 = vmatprep.subr.bf16.mxu0 %v1510
        %1717 = vmatpush1.bf16.msra.mxu0 %v1509
        %1718 = vmatprep.subr.bf16.mxu0 %v1516
        %1719 = vmatpush1.bf16.msra.mxu0 %v1515
        %1720 = vmatprep.subr.bf16.mxu0 %v1522
        %1721 = vmatpush1.bf16.msra.mxu0 %v1521
        %1722 = vmatprep.subr.bf16.mxu0 %v1528
        %1723 = vmatpush1.bf16.msra.mxu0 %v1527
        %1724 = vmatprep.subr.bf16.mxu0 %v1534
        %1725 = vmatpush1.bf16.msra.mxu0 %v1533
        %1726 = vmatprep.subr.bf16.mxu0 %v1540
        %1727 = vmatpush1.bf16.msra.mxu0 %v1539
        %1728 = vmatprep.subr.bf16.mxu0 %v1546
        %1729 = vmatpush1.bf16.msra.mxu0 %v1545
        %1730 = vmatprep.subr.bf16.mxu0 %v1552
        %1731 = vmatpush1.bf16.msra.mxu0 %v1551
        %1732 = vmatprep.subr.bf16.mxu0 0
        %1733 = vmatpush1.bf16.msra.mxu0 0
        %1734 = vmatprep.subr.bf16.mxu0 0
        %1735 = vmatpush1.bf16.msra.mxu0 0
        %1736 = vmatprep.subr.bf16.mxu0 0
        %1737 = vmatpush1.bf16.msra.mxu0 0
        %1738 = vmatprep.subr.bf16.mxu0 0
        %1739 = vmatpush1.bf16.msra.mxu0 0
        %1740 = vmatprep.subr.bf16.mxu0 0
        %1741 = vmatpush1.bf16.msra.mxu0 0
        %1742 = vmatprep.subr.bf16.mxu0 0
        %1743 = vmatpush1.bf16.msra.mxu0 0
        %1744 = vmatprep.subr.bf16.mxu0 0
        %1745 = vmatpush1.bf16.msra.mxu0 0
        %1746 = vmatprep.subr.bf16.mxu0 0
        %1747 = vmatpush1.bf16.msra.mxu0 0
        %1748 = vmatprep.mubr.bf16.mxu0 0
        %1749 = vmatmul.mubr.bf16.gmra.mrb[0].mxu0 %v1347
        %v1750 = vpop.f32.mrb[0].mxu0
        %v1751 = vadd.f32 %v1221, %v1750
        %v1752 = vpop.f32.mrb[0].mxu0
        %v1753 = vadd.f32 %v1222, %v1752
        %v1754 = vpop.f32.mrb[0].mxu0
        %v1755 = vadd.f32 %v1227, %v1754
        %v1756 = vpop.f32.mrb[0].mxu0
        %v1757 = vadd.f32 %v1228, %v1756
        %1758 = vmatprep.mubr.bf16.mxu0 0
        %1759 = vmatmul.mubr.bf16.gmra.mrb[0].mxu0 %v1348
        %v1760 = vpop.f32.mrb[0].mxu0
        %v1761 = vadd.f32 %v1233, %v1760
        %v1762 = vpop.f32.mrb[0].mxu0
        %v1763 = vadd.f32 %v1234, %v1762
        %v1764 = vpop.f32.mrb[0].mxu0
        %v1765 = vadd.f32 %v1239, %v1764
        %v1766 = vpop.f32.mrb[0].mxu0
        %v1767 = vadd.f32 %v1240, %v1766
        %1768 = vmatprep.mubr.bf16.mxu0 0
        %1769 = vmatmul.mubr.bf16.gmra.mrb[0].mxu0 %v1349
        %v1770 = vpop.f32.mrb[0].mxu0
        %v1771 = vadd.f32 %v1245, %v1770
        %v1772 = vpop.f32.mrb[0].mxu0
        %v1773 = vadd.f32 %v1246, %v1772
        %v1774 = vpop.f32.mrb[0].mxu0
        %v1775 = vadd.f32 %v1251, %v1774
        %v1776 = vpop.f32.mrb[0].mxu0
        %v1777 = vadd.f32 %v1252, %v1776
        %1778 = vmatprep.mubr.bf16.mxu0 0
        %1779 = vmatmul.mubr.bf16.gmra.mrb[0].mxu0 %v1350
        %v1780 = vpop.f32.mrb[0].mxu0
        %v1781 = vadd.f32 %v1257, %v1780
        %v1782 = vpop.f32.mrb[0].mxu0
        %v1783 = vadd.f32 %v1258, %v1782
        %v1784 = vpop.f32.mrb[0].mxu0
        %v1785 = vadd.f32 %v1263, %v1784
        %v1786 = vpop.f32.mrb[0].mxu0
        %v1787 = vadd.f32 %v1264, %v1786
        %1788 = vmatprep.mubr.bf16.mxu0 0
        %1789 = vmatmul.mubr.bf16.gmra.mrb[0].mxu0 %v1351
        %v1790 = vpop.f32.mrb[0].mxu0
        %v1791 = vadd.f32 %v1269, %v1790
        %v1792 = vpop.f32.mrb[0].mxu0
        %v1793 = vadd.f32 %v1270, %v1792
        %v1794 = vpop.f32.mrb[0].mxu0
        %v1795 = vadd.f32 %v1275, %v1794
        %v1796 = vpop.f32.mrb[0].mxu0
        %v1797 = vadd.f32 %v1276, %v1796
        %1798 = vmatprep.mubr.bf16.mxu0 0
        %1799 = vmatmul.mubr.bf16.gmra.mrb[0].mxu0 %v1352
        %v1800 = vpop.f32.mrb[0].mxu0
        %v1801 = vadd.f32 %v1281, %v1800
        %v1802 = vpop.f32.mrb[0].mxu0
        %v1803 = vadd.f32 %v1282, %v1802
        %v1804 = vpop.f32.mrb[0].mxu0
        %v1805 = vadd.f32 %v1287, %v1804
        %v1806 = vpop.f32.mrb[0].mxu0
        %v1807 = vadd.f32 %v1288, %v1806
        %1808 = vmatprep.mubr.bf16.mxu0 0
        %1809 = vmatmul.mubr.bf16.gmra.mrb[0].mxu0 %v1353
        %v1810 = vpop.f32.mrb[0].mxu0
        %v1811 = vadd.f32 %v1293, %v1810
        %v1812 = vpop.f32.mrb[0].mxu0
        %v1813 = vadd.f32 %v1294, %v1812
        %v1814 = vpop.f32.mrb[0].mxu0
        %v1815 = vadd.f32 %v1299, %v1814
        %v1816 = vpop.f32.mrb[0].mxu0
        %v1817 = vadd.f32 %v1300, %v1816
        %1818 = vmatprep.mubr.bf16.mxu0 0
        %1819 = vmatmul.mubr.bf16.gmra.mrb[0].mxu0 %v1354
        %v1820 = vpop.f32.mrb[0].mxu0
        %v1821 = vadd.f32 %v1305, %v1820
        %v1822 = vpop.f32.mrb[0].mxu0
        %v1823 = vadd.f32 %v1306, %v1822
        %v1824 = vpop.f32.mrb[0].mxu0
        %v1825 = vadd.f32 %v1311, %v1824
        %v1826 = vpop.f32.mrb[0].mxu0
        %v1827 = vadd.f32 %v1312, %v1826
        %1828 = vdwg.mxu0
        %1829 = vmatprep.subr.bf16.mxu0 %v1512
        %1830 = vmatpush1.bf16.msra.mxu0 %v1511
        %1831 = vmatprep.subr.bf16.mxu0 %v1518
        %1832 = vmatpush1.bf16.msra.mxu0 %v1517
        %1833 = vmatprep.subr.bf16.mxu0 %v1524
        %1834 = vmatpush1.bf16.msra.mxu0 %v1523
        %1835 = vmatprep.subr.bf16.mxu0 %v1530
        %1836 = vmatpush1.bf16.msra.mxu0 %v1529
        %1837 = vmatprep.subr.bf16.mxu0 %v1536
        %1838 = vmatpush1.bf16.msra.mxu0 %v1535
        %1839 = vmatprep.subr.bf16.mxu0 %v1542
        %1840 = vmatpush1.bf16.msra.mxu0 %v1541
        %1841 = vmatprep.subr.bf16.mxu0 %v1548
        %1842 = vmatpush1.bf16.msra.mxu0 %v1547
        %1843 = vmatprep.subr.bf16.mxu0 %v1554
        %1844 = vmatpush1.bf16.msra.mxu0 %v1553
        %1845 = vmatprep.subr.bf16.mxu0 0
        %1846 = vmatpush1.bf16.msra.mxu0 0
        %1847 = vmatprep.subr.bf16.mxu0 0
        %1848 = vmatpush1.bf16.msra.mxu0 0
        %1849 = vmatprep.subr.bf16.mxu0 0
        %1850 = vmatpush1.bf16.msra.mxu0 0
        %1851 = vmatprep.subr.bf16.mxu0 0
        %1852 = vmatpush1.bf16.msra.mxu0 0
        %1853 = vmatprep.subr.bf16.mxu0 0
        %1854 = vmatpush1.bf16.msra.mxu0 0
        %1855 = vmatprep.subr.bf16.mxu0 0
        %1856 = vmatpush1.bf16.msra.mxu0 0
        %1857 = vmatprep.subr.bf16.mxu0 0
        %1858 = vmatpush1.bf16.msra.mxu0 0
        %1859 = vmatprep.subr.bf16.mxu0 0
        %1860 = vmatpush1.bf16.msra.mxu0 0
        %1861 = vmatprep.mubr.bf16.mxu0 0
        %1862 = vmatmul.mubr.bf16.gmra.mrb[0].mxu0 %v1347
        %v1863 = vpop.f32.mrb[0].mxu0
        %v1864 = vadd.f32 %v1223, %v1863
        %v1865 = vpop.f32.mrb[0].mxu0
        %v1866 = vadd.f32 %v1224, %v1865
        %v1867 = vpop.f32.mrb[0].mxu0
        %v1868 = vadd.f32 %v1229, %v1867
        %v1869 = vpop.f32.mrb[0].mxu0
        %v1870 = vadd.f32 %v1230, %v1869
        %1871 = vmatprep.mubr.bf16.mxu0 0
        %1872 = vmatmul.mubr.bf16.gmra.mrb[0].mxu0 %v1348
        %v1873 = vpop.f32.mrb[0].mxu0
        %v1874 = vadd.f32 %v1235, %v1873
        %v1875 = vpop.f32.mrb[0].mxu0
        %v1876 = vadd.f32 %v1236, %v1875
        %v1877 = vpop.f32.mrb[0].mxu0
        %v1878 = vadd.f32 %v1241, %v1877
        %v1879 = vpop.f32.mrb[0].mxu0
        %v1880 = vadd.f32 %v1242, %v1879
        %1881 = vmatprep.mubr.bf16.mxu0 0
        %1882 = vmatmul.mubr.bf16.gmra.mrb[0].mxu0 %v1349
        %v1883 = vpop.f32.mrb[0].mxu0
        %v1884 = vadd.f32 %v1247, %v1883
        %v1885 = vpop.f32.mrb[0].mxu0
        %v1886 = vadd.f32 %v1248, %v1885
        %v1887 = vpop.f32.mrb[0].mxu0
        %v1888 = vadd.f32 %v1253, %v1887
        %v1889 = vpop.f32.mrb[0].mxu0
        %v1890 = vadd.f32 %v1254, %v1889
        %1891 = vmatprep.mubr.bf16.mxu0 0
        %1892 = vmatmul.mubr.bf16.gmra.mrb[0].mxu0 %v1350
        %v1893 = vpop.f32.mrb[0].mxu0
        %v1894 = vadd.f32 %v1259, %v1893
        %v1895 = vpop.f32.mrb[0].mxu0
        %v1896 = vadd.f32 %v1260, %v1895
        %v1897 = vpop.f32.mrb[0].mxu0
        %v1898 = vadd.f32 %v1265, %v1897
        %v1899 = vpop.f32.mrb[0].mxu0
        %v1900 = vadd.f32 %v1266, %v1899
        %1901 = vmatprep.mubr.bf16.mxu0 0
        %1902 = vmatmul.mubr.bf16.gmra.mrb[0].mxu0 %v1351
        %v1903 = vpop.f32.mrb[0].mxu0
        %v1904 = vadd.f32 %v1271, %v1903
        %v1905 = vpop.f32.mrb[0].mxu0
        %v1906 = vadd.f32 %v1272, %v1905
        %v1907 = vpop.f32.mrb[0].mxu0
        %v1908 = vadd.f32 %v1277, %v1907
        %v1909 = vpop.f32.mrb[0].mxu0
        %v1910 = vadd.f32 %v1278, %v1909
        %1911 = vmatprep.mubr.bf16.mxu0 0
        %1912 = vmatmul.mubr.bf16.gmra.mrb[0].mxu0 %v1352
        %v1913 = vpop.f32.mrb[0].mxu0
        %v1914 = vadd.f32 %v1283, %v1913
        %v1915 = vpop.f32.mrb[0].mxu0
        %v1916 = vadd.f32 %v1284, %v1915
        %v1917 = vpop.f32.mrb[0].mxu0
        %v1918 = vadd.f32 %v1289, %v1917
        %v1919 = vpop.f32.mrb[0].mxu0
        %v1920 = vadd.f32 %v1290, %v1919
        %1921 = vmatprep.mubr.bf16.mxu0 0
        %1922 = vmatmul.mubr.bf16.gmra.mrb[0].mxu0 %v1353
        %v1923 = vpop.f32.mrb[0].mxu0
        %v1924 = vadd.f32 %v1295, %v1923
        %v1925 = vpop.f32.mrb[0].mxu0
        %v1926 = vadd.f32 %v1296, %v1925
        %v1927 = vpop.f32.mrb[0].mxu0
        %v1928 = vadd.f32 %v1301, %v1927
        %v1929 = vpop.f32.mrb[0].mxu0
        %v1930 = vadd.f32 %v1302, %v1929
        %1931 = vmatprep.mubr.bf16.mxu0 0
        %1932 = vmatmul.mubr.bf16.gmra.mrb[0].mxu0 %v1354
        %v1933 = vpop.f32.mrb[0].mxu0
        %v1934 = vadd.f32 %v1307, %v1933
        %v1935 = vpop.f32.mrb[0].mxu0
        %v1936 = vadd.f32 %v1308, %v1935
        %v1937 = vpop.f32.mrb[0].mxu0
        %v1938 = vadd.f32 %v1313, %v1937
        %v1939 = vpop.f32.mrb[0].mxu0
        %v1940 = vadd.f32 %v1314, %v1939
        %1941 = vdwg.mxu0
        %v1942 = vmax.f32 %v1638, 0.0
        %v1943 = vmax.f32 %v1640, 0.0
        %v1944 = vmax.f32 %v1751, 0.0
        %v1945 = vmax.f32 %v1753, 0.0
        %v1946 = vmax.f32 %v1864, 0.0
        %v1947 = vmax.f32 %v1866, 0.0
        %v1948 = vmax.f32 %v1642, 0.0
        %v1949 = vmax.f32 %v1644, 0.0
        %v1950 = vmax.f32 %v1755, 0.0
        %v1951 = vmax.f32 %v1757, 0.0
        %v1952 = vmax.f32 %v1868, 0.0
        %v1953 = vmax.f32 %v1870, 0.0
        %v1954 = vmax.f32 %v1648, 0.0
        %v1955 = vmax.f32 %v1650, 0.0
        %v1956 = vmax.f32 %v1761, 0.0
        %v1957 = vmax.f32 %v1763, 0.0
        %v1958 = vmax.f32 %v1874, 0.0
        %v1959 = vmax.f32 %v1876, 0.0
        %v1960 = vmax.f32 %v1652, 0.0
        %v1961 = vmax.f32 %v1654, 0.0
        %v1962 = vmax.f32 %v1765, 0.0
        %v1963 = vmax.f32 %v1767, 0.0
        %v1964 = vmax.f32 %v1878, 0.0
        %v1965 = vmax.f32 %v1880, 0.0
        %v1966 = vmax.f32 %v1658, 0.0
        %v1967 = vmax.f32 %v1660, 0.0
        %v1968 = vmax.f32 %v1771, 0.0
        %v1969 = vmax.f32 %v1773, 0.0
        %v1970 = vmax.f32 %v1884, 0.0
        %v1971 = vmax.f32 %v1886, 0.0
        %v1972 = vmax.f32 %v1662, 0.0
        %v1973 = vmax.f32 %v1664, 0.0
        %v1974 = vmax.f32 %v1775, 0.0
        %v1975 = vmax.f32 %v1777, 0.0
        %v1976 = vmax.f32 %v1888, 0.0
        %v1977 = vmax.f32 %v1890, 0.0
        %v1978 = vmax.f32 %v1668, 0.0
        %v1979 = vmax.f32 %v1670, 0.0
        %v1980 = vmax.f32 %v1781, 0.0
        %v1981 = vmax.f32 %v1783, 0.0
        %v1982 = vmax.f32 %v1894, 0.0
        %v1983 = vmax.f32 %v1896, 0.0
        %v1984 = vmax.f32 %v1672, 0.0
        %v1985 = vmax.f32 %v1674, 0.0
        %v1986 = vmax.f32 %v1785, 0.0
        %v1987 = vmax.f32 %v1787, 0.0
        %v1988 = vmax.f32 %v1898, 0.0
        %v1989 = vmax.f32 %v1900, 0.0
        %v1990 = vmax.f32 %v1678, 0.0
        %v1991 = vmax.f32 %v1680, 0.0
        %v1992 = vmax.f32 %v1791, 0.0
        %v1993 = vmax.f32 %v1793, 0.0
        %v1994 = vmax.f32 %v1904, 0.0
        %v1995 = vmax.f32 %v1906, 0.0
        %v1996 = vmax.f32 %v1682, 0.0
        %v1997 = vmax.f32 %v1684, 0.0
        %v1998 = vmax.f32 %v1795, 0.0
        %v1999 = vmax.f32 %v1797, 0.0
        %v2000 = vmax.f32 %v1908, 0.0
        %v2001 = vmax.f32 %v1910, 0.0
        %v2002 = vmax.f32 %v1688, 0.0
        %v2003 = vmax.f32 %v1690, 0.0
        %v2004 = vmax.f32 %v1801, 0.0
        %v2005 = vmax.f32 %v1803, 0.0
        %v2006 = vmax.f32 %v1914, 0.0
        %v2007 = vmax.f32 %v1916, 0.0
        %v2008 = vmax.f32 %v1692, 0.0
        %v2009 = vmax.f32 %v1694, 0.0
        %v2010 = vmax.f32 %v1805, 0.0
        %v2011 = vmax.f32 %v1807, 0.0
        %v2012 = vmax.f32 %v1918, 0.0
        %v2013 = vmax.f32 %v1920, 0.0
        %v2014 = vmax.f32 %v1698, 0.0
        %v2015 = vmax.f32 %v1700, 0.0
        %v2016 = vmax.f32 %v1811, 0.0
        %v2017 = vmax.f32 %v1813, 0.0
        %v2018 = vmax.f32 %v1924, 0.0
        %v2019 = vmax.f32 %v1926, 0.0
        %v2020 = vmax.f32 %v1702, 0.0
        %v2021 = vmax.f32 %v1704, 0.0
        %v2022 = vmax.f32 %v1815, 0.0
        %v2023 = vmax.f32 %v1817, 0.0
        %v2024 = vmax.f32 %v1928, 0.0
        %v2025 = vmax.f32 %v1930, 0.0
        %v2026 = vmax.f32 %v1708, 0.0
        %v2027 = vmax.f32 %v1710, 0.0
        %v2028 = vmax.f32 %v1821, 0.0
        %v2029 = vmax.f32 %v1823, 0.0
        %v2030 = vmax.f32 %v1934, 0.0
        %v2031 = vmax.f32 %v1936, 0.0
        %v2032 = vmax.f32 %v1712, 0.0
        %v2033 = vmax.f32 %v1714, 0.0
        %v2034 = vmax.f32 %v1825, 0.0
        %v2035 = vmax.f32 %v1827, 0.0
        %v2036 = vmax.f32 %v1938, 0.0
        %v2037 = vmax.f32 %v1940, 0.0
        %v2038 = vpack.c.bf16 %v1948, %v1942
        %v2039 = vpack.c.bf16 %v1949, %v1943
        %v2040 = vpack.c.bf16 %v1950, %v1944
        %v2041 = vpack.c.bf16 %v1951, %v1945
        %v2042 = vpack.c.bf16 %v1952, %v1946
        %v2043 = vpack.c.bf16 %v1953, %v1947
        %v2044 = vpack.c.bf16 %v1960, %v1954
        %v2045 = vpack.c.bf16 %v1961, %v1955
        %v2046 = vpack.c.bf16 %v1962, %v1956
        %v2047 = vpack.c.bf16 %v1963, %v1957
        %v2048 = vpack.c.bf16 %v1964, %v1958
        %v2049 = vpack.c.bf16 %v1965, %v1959
        %v2050 = vpack.c.bf16 %v1972, %v1966
        %v2051 = vpack.c.bf16 %v1973, %v1967
        %v2052 = vpack.c.bf16 %v1974, %v1968
        %v2053 = vpack.c.bf16 %v1975, %v1969
        %v2054 = vpack.c.bf16 %v1976, %v1970
        %v2055 = vpack.c.bf16 %v1977, %v1971
        %v2056 = vpack.c.bf16 %v1984, %v1978
        %v2057 = vpack.c.bf16 %v1985, %v1979
        %v2058 = vpack.c.bf16 %v1986, %v1980
        %v2059 = vpack.c.bf16 %v1987, %v1981
        %v2060 = vpack.c.bf16 %v1988, %v1982
        %v2061 = vpack.c.bf16 %v1989, %v1983
        %v2062 = vpack.c.bf16 %v1996, %v1990
        %v2063 = vpack.c.bf16 %v1997, %v1991
        %v2064 = vpack.c.bf16 %v1998, %v1992
        %v2065 = vpack.c.bf16 %v1999, %v1993
        %v2066 = vpack.c.bf16 %v2000, %v1994
        %v2067 = vpack.c.bf16 %v2001, %v1995
        %v2068 = vpack.c.bf16 %v2008, %v2002
        %v2069 = vpack.c.bf16 %v2009, %v2003
        %v2070 = vpack.c.bf16 %v2010, %v2004
        %v2071 = vpack.c.bf16 %v2011, %v2005
        %v2072 = vpack.c.bf16 %v2012, %v2006
        %v2073 = vpack.c.bf16 %v2013, %v2007
        %v2074 = vpack.c.bf16 %v2020, %v2014
        %v2075 = vpack.c.bf16 %v2021, %v2015
        %v2076 = vpack.c.bf16 %v2022, %v2016
        %v2077 = vpack.c.bf16 %v2023, %v2017
        %v2078 = vpack.c.bf16 %v2024, %v2018
        %v2079 = vpack.c.bf16 %v2025, %v2019
        %v2080 = vpack.c.bf16 %v2032, %v2026
        %v2081 = vpack.c.bf16 %v2033, %v2027
        %v2082 = vpack.c.bf16 %v2034, %v2028
        %v2083 = vpack.c.bf16 %v2035, %v2029
        %v2084 = vpack.c.bf16 %v2036, %v2030
        %v2085 = vpack.c.bf16 %v2037, %v2031
        %2086 = vst [vmem:[#allocation2 + $0x180] sm:$0xff] %v2038
        %2087 = vst [vmem:[#allocation2 + $0x188] sm:$0xff] %v2039
        %2088 = vst [vmem:[#allocation2 + $0x190] sm:$0xff] %v2040
        %2089 = vst [vmem:[#allocation2 + $0x198] sm:$0xff] %v2041
        %2090 = vst [vmem:[#allocation2 + $0x1a0] sm:$0xff] %v2042
        %2091 = vst [vmem:[#allocation2 + $0x1a8] sm:$0xff] %v2043
        %2092 = vst [vmem:[#allocation2 + $0x1b0] sm:$0xff] %v2044
        %2093 = vst [vmem:[#allocation2 + $0x1b8] sm:$0xff] %v2045
        %2094 = vst [vmem:[#allocation2 + $0x1c0] sm:$0xff] %v2046
        %2095 = vst [vmem:[#allocation2 + $0x1c8] sm:$0xff] %v2047
        %2096 = vst [vmem:[#allocation2 + $0x1d0] sm:$0xff] %v2048
        %2097 = vst [vmem:[#allocation2 + $0x1d8] sm:$0xff] %v2049
        %2098 = vst [vmem:[#allocation2 + $0x1e0] sm:$0xff] %v2050
        %2099 = vst [vmem:[#allocation2 + $0x1e8] sm:$0xff] %v2051
        %2100 = vst [vmem:[#allocation2 + $0x1f0] sm:$0xff] %v2052
        %2101 = vst [vmem:[#allocation2 + $0x1f8] sm:$0xff] %v2053
        %2102 = vst [vmem:[#allocation2 + $0x200] sm:$0xff] %v2054
        %2103 = vst [vmem:[#allocation2 + $0x208] sm:$0xff] %v2055
        %2104 = vst [vmem:[#allocation2 + $0x210] sm:$0xff] %v2056
        %2105 = vst [vmem:[#allocation2 + $0x218] sm:$0xff] %v2057
        %2106 = vst [vmem:[#allocation2 + $0x220] sm:$0xff] %v2058
        %2107 = vst [vmem:[#allocation2 + $0x228] sm:$0xff] %v2059
        %2108 = vst [vmem:[#allocation2 + $0x230] sm:$0xff] %v2060
        %2109 = vst [vmem:[#allocation2 + $0x238] sm:$0xff] %v2061
        %2110 = vst [vmem:[#allocation2 + $0x240] sm:$0xff] %v2062
        %2111 = vst [vmem:[#allocation2 + $0x248] sm:$0xff] %v2063
        %2112 = vst [vmem:[#allocation2 + $0x250] sm:$0xff] %v2064
        %2113 = vst [vmem:[#allocation2 + $0x258] sm:$0xff] %v2065
        %2114 = vst [vmem:[#allocation2 + $0x260] sm:$0xff] %v2066
        %2115 = vst [vmem:[#allocation2 + $0x268] sm:$0xff] %v2067
        %2116 = vst [vmem:[#allocation2 + $0x270] sm:$0xff] %v2068
        %2117 = vst [vmem:[#allocation2 + $0x278] sm:$0xff] %v2069
        %2118 = vst [vmem:[#allocation2 + $0x280] sm:$0xff] %v2070
        %2119 = vst [vmem:[#allocation2 + $0x288] sm:$0xff] %v2071
        %2120 = vst [vmem:[#allocation2 + $0x290] sm:$0xff] %v2072
        %2121 = vst [vmem:[#allocation2 + $0x298] sm:$0xff] %v2073
        %2122 = vst [vmem:[#allocation2 + $0x2a0] sm:$0xff] %v2074
        %2123 = vst [vmem:[#allocation2 + $0x2a8] sm:$0xff] %v2075
        %2124 = vst [vmem:[#allocation2 + $0x2b0] sm:$0xff] %v2076
        %2125 = vst [vmem:[#allocation2 + $0x2b8] sm:$0xff] %v2077
        %2126 = vst [vmem:[#allocation2 + $0x2c0] sm:$0xff] %v2078
        %2127 = vst [vmem:[#allocation2 + $0x2c8] sm:$0xff] %v2079
        %2128 = vst [vmem:[#allocation2 + $0x2d0] sm:$0xff] %v2080
        %2129 = vst [vmem:[#allocation2 + $0x2d8] sm:$0xff] %v2081
        %2130 = vst [vmem:[#allocation2 + $0x2e0] sm:$0xff] %v2082
        %2131 = vst [vmem:[#allocation2 + $0x2e8] sm:$0xff] %v2083
        %2132 = vst [vmem:[#allocation2 + $0x2f0] sm:$0xff] %v2084
        %2133 = vst [vmem:[#allocation2 + $0x2f8] sm:$0xff] %v2085
        %v2134 = vld [vmem:[#allocation2] sm:$0xff]
        %v2135 = vld [vmem:[#allocation2 + $0x8] sm:$0xff]
        %v2136 = vld [vmem:[#allocation2 + $0x10] sm:$0xff]
        %v2137 = vld [vmem:[#allocation2 + $0x18] sm:$0xff]
        %v2138 = vld [vmem:[#allocation2 + $0x20] sm:$0xff]
        %v2139 = vld [vmem:[#allocation2 + $0x28] sm:$0xff]
        %v2140 = vld [vmem:[#allocation2 + $0x30] sm:$0xff]
        %v2141 = vld [vmem:[#allocation2 + $0x38] sm:$0xff]
        %v2142 = vld [vmem:[#allocation2 + $0x40] sm:$0xff]
        %v2143 = vld [vmem:[#allocation2 + $0x48] sm:$0xff]
        %v2144 = vld [vmem:[#allocation2 + $0x50] sm:$0xff]
        %v2145 = vld [vmem:[#allocation2 + $0x58] sm:$0xff]
        %v2146 = vld [vmem:[#allocation2 + $0x60] sm:$0xff]
        %v2147 = vld [vmem:[#allocation2 + $0x68] sm:$0xff]
        %v2148 = vld [vmem:[#allocation2 + $0x70] sm:$0xff]
        %v2149 = vld [vmem:[#allocation2 + $0x78] sm:$0xff]
        %v2150 = vld [vmem:[#allocation2 + $0x80] sm:$0xff]
        %v2151 = vld [vmem:[#allocation2 + $0x88] sm:$0xff]
        %v2152 = vld [vmem:[#allocation2 + $0x90] sm:$0xff]
        %v2153 = vld [vmem:[#allocation2 + $0x98] sm:$0xff]
        %v2154 = vld [vmem:[#allocation2 + $0xa0] sm:$0xff]
        %v2155 = vld [vmem:[#allocation2 + $0xa8] sm:$0xff]
        %v2156 = vld [vmem:[#allocation2 + $0xb0] sm:$0xff]
        %v2157 = vld [vmem:[#allocation2 + $0xb8] sm:$0xff]
        %v2158 = vld [vmem:[#allocation2 + $0xc0] sm:$0xff]
        %v2159 = vld [vmem:[#allocation2 + $0xc8] sm:$0xff]
        %v2160 = vld [vmem:[#allocation2 + $0xd0] sm:$0xff]
        %v2161 = vld [vmem:[#allocation2 + $0xd8] sm:$0xff]
        %v2162 = vld [vmem:[#allocation2 + $0xe0] sm:$0xff]
        %v2163 = vld [vmem:[#allocation2 + $0xe8] sm:$0xff]
        %v2164 = vld [vmem:[#allocation2 + $0xf0] sm:$0xff]
        %v2165 = vld [vmem:[#allocation2 + $0xf8] sm:$0xff]
        %v2166 = vld [vmem:[#allocation2 + $0x100] sm:$0xff]
        %v2167 = vld [vmem:[#allocation2 + $0x108] sm:$0xff]
        %v2168 = vld [vmem:[#allocation2 + $0x110] sm:$0xff]
        %v2169 = vld [vmem:[#allocation2 + $0x118] sm:$0xff]
        %v2170 = vld [vmem:[#allocation2 + $0x120] sm:$0xff]
        %v2171 = vld [vmem:[#allocation2 + $0x128] sm:$0xff]
        %v2172 = vld [vmem:[#allocation2 + $0x130] sm:$0xff]
        %v2173 = vld [vmem:[#allocation2 + $0x138] sm:$0xff]
        %v2174 = vld [vmem:[#allocation2 + $0x140] sm:$0xff]
        %v2175 = vld [vmem:[#allocation2 + $0x148] sm:$0xff]
        %v2176 = vld [vmem:[#allocation2 + $0x150] sm:$0xff]
        %v2177 = vld [vmem:[#allocation2 + $0x158] sm:$0xff]
        %v2178 = vld [vmem:[#allocation2 + $0x160] sm:$0xff]
        %v2179 = vld [vmem:[#allocation2 + $0x168] sm:$0xff]
        %v2180 = vld [vmem:[#allocation2 + $0x170] sm:$0xff]
        %v2181 = vld [vmem:[#allocation2 + $0x178] sm:$0xff]
        %v2182 = vld [vmem:[#allocation2 + $0x180] sm:$0xff]
        %v2183 = vld [vmem:[#allocation2 + $0x188] sm:$0xff]
        %v2184 = vld [vmem:[#allocation2 + $0x190] sm:$0xff]
        %v2185 = vld [vmem:[#allocation2 + $0x198] sm:$0xff]
        %v2186 = vld [vmem:[#allocation2 + $0x1a0] sm:$0xff]
        %v2187 = vld [vmem:[#allocation2 + $0x1a8] sm:$0xff]
        %v2188 = vld [vmem:[#allocation2 + $0x1b0] sm:$0xff]
        %v2189 = vld [vmem:[#allocation2 + $0x1b8] sm:$0xff]
        %v2190 = vld [vmem:[#allocation2 + $0x1c0] sm:$0xff]
        %v2191 = vld [vmem:[#allocation2 + $0x1c8] sm:$0xff]
        %v2192 = vld [vmem:[#allocation2 + $0x1d0] sm:$0xff]
        %v2193 = vld [vmem:[#allocation2 + $0x1d8] sm:$0xff]
        %v2194 = vld [vmem:[#allocation2 + $0x1e0] sm:$0xff]
        %v2195 = vld [vmem:[#allocation2 + $0x1e8] sm:$0xff]
        %v2196 = vld [vmem:[#allocation2 + $0x1f0] sm:$0xff]
        %v2197 = vld [vmem:[#allocation2 + $0x1f8] sm:$0xff]
        %v2198 = vld [vmem:[#allocation2 + $0x200] sm:$0xff]
        %v2199 = vld [vmem:[#allocation2 + $0x208] sm:$0xff]
        %v2200 = vld [vmem:[#allocation2 + $0x210] sm:$0xff]
        %v2201 = vld [vmem:[#allocation2 + $0x218] sm:$0xff]
        %v2202 = vld [vmem:[#allocation2 + $0x220] sm:$0xff]
        %v2203 = vld [vmem:[#allocation2 + $0x228] sm:$0xff]
        %v2204 = vld [vmem:[#allocation2 + $0x230] sm:$0xff]
        %v2205 = vld [vmem:[#allocation2 + $0x238] sm:$0xff]
        %v2206 = vld [vmem:[#allocation2 + $0x240] sm:$0xff]
        %v2207 = vld [vmem:[#allocation2 + $0x248] sm:$0xff]
        %v2208 = vld [vmem:[#allocation2 + $0x250] sm:$0xff]
        %v2209 = vld [vmem:[#allocation2 + $0x258] sm:$0xff]
        %v2210 = vld [vmem:[#allocation2 + $0x260] sm:$0xff]
        %v2211 = vld [vmem:[#allocation2 + $0x268] sm:$0xff]
        %v2212 = vld [vmem:[#allocation2 + $0x270] sm:$0xff]
        %v2213 = vld [vmem:[#allocation2 + $0x278] sm:$0xff]
        %v2214 = vld [vmem:[#allocation2 + $0x280] sm:$0xff]
        %v2215 = vld [vmem:[#allocation2 + $0x288] sm:$0xff]
        %v2216 = vld [vmem:[#allocation2 + $0x290] sm:$0xff]
        %v2217 = vld [vmem:[#allocation2 + $0x298] sm:$0xff]
        %v2218 = vld [vmem:[#allocation2 + $0x2a0] sm:$0xff]
        %v2219 = vld [vmem:[#allocation2 + $0x2a8] sm:$0xff]
        %v2220 = vld [vmem:[#allocation2 + $0x2b0] sm:$0xff]
        %v2221 = vld [vmem:[#allocation2 + $0x2b8] sm:$0xff]
        %v2222 = vld [vmem:[#allocation2 + $0x2c0] sm:$0xff]
        %v2223 = vld [vmem:[#allocation2 + $0x2c8] sm:$0xff]
        %v2224 = vld [vmem:[#allocation2 + $0x2d0] sm:$0xff]
        %v2225 = vld [vmem:[#allocation2 + $0x2d8] sm:$0xff]
        %v2226 = vld [vmem:[#allocation2 + $0x2e0] sm:$0xff]
        %v2227 = vld [vmem:[#allocation2 + $0x2e8] sm:$0xff]
        %v2228 = vld [vmem:[#allocation2 + $0x2f0] sm:$0xff]
        %v2229 = vld [vmem:[#allocation2 + $0x2f8] sm:$0xff]
        %v2230 = vld [vmem:[%s2] sm:$0xff]
        %v2231 = vld [vmem:[%s2 + $0x8] sm:$0xff]
        %v2232 = vld [vmem:[%s2 + $0x10] sm:$0xff]
        %v2233 = vld [vmem:[%s2 + $0x18] sm:$0xff]
        %v2234 = vld [vmem:[%s2 + $0x20] sm:$0xff]
        %v2235 = vld [vmem:[%s2 + $0x28] sm:$0xff]
        %v2236 = vld [vmem:[%s2 + $0x30] sm:$0xff]
        %v2237 = vld [vmem:[%s2 + $0x38] sm:$0xff]
        %v2238 = vld [vmem:[%s2 + $0x40] sm:$0xff]
        %v2239 = vld [vmem:[%s2 + $0x48] sm:$0xff]
        %v2240 = vld [vmem:[%s2 + $0x50] sm:$0xff]
        %v2241 = vld [vmem:[%s2 + $0x58] sm:$0xff]
        %v2242 = vld [vmem:[%s2 + $0x60] sm:$0xff]
        %v2243 = vld [vmem:[%s2 + $0x68] sm:$0xff]
        %v2244 = vld [vmem:[%s2 + $0x70] sm:$0xff]
        %v2245 = vld [vmem:[%s2 + $0x78] sm:$0xff]
        %v2246 = vld [vmem:[%s2 + $0x80] sm:$0xff]
        %v2247 = vld [vmem:[%s2 + $0x88] sm:$0xff]
        %v2248 = vld [vmem:[%s2 + $0x90] sm:$0xff]
        %v2249 = vld [vmem:[%s2 + $0x98] sm:$0xff]
        %v2250 = vld [vmem:[%s2 + $0xa0] sm:$0xff]
        %v2251 = vld [vmem:[%s2 + $0xa8] sm:$0xff]
        %v2252 = vld [vmem:[%s2 + $0xb0] sm:$0xff]
        %v2253 = vld [vmem:[%s2 + $0xb8] sm:$0xff]
        %v2254 = vld [vmem:[%s2 + $0xc0] sm:$0xff]
        %v2255 = vld [vmem:[%s2 + $0xc8] sm:$0xff]
        %v2256 = vld [vmem:[%s2 + $0xd0] sm:$0xff]
        %v2257 = vld [vmem:[%s2 + $0xd8] sm:$0xff]
        %v2258 = vld [vmem:[%s2 + $0xe0] sm:$0xff]
        %v2259 = vld [vmem:[%s2 + $0xe8] sm:$0xff]
        %v2260 = vld [vmem:[%s2 + $0xf0] sm:$0xff]
        %v2261 = vld [vmem:[%s2 + $0xf8] sm:$0xff]
        %v2262 = vld [vmem:[%s2 + $0x100] sm:$0xff]
        %v2263 = vld [vmem:[%s2 + $0x108] sm:$0xff]
        %v2264 = vld [vmem:[%s2 + $0x110] sm:$0xff]
        %v2265 = vld [vmem:[%s2 + $0x118] sm:$0xff]
        %v2266 = vld [vmem:[%s2 + $0x120] sm:$0xff]
        %v2267 = vld [vmem:[%s2 + $0x128] sm:$0xff]
        %v2268 = vld [vmem:[%s2 + $0x130] sm:$0xff]
        %v2269 = vld [vmem:[%s2 + $0x138] sm:$0xff]
        %v2270 = vld [vmem:[%s2 + $0x140] sm:$0xff]
        %v2271 = vld [vmem:[%s2 + $0x148] sm:$0xff]
        %v2272 = vld [vmem:[%s2 + $0x150] sm:$0xff]
        %v2273 = vld [vmem:[%s2 + $0x158] sm:$0xff]
        %v2274 = vld [vmem:[%s2 + $0x160] sm:$0xff]
        %v2275 = vld [vmem:[%s2 + $0x168] sm:$0xff]
        %v2276 = vld [vmem:[%s2 + $0x170] sm:$0xff]
        %v2277 = vld [vmem:[%s2 + $0x178] sm:$0xff]
        %v2278 = vld [vmem:[%s2 + $0x180] sm:$0xff]
        %v2279 = vld [vmem:[%s2 + $0x188] sm:$0xff]
        %v2280 = vld [vmem:[%s2 + $0x190] sm:$0xff]
        %v2281 = vld [vmem:[%s2 + $0x198] sm:$0xff]
        %v2282 = vld [vmem:[%s2 + $0x1a0] sm:$0xff]
        %v2283 = vld [vmem:[%s2 + $0x1a8] sm:$0xff]
        %v2284 = vld [vmem:[%s2 + $0x1b0] sm:$0xff]
        %v2285 = vld [vmem:[%s2 + $0x1b8] sm:$0xff]
        %v2286 = vld [vmem:[%s2 + $0x1c0] sm:$0xff]
        %v2287 = vld [vmem:[%s2 + $0x1c8] sm:$0xff]
        %v2288 = vld [vmem:[%s2 + $0x1d0] sm:$0xff]
        %v2289 = vld [vmem:[%s2 + $0x1d8] sm:$0xff]
        %v2290 = vld [vmem:[%s2 + $0x1e0] sm:$0xff]
        %v2291 = vld [vmem:[%s2 + $0x1e8] sm:$0xff]
        %v2292 = vld [vmem:[%s2 + $0x1f0] sm:$0xff]
        %v2293 = vld [vmem:[%s2 + $0x1f8] sm:$0xff]
        %v2294 = vld [vmem:[%s2 + $0x200] sm:$0xff]
        %v2295 = vld [vmem:[%s2 + $0x208] sm:$0xff]
        %v2296 = vld [vmem:[%s2 + $0x210] sm:$0xff]
        %v2297 = vld [vmem:[%s2 + $0x218] sm:$0xff]
        %v2298 = vld [vmem:[%s2 + $0x220] sm:$0xff]
        %v2299 = vld [vmem:[%s2 + $0x228] sm:$0xff]
        %v2300 = vld [vmem:[%s2 + $0x230] sm:$0xff]
        %v2301 = vld [vmem:[%s2 + $0x238] sm:$0xff]
        %v2302 = vld [vmem:[%s2 + $0x240] sm:$0xff]
        %v2303 = vld [vmem:[%s2 + $0x248] sm:$0xff]
        %v2304 = vld [vmem:[%s2 + $0x250] sm:$0xff]
        %v2305 = vld [vmem:[%s2 + $0x258] sm:$0xff]
        %v2306 = vld [vmem:[%s2 + $0x260] sm:$0xff]
        %v2307 = vld [vmem:[%s2 + $0x268] sm:$0xff]
        %v2308 = vld [vmem:[%s2 + $0x270] sm:$0xff]
        %v2309 = vld [vmem:[%s2 + $0x278] sm:$0xff]
        %v2310 = vld [vmem:[%s2 + $0x280] sm:$0xff]
        %v2311 = vld [vmem:[%s2 + $0x288] sm:$0xff]
        %v2312 = vld [vmem:[%s2 + $0x290] sm:$0xff]
        %v2313 = vld [vmem:[%s2 + $0x298] sm:$0xff]
        %v2314 = vld [vmem:[%s2 + $0x2a0] sm:$0xff]
        %v2315 = vld [vmem:[%s2 + $0x2a8] sm:$0xff]
        %v2316 = vld [vmem:[%s2 + $0x2b0] sm:$0xff]
        %v2317 = vld [vmem:[%s2 + $0x2b8] sm:$0xff]
        %v2318 = vld [vmem:[%s2 + $0x2c0] sm:$0xff]
        %v2319 = vld [vmem:[%s2 + $0x2c8] sm:$0xff]
        %v2320 = vld [vmem:[%s2 + $0x2d0] sm:$0xff]
        %v2321 = vld [vmem:[%s2 + $0x2d8] sm:$0xff]
        %v2322 = vld [vmem:[%s2 + $0x2e0] sm:$0xff]
        %v2323 = vld [vmem:[%s2 + $0x2e8] sm:$0xff]
        %v2324 = vld [vmem:[%s2 + $0x2f0] sm:$0xff]
        %v2325 = vld [vmem:[%s2 + $0x2f8] sm:$0xff]
        %v2326 = vld [vmem:[%s2 + $0x300] sm:$0xff]
        %v2327 = vld [vmem:[%s2 + $0x308] sm:$0xff]
        %v2328 = vld [vmem:[%s2 + $0x310] sm:$0xff]
        %v2329 = vld [vmem:[%s2 + $0x318] sm:$0xff]
        %v2330 = vld [vmem:[%s2 + $0x320] sm:$0xff]
        %v2331 = vld [vmem:[%s2 + $0x328] sm:$0xff]
        %v2332 = vld [vmem:[%s2 + $0x330] sm:$0xff]
        %v2333 = vld [vmem:[%s2 + $0x338] sm:$0xff]
        %v2334 = vld [vmem:[%s2 + $0x340] sm:$0xff]
        %v2335 = vld [vmem:[%s2 + $0x348] sm:$0xff]
        %v2336 = vld [vmem:[%s2 + $0x350] sm:$0xff]
        %v2337 = vld [vmem:[%s2 + $0x358] sm:$0xff]
        %v2338 = vld [vmem:[%s2 + $0x360] sm:$0xff]
        %v2339 = vld [vmem:[%s2 + $0x368] sm:$0xff]
        %v2340 = vld [vmem:[%s2 + $0x370] sm:$0xff]
        %v2341 = vld [vmem:[%s2 + $0x378] sm:$0xff]
        %v2342 = vld [vmem:[%s2 + $0x380] sm:$0xff]
        %v2343 = vld [vmem:[%s2 + $0x388] sm:$0xff]
        %v2344 = vld [vmem:[%s2 + $0x390] sm:$0xff]
        %v2345 = vld [vmem:[%s2 + $0x398] sm:$0xff]
        %v2346 = vld [vmem:[%s2 + $0x3a0] sm:$0xff]
        %v2347 = vld [vmem:[%s2 + $0x3a8] sm:$0xff]
        %v2348 = vld [vmem:[%s2 + $0x3b0] sm:$0xff]
        %v2349 = vld [vmem:[%s2 + $0x3b8] sm:$0xff]
        %v2350 = vld [vmem:[%s2 + $0x3c0] sm:$0xff]
        %v2351 = vld [vmem:[%s2 + $0x3c8] sm:$0xff]
        %v2352 = vld [vmem:[%s2 + $0x3d0] sm:$0xff]
        %v2353 = vld [vmem:[%s2 + $0x3d8] sm:$0xff]
        %v2354 = vld [vmem:[%s2 + $0x3e0] sm:$0xff]
        %v2355 = vld [vmem:[%s2 + $0x3e8] sm:$0xff]
        %v2356 = vld [vmem:[%s2 + $0x3f0] sm:$0xff]
        %v2357 = vld [vmem:[%s2 + $0x3f8] sm:$0xff]
        %v2358 = vld [vmem:[%s2 + $0x400] sm:$0xff]
        %v2359 = vld [vmem:[%s2 + $0x408] sm:$0xff]
        %v2360 = vld [vmem:[%s2 + $0x410] sm:$0xff]
        %v2361 = vld [vmem:[%s2 + $0x418] sm:$0xff]
        %v2362 = vld [vmem:[%s2 + $0x420] sm:$0xff]
        %v2363 = vld [vmem:[%s2 + $0x428] sm:$0xff]
        %v2364 = vld [vmem:[%s2 + $0x430] sm:$0xff]
        %v2365 = vld [vmem:[%s2 + $0x438] sm:$0xff]
        %v2366 = vld [vmem:[%s2 + $0x440] sm:$0xff]
        %v2367 = vld [vmem:[%s2 + $0x448] sm:$0xff]
        %v2368 = vld [vmem:[%s2 + $0x450] sm:$0xff]
        %v2369 = vld [vmem:[%s2 + $0x458] sm:$0xff]
        %v2370 = vld [vmem:[%s2 + $0x460] sm:$0xff]
        %v2371 = vld [vmem:[%s2 + $0x468] sm:$0xff]
        %v2372 = vld [vmem:[%s2 + $0x470] sm:$0xff]
        %v2373 = vld [vmem:[%s2 + $0x478] sm:$0xff]
        %v2374 = vld [vmem:[%s2 + $0x480] sm:$0xff]
        %v2375 = vld [vmem:[%s2 + $0x488] sm:$0xff]
        %v2376 = vld [vmem:[%s2 + $0x490] sm:$0xff]
        %v2377 = vld [vmem:[%s2 + $0x498] sm:$0xff]
        %v2378 = vld [vmem:[%s2 + $0x4a0] sm:$0xff]
        %v2379 = vld [vmem:[%s2 + $0x4a8] sm:$0xff]
        %v2380 = vld [vmem:[%s2 + $0x4b0] sm:$0xff]
        %v2381 = vld [vmem:[%s2 + $0x4b8] sm:$0xff]
        %v2382 = vld [vmem:[%s2 + $0x4c0] sm:$0xff]
        %v2383 = vld [vmem:[%s2 + $0x4c8] sm:$0xff]
        %v2384 = vld [vmem:[%s2 + $0x4d0] sm:$0xff]
        %v2385 = vld [vmem:[%s2 + $0x4d8] sm:$0xff]
        %v2386 = vld [vmem:[%s2 + $0x4e0] sm:$0xff]
        %v2387 = vld [vmem:[%s2 + $0x4e8] sm:$0xff]
        %v2388 = vld [vmem:[%s2 + $0x4f0] sm:$0xff]
        %v2389 = vld [vmem:[%s2 + $0x4f8] sm:$0xff]
        %v2390 = vld [vmem:[%s2 + $0x500] sm:$0xff]
        %v2391 = vld [vmem:[%s2 + $0x508] sm:$0xff]
        %v2392 = vld [vmem:[%s2 + $0x510] sm:$0xff]
        %v2393 = vld [vmem:[%s2 + $0x518] sm:$0xff]
        %v2394 = vld [vmem:[%s2 + $0x520] sm:$0xff]
        %v2395 = vld [vmem:[%s2 + $0x528] sm:$0xff]
        %v2396 = vld [vmem:[%s2 + $0x530] sm:$0xff]
        %v2397 = vld [vmem:[%s2 + $0x538] sm:$0xff]
        %v2398 = vld [vmem:[%s2 + $0x540] sm:$0xff]
        %v2399 = vld [vmem:[%s2 + $0x548] sm:$0xff]
        %v2400 = vld [vmem:[%s2 + $0x550] sm:$0xff]
        %v2401 = vld [vmem:[%s2 + $0x558] sm:$0xff]
        %v2402 = vld [vmem:[%s2 + $0x560] sm:$0xff]
        %v2403 = vld [vmem:[%s2 + $0x568] sm:$0xff]
        %v2404 = vld [vmem:[%s2 + $0x570] sm:$0xff]
        %v2405 = vld [vmem:[%s2 + $0x578] sm:$0xff]
        %v2406 = vld [vmem:[%s2 + $0x580] sm:$0xff]
        %v2407 = vld [vmem:[%s2 + $0x588] sm:$0xff]
        %v2408 = vld [vmem:[%s2 + $0x590] sm:$0xff]
        %v2409 = vld [vmem:[%s2 + $0x598] sm:$0xff]
        %v2410 = vld [vmem:[%s2 + $0x5a0] sm:$0xff]
        %v2411 = vld [vmem:[%s2 + $0x5a8] sm:$0xff]
        %v2412 = vld [vmem:[%s2 + $0x5b0] sm:$0xff]
        %v2413 = vld [vmem:[%s2 + $0x5b8] sm:$0xff]
        %v2414 = vld [vmem:[%s2 + $0x5c0] sm:$0xff]
        %v2415 = vld [vmem:[%s2 + $0x5c8] sm:$0xff]
        %v2416 = vld [vmem:[%s2 + $0x5d0] sm:$0xff]
        %v2417 = vld [vmem:[%s2 + $0x5d8] sm:$0xff]
        %v2418 = vld [vmem:[%s2 + $0x5e0] sm:$0xff]
        %v2419 = vld [vmem:[%s2 + $0x5e8] sm:$0xff]
        %v2420 = vld [vmem:[%s2 + $0x5f0] sm:$0xff]
        %v2421 = vld [vmem:[%s2 + $0x5f8] sm:$0xff]
        %v2422 = vld [vmem:[%s2 + $0x600] sm:$0xff]
        %v2423 = vld [vmem:[%s2 + $0x608] sm:$0xff]
        %v2424 = vld [vmem:[%s2 + $0x610] sm:$0xff]
        %v2425 = vld [vmem:[%s2 + $0x618] sm:$0xff]
        %v2426 = vld [vmem:[%s2 + $0x620] sm:$0xff]
        %v2427 = vld [vmem:[%s2 + $0x628] sm:$0xff]
        %v2428 = vld [vmem:[%s2 + $0x630] sm:$0xff]
        %v2429 = vld [vmem:[%s2 + $0x638] sm:$0xff]
        %v2430 = vld [vmem:[%s2 + $0x640] sm:$0xff]
        %v2431 = vld [vmem:[%s2 + $0x648] sm:$0xff]
        %v2432 = vld [vmem:[%s2 + $0x650] sm:$0xff]
        %v2433 = vld [vmem:[%s2 + $0x658] sm:$0xff]
        %v2434 = vld [vmem:[%s2 + $0x660] sm:$0xff]
        %v2435 = vld [vmem:[%s2 + $0x668] sm:$0xff]
        %v2436 = vld [vmem:[%s2 + $0x670] sm:$0xff]
        %v2437 = vld [vmem:[%s2 + $0x678] sm:$0xff]
        %v2438 = vld [vmem:[%s2 + $0x680] sm:$0xff]
        %v2439 = vld [vmem:[%s2 + $0x688] sm:$0xff]
        %v2440 = vld [vmem:[%s2 + $0x690] sm:$0xff]
        %v2441 = vld [vmem:[%s2 + $0x698] sm:$0xff]
        %v2442 = vld [vmem:[%s2 + $0x6a0] sm:$0xff]
        %v2443 = vld [vmem:[%s2 + $0x6a8] sm:$0xff]
        %v2444 = vld [vmem:[%s2 + $0x6b0] sm:$0xff]
        %v2445 = vld [vmem:[%s2 + $0x6b8] sm:$0xff]
        %v2446 = vld [vmem:[%s2 + $0x6c0] sm:$0xff]
        %v2447 = vld [vmem:[%s2 + $0x6c8] sm:$0xff]
        %v2448 = vld [vmem:[%s2 + $0x6d0] sm:$0xff]
        %v2449 = vld [vmem:[%s2 + $0x6d8] sm:$0xff]
        %v2450 = vld [vmem:[%s2 + $0x6e0] sm:$0xff]
        %v2451 = vld [vmem:[%s2 + $0x6e8] sm:$0xff]
        %v2452 = vld [vmem:[%s2 + $0x6f0] sm:$0xff]
        %v2453 = vld [vmem:[%s2 + $0x6f8] sm:$0xff]
        %v2454 = vld [vmem:[%s2 + $0x700] sm:$0xff]
        %v2455 = vld [vmem:[%s2 + $0x708] sm:$0xff]
        %v2456 = vld [vmem:[%s2 + $0x710] sm:$0xff]
        %v2457 = vld [vmem:[%s2 + $0x718] sm:$0xff]
        %v2458 = vld [vmem:[%s2 + $0x720] sm:$0xff]
        %v2459 = vld [vmem:[%s2 + $0x728] sm:$0xff]
        %v2460 = vld [vmem:[%s2 + $0x730] sm:$0xff]
        %v2461 = vld [vmem:[%s2 + $0x738] sm:$0xff]
        %v2462 = vld [vmem:[%s2 + $0x740] sm:$0xff]
        %v2463 = vld [vmem:[%s2 + $0x748] sm:$0xff]
        %v2464 = vld [vmem:[%s2 + $0x750] sm:$0xff]
        %v2465 = vld [vmem:[%s2 + $0x758] sm:$0xff]
        %v2466 = vld [vmem:[%s2 + $0x760] sm:$0xff]
        %v2467 = vld [vmem:[%s2 + $0x768] sm:$0xff]
        %v2468 = vld [vmem:[%s2 + $0x770] sm:$0xff]
        %v2469 = vld [vmem:[%s2 + $0x778] sm:$0xff]
        %v2470 = vld [vmem:[%s2 + $0x780] sm:$0xff]
        %v2471 = vld [vmem:[%s2 + $0x788] sm:$0xff]
        %v2472 = vld [vmem:[%s2 + $0x790] sm:$0xff]
        %v2473 = vld [vmem:[%s2 + $0x798] sm:$0xff]
        %v2474 = vld [vmem:[%s2 + $0x7a0] sm:$0xff]
        %v2475 = vld [vmem:[%s2 + $0x7a8] sm:$0xff]
        %v2476 = vld [vmem:[%s2 + $0x7b0] sm:$0xff]
        %v2477 = vld [vmem:[%s2 + $0x7b8] sm:$0xff]
        %v2478 = vld [vmem:[%s2 + $0x7c0] sm:$0xff]
        %v2479 = vld [vmem:[%s2 + $0x7c8] sm:$0xff]
        %v2480 = vld [vmem:[%s2 + $0x7d0] sm:$0xff]
        %v2481 = vld [vmem:[%s2 + $0x7d8] sm:$0xff]
        %v2482 = vld [vmem:[%s2 + $0x7e0] sm:$0xff]
        %v2483 = vld [vmem:[%s2 + $0x7e8] sm:$0xff]
        %v2484 = vld [vmem:[%s2 + $0x7f0] sm:$0xff]
        %v2485 = vld [vmem:[%s2 + $0x7f8] sm:$0xff]
        %v2486 = vld [vmem:[%s2 + $0x800] sm:$0xff]
        %v2487 = vld [vmem:[%s2 + $0x808] sm:$0xff]
        %v2488 = vld [vmem:[%s2 + $0x810] sm:$0xff]
        %v2489 = vld [vmem:[%s2 + $0x818] sm:$0xff]
        %v2490 = vld [vmem:[%s2 + $0x820] sm:$0xff]
        %v2491 = vld [vmem:[%s2 + $0x828] sm:$0xff]
        %v2492 = vld [vmem:[%s2 + $0x830] sm:$0xff]
        %v2493 = vld [vmem:[%s2 + $0x838] sm:$0xff]
        %v2494 = vld [vmem:[%s2 + $0x840] sm:$0xff]
        %v2495 = vld [vmem:[%s2 + $0x848] sm:$0xff]
        %v2496 = vld [vmem:[%s2 + $0x850] sm:$0xff]
        %v2497 = vld [vmem:[%s2 + $0x858] sm:$0xff]
        %v2498 = vld [vmem:[%s2 + $0x860] sm:$0xff]
        %v2499 = vld [vmem:[%s2 + $0x868] sm:$0xff]
        %v2500 = vld [vmem:[%s2 + $0x870] sm:$0xff]
        %v2501 = vld [vmem:[%s2 + $0x878] sm:$0xff]
        %v2502 = vld [vmem:[%s2 + $0x880] sm:$0xff]
        %v2503 = vld [vmem:[%s2 + $0x888] sm:$0xff]
        %v2504 = vld [vmem:[%s2 + $0x890] sm:$0xff]
        %v2505 = vld [vmem:[%s2 + $0x898] sm:$0xff]
        %v2506 = vld [vmem:[%s2 + $0x8a0] sm:$0xff]
        %v2507 = vld [vmem:[%s2 + $0x8a8] sm:$0xff]
        %v2508 = vld [vmem:[%s2 + $0x8b0] sm:$0xff]
        %v2509 = vld [vmem:[%s2 + $0x8b8] sm:$0xff]
        %v2510 = vld [vmem:[%s2 + $0x8c0] sm:$0xff]
        %v2511 = vld [vmem:[%s2 + $0x8c8] sm:$0xff]
        %v2512 = vld [vmem:[%s2 + $0x8d0] sm:$0xff]
        %v2513 = vld [vmem:[%s2 + $0x8d8] sm:$0xff]
        %v2514 = vld [vmem:[%s2 + $0x8e0] sm:$0xff]
        %v2515 = vld [vmem:[%s2 + $0x8e8] sm:$0xff]
        %v2516 = vld [vmem:[%s2 + $0x8f0] sm:$0xff]
        %v2517 = vld [vmem:[%s2 + $0x8f8] sm:$0xff]
        %v2806 = vunpack.c.l.b16 %v2230
        %v2807 = vunpack.c.h.b16 %v2230
        %v2808 = vunpack.c.l.b16 %v2231
        %v2809 = vunpack.c.h.b16 %v2231
        %v2810 = vunpack.c.l.b16 %v2232
        %v2811 = vunpack.c.h.b16 %v2232
        %v2812 = vunpack.c.l.b16 %v2233
        %v2813 = vunpack.c.h.b16 %v2233
        %v2814 = vunpack.c.l.b16 %v2234
        %v2815 = vunpack.c.h.b16 %v2234
        %v2816 = vunpack.c.l.b16 %v2235
        %v2817 = vunpack.c.h.b16 %v2235
        %v2818 = vunpack.c.l.b16 %v2236
        %v2819 = vunpack.c.h.b16 %v2236
        %v2820 = vunpack.c.l.b16 %v2237
        %v2821 = vunpack.c.h.b16 %v2237
        %v2822 = vunpack.c.l.b16 %v2238
        %v2823 = vunpack.c.h.b16 %v2238
        %v2824 = vunpack.c.l.b16 %v2239
        %v2825 = vunpack.c.h.b16 %v2239
        %v2826 = vunpack.c.l.b16 %v2240
        %v2827 = vunpack.c.h.b16 %v2240
        %v2828 = vunpack.c.l.b16 %v2241
        %v2829 = vunpack.c.h.b16 %v2241
        %v2830 = vunpack.c.l.b16 %v2242
        %v2831 = vunpack.c.h.b16 %v2242
        %v2832 = vunpack.c.l.b16 %v2243
        %v2833 = vunpack.c.h.b16 %v2243
        %v2834 = vunpack.c.l.b16 %v2244
        %v2835 = vunpack.c.h.b16 %v2244
        %v2836 = vunpack.c.l.b16 %v2245
        %v2837 = vunpack.c.h.b16 %v2245
        %v2838 = vunpack.c.l.b16 %v2246
        %v2839 = vunpack.c.h.b16 %v2246
        %v2840 = vunpack.c.l.b16 %v2247
        %v2841 = vunpack.c.h.b16 %v2247
        %v2842 = vunpack.c.l.b16 %v2248
        %v2843 = vunpack.c.h.b16 %v2248
        %v2844 = vunpack.c.l.b16 %v2249
        %v2845 = vunpack.c.h.b16 %v2249
        %v2846 = vunpack.c.l.b16 %v2250
        %v2847 = vunpack.c.h.b16 %v2250
        %v2848 = vunpack.c.l.b16 %v2251
        %v2849 = vunpack.c.h.b16 %v2251
        %v2850 = vunpack.c.l.b16 %v2252
        %v2851 = vunpack.c.h.b16 %v2252
        %v2852 = vunpack.c.l.b16 %v2253
        %v2853 = vunpack.c.h.b16 %v2253
        %v2854 = vunpack.c.l.b16 %v2254
        %v2855 = vunpack.c.h.b16 %v2254
        %v2856 = vunpack.c.l.b16 %v2255
        %v2857 = vunpack.c.h.b16 %v2255
        %v2858 = vunpack.c.l.b16 %v2256
        %v2859 = vunpack.c.h.b16 %v2256
        %v2860 = vunpack.c.l.b16 %v2257
        %v2861 = vunpack.c.h.b16 %v2257
        %v2862 = vunpack.c.l.b16 %v2258
        %v2863 = vunpack.c.h.b16 %v2258
        %v2864 = vunpack.c.l.b16 %v2259
        %v2865 = vunpack.c.h.b16 %v2259
        %v2866 = vunpack.c.l.b16 %v2260
        %v2867 = vunpack.c.h.b16 %v2260
        %v2868 = vunpack.c.l.b16 %v2261
        %v2869 = vunpack.c.h.b16 %v2261
        %v2870 = vunpack.c.l.b16 %v2262
        %v2871 = vunpack.c.h.b16 %v2262
        %v2872 = vunpack.c.l.b16 %v2263
        %v2873 = vunpack.c.h.b16 %v2263
        %v2874 = vunpack.c.l.b16 %v2264
        %v2875 = vunpack.c.h.b16 %v2264
        %v2876 = vunpack.c.l.b16 %v2265
        %v2877 = vunpack.c.h.b16 %v2265
        %v2878 = vunpack.c.l.b16 %v2266
        %v2879 = vunpack.c.h.b16 %v2266
        %v2880 = vunpack.c.l.b16 %v2267
        %v2881 = vunpack.c.h.b16 %v2267
        %v2882 = vunpack.c.l.b16 %v2268
        %v2883 = vunpack.c.h.b16 %v2268
        %v2884 = vunpack.c.l.b16 %v2269
        %v2885 = vunpack.c.h.b16 %v2269
        %v2886 = vunpack.c.l.b16 %v2270
        %v2887 = vunpack.c.h.b16 %v2270
        %v2888 = vunpack.c.l.b16 %v2271
        %v2889 = vunpack.c.h.b16 %v2271
        %v2890 = vunpack.c.l.b16 %v2272
        %v2891 = vunpack.c.h.b16 %v2272
        %v2892 = vunpack.c.l.b16 %v2273
        %v2893 = vunpack.c.h.b16 %v2273
        %v2894 = vunpack.c.l.b16 %v2274
        %v2895 = vunpack.c.h.b16 %v2274
        %v2896 = vunpack.c.l.b16 %v2275
        %v2897 = vunpack.c.h.b16 %v2275
        %v2898 = vunpack.c.l.b16 %v2276
        %v2899 = vunpack.c.h.b16 %v2276
        %v2900 = vunpack.c.l.b16 %v2277
        %v2901 = vunpack.c.h.b16 %v2277
        %v2902 = vunpack.c.l.b16 %v2278
        %v2903 = vunpack.c.h.b16 %v2278
        %v2904 = vunpack.c.l.b16 %v2279
        %v2905 = vunpack.c.h.b16 %v2279
        %v2906 = vunpack.c.l.b16 %v2280
        %v2907 = vunpack.c.h.b16 %v2280
        %v2908 = vunpack.c.l.b16 %v2281
        %v2909 = vunpack.c.h.b16 %v2281
        %v2910 = vunpack.c.l.b16 %v2282
        %v2911 = vunpack.c.h.b16 %v2282
        %v2912 = vunpack.c.l.b16 %v2283
        %v2913 = vunpack.c.h.b16 %v2283
        %v2914 = vunpack.c.l.b16 %v2284
        %v2915 = vunpack.c.h.b16 %v2284
        %v2916 = vunpack.c.l.b16 %v2285
        %v2917 = vunpack.c.h.b16 %v2285
        %v2918 = vunpack.c.l.b16 %v2286
        %v2919 = vunpack.c.h.b16 %v2286
        %v2920 = vunpack.c.l.b16 %v2287
        %v2921 = vunpack.c.h.b16 %v2287
        %v2922 = vunpack.c.l.b16 %v2288
        %v2923 = vunpack.c.h.b16 %v2288
        %v2924 = vunpack.c.l.b16 %v2289
        %v2925 = vunpack.c.h.b16 %v2289
        %v2926 = vunpack.c.l.b16 %v2290
        %v2927 = vunpack.c.h.b16 %v2290
        %v2928 = vunpack.c.l.b16 %v2291
        %v2929 = vunpack.c.h.b16 %v2291
        %v2930 = vunpack.c.l.b16 %v2292
        %v2931 = vunpack.c.h.b16 %v2292
        %v2932 = vunpack.c.l.b16 %v2293
        %v2933 = vunpack.c.h.b16 %v2293
        %v2934 = vunpack.c.l.b16 %v2294
        %v2935 = vunpack.c.h.b16 %v2294
        %v2936 = vunpack.c.l.b16 %v2295
        %v2937 = vunpack.c.h.b16 %v2295
        %v2938 = vunpack.c.l.b16 %v2296
        %v2939 = vunpack.c.h.b16 %v2296
        %v2940 = vunpack.c.l.b16 %v2297
        %v2941 = vunpack.c.h.b16 %v2297
        %v2942 = vunpack.c.l.b16 %v2298
        %v2943 = vunpack.c.h.b16 %v2298
        %v2944 = vunpack.c.l.b16 %v2299
        %v2945 = vunpack.c.h.b16 %v2299
        %v2946 = vunpack.c.l.b16 %v2300
        %v2947 = vunpack.c.h.b16 %v2300
        %v2948 = vunpack.c.l.b16 %v2301
        %v2949 = vunpack.c.h.b16 %v2301
        %v2950 = vunpack.c.l.b16 %v2302
        %v2951 = vunpack.c.h.b16 %v2302
        %v2952 = vunpack.c.l.b16 %v2303
        %v2953 = vunpack.c.h.b16 %v2303
        %v2954 = vunpack.c.l.b16 %v2304
        %v2955 = vunpack.c.h.b16 %v2304
        %v2956 = vunpack.c.l.b16 %v2305
        %v2957 = vunpack.c.h.b16 %v2305
        %v2958 = vunpack.c.l.b16 %v2306
        %v2959 = vunpack.c.h.b16 %v2306
        %v2960 = vunpack.c.l.b16 %v2307
        %v2961 = vunpack.c.h.b16 %v2307
        %v2962 = vunpack.c.l.b16 %v2308
        %v2963 = vunpack.c.h.b16 %v2308
        %v2964 = vunpack.c.l.b16 %v2309
        %v2965 = vunpack.c.h.b16 %v2309
        %v2966 = vunpack.c.l.b16 %v2310
        %v2967 = vunpack.c.h.b16 %v2310
        %v2968 = vunpack.c.l.b16 %v2311
        %v2969 = vunpack.c.h.b16 %v2311
        %v2970 = vunpack.c.l.b16 %v2312
        %v2971 = vunpack.c.h.b16 %v2312
        %v2972 = vunpack.c.l.b16 %v2313
        %v2973 = vunpack.c.h.b16 %v2313
        %v2974 = vunpack.c.l.b16 %v2314
        %v2975 = vunpack.c.h.b16 %v2314
        %v2976 = vunpack.c.l.b16 %v2315
        %v2977 = vunpack.c.h.b16 %v2315
        %v2978 = vunpack.c.l.b16 %v2316
        %v2979 = vunpack.c.h.b16 %v2316
        %v2980 = vunpack.c.l.b16 %v2317
        %v2981 = vunpack.c.h.b16 %v2317
        %v2982 = vunpack.c.l.b16 %v2318
        %v2983 = vunpack.c.h.b16 %v2318
        %v2984 = vunpack.c.l.b16 %v2319
        %v2985 = vunpack.c.h.b16 %v2319
        %v2986 = vunpack.c.l.b16 %v2320
        %v2987 = vunpack.c.h.b16 %v2320
        %v2988 = vunpack.c.l.b16 %v2321
        %v2989 = vunpack.c.h.b16 %v2321
        %v2990 = vunpack.c.l.b16 %v2322
        %v2991 = vunpack.c.h.b16 %v2322
        %v2992 = vunpack.c.l.b16 %v2323
        %v2993 = vunpack.c.h.b16 %v2323
        %v2994 = vunpack.c.l.b16 %v2324
        %v2995 = vunpack.c.h.b16 %v2324
        %v2996 = vunpack.c.l.b16 %v2325
        %v2997 = vunpack.c.h.b16 %v2325
        %v2998 = vunpack.c.l.b16 %v2326
        %v2999 = vunpack.c.h.b16 %v2326
        %v3000 = vunpack.c.l.b16 %v2327
        %v3001 = vunpack.c.h.b16 %v2327
        %v3002 = vunpack.c.l.b16 %v2328
        %v3003 = vunpack.c.h.b16 %v2328
        %v3004 = vunpack.c.l.b16 %v2329
        %v3005 = vunpack.c.h.b16 %v2329
        %v3006 = vunpack.c.l.b16 %v2330
        %v3007 = vunpack.c.h.b16 %v2330
        %v3008 = vunpack.c.l.b16 %v2331
        %v3009 = vunpack.c.h.b16 %v2331
        %v3010 = vunpack.c.l.b16 %v2332
        %v3011 = vunpack.c.h.b16 %v2332
        %v3012 = vunpack.c.l.b16 %v2333
        %v3013 = vunpack.c.h.b16 %v2333
        %v3014 = vunpack.c.l.b16 %v2334
        %v3015 = vunpack.c.h.b16 %v2334
        %v3016 = vunpack.c.l.b16 %v2335
        %v3017 = vunpack.c.h.b16 %v2335
        %v3018 = vunpack.c.l.b16 %v2336
        %v3019 = vunpack.c.h.b16 %v2336
        %v3020 = vunpack.c.l.b16 %v2337
        %v3021 = vunpack.c.h.b16 %v2337
        %v3022 = vunpack.c.l.b16 %v2338
        %v3023 = vunpack.c.h.b16 %v2338
        %v3024 = vunpack.c.l.b16 %v2339
        %v3025 = vunpack.c.h.b16 %v2339
        %v3026 = vunpack.c.l.b16 %v2340
        %v3027 = vunpack.c.h.b16 %v2340
        %v3028 = vunpack.c.l.b16 %v2341
        %v3029 = vunpack.c.h.b16 %v2341
        %v3030 = vunpack.c.l.b16 %v2342
        %v3031 = vunpack.c.h.b16 %v2342
        %v3032 = vunpack.c.l.b16 %v2343
        %v3033 = vunpack.c.h.b16 %v2343
        %v3034 = vunpack.c.l.b16 %v2344
        %v3035 = vunpack.c.h.b16 %v2344
        %v3036 = vunpack.c.l.b16 %v2345
        %v3037 = vunpack.c.h.b16 %v2345
        %v3038 = vunpack.c.l.b16 %v2346
        %v3039 = vunpack.c.h.b16 %v2346
        %v3040 = vunpack.c.l.b16 %v2347
        %v3041 = vunpack.c.h.b16 %v2347
        %v3042 = vunpack.c.l.b16 %v2348
        %v3043 = vunpack.c.h.b16 %v2348
        %v3044 = vunpack.c.l.b16 %v2349
        %v3045 = vunpack.c.h.b16 %v2349
        %v3046 = vunpack.c.l.b16 %v2350
        %v3047 = vunpack.c.h.b16 %v2350
        %v3048 = vunpack.c.l.b16 %v2351
        %v3049 = vunpack.c.h.b16 %v2351
        %v3050 = vunpack.c.l.b16 %v2352
        %v3051 = vunpack.c.h.b16 %v2352
        %v3052 = vunpack.c.l.b16 %v2353
        %v3053 = vunpack.c.h.b16 %v2353
        %v3054 = vunpack.c.l.b16 %v2354
        %v3055 = vunpack.c.h.b16 %v2354
        %v3056 = vunpack.c.l.b16 %v2355
        %v3057 = vunpack.c.h.b16 %v2355
        %v3058 = vunpack.c.l.b16 %v2356
        %v3059 = vunpack.c.h.b16 %v2356
        %v3060 = vunpack.c.l.b16 %v2357
        %v3061 = vunpack.c.h.b16 %v2357
        %v3062 = vunpack.c.l.b16 %v2358
        %v3063 = vunpack.c.h.b16 %v2358
        %v3064 = vunpack.c.l.b16 %v2359
        %v3065 = vunpack.c.h.b16 %v2359
        %v3066 = vunpack.c.l.b16 %v2360
        %v3067 = vunpack.c.h.b16 %v2360
        %v3068 = vunpack.c.l.b16 %v2361
        %v3069 = vunpack.c.h.b16 %v2361
        %v3070 = vunpack.c.l.b16 %v2362
        %v3071 = vunpack.c.h.b16 %v2362
        %v3072 = vunpack.c.l.b16 %v2363
        %v3073 = vunpack.c.h.b16 %v2363
        %v3074 = vunpack.c.l.b16 %v2364
        %v3075 = vunpack.c.h.b16 %v2364
        %v3076 = vunpack.c.l.b16 %v2365
        %v3077 = vunpack.c.h.b16 %v2365
        %v3078 = vunpack.c.l.b16 %v2366
        %v3079 = vunpack.c.h.b16 %v2366
        %v3080 = vunpack.c.l.b16 %v2367
        %v3081 = vunpack.c.h.b16 %v2367
        %v3082 = vunpack.c.l.b16 %v2368
        %v3083 = vunpack.c.h.b16 %v2368
        %v3084 = vunpack.c.l.b16 %v2369
        %v3085 = vunpack.c.h.b16 %v2369
        %v3086 = vunpack.c.l.b16 %v2370
        %v3087 = vunpack.c.h.b16 %v2370
        %v3088 = vunpack.c.l.b16 %v2371
        %v3089 = vunpack.c.h.b16 %v2371
        %v3090 = vunpack.c.l.b16 %v2372
        %v3091 = vunpack.c.h.b16 %v2372
        %v3092 = vunpack.c.l.b16 %v2373
        %v3093 = vunpack.c.h.b16 %v2373
        %v3094 = vunpack.c.l.b16 %v2374
        %v3095 = vunpack.c.h.b16 %v2374
        %v3096 = vunpack.c.l.b16 %v2375
        %v3097 = vunpack.c.h.b16 %v2375
        %v3098 = vunpack.c.l.b16 %v2376
        %v3099 = vunpack.c.h.b16 %v2376
        %v3100 = vunpack.c.l.b16 %v2377
        %v3101 = vunpack.c.h.b16 %v2377
        %v3102 = vunpack.c.l.b16 %v2378
        %v3103 = vunpack.c.h.b16 %v2378
        %v3104 = vunpack.c.l.b16 %v2379
        %v3105 = vunpack.c.h.b16 %v2379
        %v3106 = vunpack.c.l.b16 %v2380
        %v3107 = vunpack.c.h.b16 %v2380
        %v3108 = vunpack.c.l.b16 %v2381
        %v3109 = vunpack.c.h.b16 %v2381
        %v3110 = vunpack.c.l.b16 %v2382
        %v3111 = vunpack.c.h.b16 %v2382
        %v3112 = vunpack.c.l.b16 %v2383
        %v3113 = vunpack.c.h.b16 %v2383
        %v3114 = vunpack.c.l.b16 %v2384
        %v3115 = vunpack.c.h.b16 %v2384
        %v3116 = vunpack.c.l.b16 %v2385
        %v3117 = vunpack.c.h.b16 %v2385
        %v3118 = vunpack.c.l.b16 %v2386
        %v3119 = vunpack.c.h.b16 %v2386
        %v3120 = vunpack.c.l.b16 %v2387
        %v3121 = vunpack.c.h.b16 %v2387
        %v3122 = vunpack.c.l.b16 %v2388
        %v3123 = vunpack.c.h.b16 %v2388
        %v3124 = vunpack.c.l.b16 %v2389
        %v3125 = vunpack.c.h.b16 %v2389
        %v3126 = vunpack.c.l.b16 %v2390
        %v3127 = vunpack.c.h.b16 %v2390
        %v3128 = vunpack.c.l.b16 %v2391
        %v3129 = vunpack.c.h.b16 %v2391
        %v3130 = vunpack.c.l.b16 %v2392
        %v3131 = vunpack.c.h.b16 %v2392
        %v3132 = vunpack.c.l.b16 %v2393
        %v3133 = vunpack.c.h.b16 %v2393
        %v3134 = vunpack.c.l.b16 %v2394
        %v3135 = vunpack.c.h.b16 %v2394
        %v3136 = vunpack.c.l.b16 %v2395
        %v3137 = vunpack.c.h.b16 %v2395
        %v3138 = vunpack.c.l.b16 %v2396
        %v3139 = vunpack.c.h.b16 %v2396
        %v3140 = vunpack.c.l.b16 %v2397
        %v3141 = vunpack.c.h.b16 %v2397
        %v3142 = vunpack.c.l.b16 %v2398
        %v3143 = vunpack.c.h.b16 %v2398
        %v3144 = vunpack.c.l.b16 %v2399
        %v3145 = vunpack.c.h.b16 %v2399
        %v3146 = vunpack.c.l.b16 %v2400
        %v3147 = vunpack.c.h.b16 %v2400
        %v3148 = vunpack.c.l.b16 %v2401
        %v3149 = vunpack.c.h.b16 %v2401
        %v3150 = vunpack.c.l.b16 %v2402
        %v3151 = vunpack.c.h.b16 %v2402
        %v3152 = vunpack.c.l.b16 %v2403
        %v3153 = vunpack.c.h.b16 %v2403
        %v3154 = vunpack.c.l.b16 %v2404
        %v3155 = vunpack.c.h.b16 %v2404
        %v3156 = vunpack.c.l.b16 %v2405
        %v3157 = vunpack.c.h.b16 %v2405
        %v3158 = vunpack.c.l.b16 %v2406
        %v3159 = vunpack.c.h.b16 %v2406
        %v3160 = vunpack.c.l.b16 %v2407
        %v3161 = vunpack.c.h.b16 %v2407
        %v3162 = vunpack.c.l.b16 %v2408
        %v3163 = vunpack.c.h.b16 %v2408
        %v3164 = vunpack.c.l.b16 %v2409
        %v3165 = vunpack.c.h.b16 %v2409
        %v3166 = vunpack.c.l.b16 %v2410
        %v3167 = vunpack.c.h.b16 %v2410
        %v3168 = vunpack.c.l.b16 %v2411
        %v3169 = vunpack.c.h.b16 %v2411
        %v3170 = vunpack.c.l.b16 %v2412
        %v3171 = vunpack.c.h.b16 %v2412
        %v3172 = vunpack.c.l.b16 %v2413
        %v3173 = vunpack.c.h.b16 %v2413
        %v3174 = vunpack.c.l.b16 %v2414
        %v3175 = vunpack.c.h.b16 %v2414
        %v3176 = vunpack.c.l.b16 %v2415
        %v3177 = vunpack.c.h.b16 %v2415
        %v3178 = vunpack.c.l.b16 %v2416
        %v3179 = vunpack.c.h.b16 %v2416
        %v3180 = vunpack.c.l.b16 %v2417
        %v3181 = vunpack.c.h.b16 %v2417
        %v3182 = vunpack.c.l.b16 %v2418
        %v3183 = vunpack.c.h.b16 %v2418
        %v3184 = vunpack.c.l.b16 %v2419
        %v3185 = vunpack.c.h.b16 %v2419
        %v3186 = vunpack.c.l.b16 %v2420
        %v3187 = vunpack.c.h.b16 %v2420
        %v3188 = vunpack.c.l.b16 %v2421
        %v3189 = vunpack.c.h.b16 %v2421
        %v3190 = vunpack.c.l.b16 %v2422
        %v3191 = vunpack.c.h.b16 %v2422
        %v3192 = vunpack.c.l.b16 %v2423
        %v3193 = vunpack.c.h.b16 %v2423
        %v3194 = vunpack.c.l.b16 %v2424
        %v3195 = vunpack.c.h.b16 %v2424
        %v3196 = vunpack.c.l.b16 %v2425
        %v3197 = vunpack.c.h.b16 %v2425
        %v3198 = vunpack.c.l.b16 %v2426
        %v3199 = vunpack.c.h.b16 %v2426
        %v3200 = vunpack.c.l.b16 %v2427
        %v3201 = vunpack.c.h.b16 %v2427
        %v3202 = vunpack.c.l.b16 %v2428
        %v3203 = vunpack.c.h.b16 %v2428
        %v3204 = vunpack.c.l.b16 %v2429
        %v3205 = vunpack.c.h.b16 %v2429
        %v3206 = vunpack.c.l.b16 %v2430
        %v3207 = vunpack.c.h.b16 %v2430
        %v3208 = vunpack.c.l.b16 %v2431
        %v3209 = vunpack.c.h.b16 %v2431
        %v3210 = vunpack.c.l.b16 %v2432
        %v3211 = vunpack.c.h.b16 %v2432
        %v3212 = vunpack.c.l.b16 %v2433
        %v3213 = vunpack.c.h.b16 %v2433
        %v3214 = vunpack.c.l.b16 %v2434
        %v3215 = vunpack.c.h.b16 %v2434
        %v3216 = vunpack.c.l.b16 %v2435
        %v3217 = vunpack.c.h.b16 %v2435
        %v3218 = vunpack.c.l.b16 %v2436
        %v3219 = vunpack.c.h.b16 %v2436
        %v3220 = vunpack.c.l.b16 %v2437
        %v3221 = vunpack.c.h.b16 %v2437
        %v3222 = vunpack.c.l.b16 %v2438
        %v3223 = vunpack.c.h.b16 %v2438
        %v3224 = vunpack.c.l.b16 %v2439
        %v3225 = vunpack.c.h.b16 %v2439
        %v3226 = vunpack.c.l.b16 %v2440
        %v3227 = vunpack.c.h.b16 %v2440
        %v3228 = vunpack.c.l.b16 %v2441
        %v3229 = vunpack.c.h.b16 %v2441
        %v3230 = vunpack.c.l.b16 %v2442
        %v3231 = vunpack.c.h.b16 %v2442
        %v3232 = vunpack.c.l.b16 %v2443
        %v3233 = vunpack.c.h.b16 %v2443
        %v3234 = vunpack.c.l.b16 %v2444
        %v3235 = vunpack.c.h.b16 %v2444
        %v3236 = vunpack.c.l.b16 %v2445
        %v3237 = vunpack.c.h.b16 %v2445
        %v3238 = vunpack.c.l.b16 %v2446
        %v3239 = vunpack.c.h.b16 %v2446
        %v3240 = vunpack.c.l.b16 %v2447
        %v3241 = vunpack.c.h.b16 %v2447
        %v3242 = vunpack.c.l.b16 %v2448
        %v3243 = vunpack.c.h.b16 %v2448
        %v3244 = vunpack.c.l.b16 %v2449
        %v3245 = vunpack.c.h.b16 %v2449
        %v3246 = vunpack.c.l.b16 %v2450
        %v3247 = vunpack.c.h.b16 %v2450
        %v3248 = vunpack.c.l.b16 %v2451
        %v3249 = vunpack.c.h.b16 %v2451
        %v3250 = vunpack.c.l.b16 %v2452
        %v3251 = vunpack.c.h.b16 %v2452
        %v3252 = vunpack.c.l.b16 %v2453
        %v3253 = vunpack.c.h.b16 %v2453
        %v3254 = vunpack.c.l.b16 %v2454
        %v3255 = vunpack.c.h.b16 %v2454
        %v3256 = vunpack.c.l.b16 %v2455
        %v3257 = vunpack.c.h.b16 %v2455
        %v3258 = vunpack.c.l.b16 %v2456
        %v3259 = vunpack.c.h.b16 %v2456
        %v3260 = vunpack.c.l.b16 %v2457
        %v3261 = vunpack.c.h.b16 %v2457
        %v3262 = vunpack.c.l.b16 %v2458
        %v3263 = vunpack.c.h.b16 %v2458
        %v3264 = vunpack.c.l.b16 %v2459
        %v3265 = vunpack.c.h.b16 %v2459
        %v3266 = vunpack.c.l.b16 %v2460
        %v3267 = vunpack.c.h.b16 %v2460
        %v3268 = vunpack.c.l.b16 %v2461
        %v3269 = vunpack.c.h.b16 %v2461
        %v3270 = vunpack.c.l.b16 %v2462
        %v3271 = vunpack.c.h.b16 %v2462
        %v3272 = vunpack.c.l.b16 %v2463
        %v3273 = vunpack.c.h.b16 %v2463
        %v3274 = vunpack.c.l.b16 %v2464
        %v3275 = vunpack.c.h.b16 %v2464
        %v3276 = vunpack.c.l.b16 %v2465
        %v3277 = vunpack.c.h.b16 %v2465
        %v3278 = vunpack.c.l.b16 %v2466
        %v3279 = vunpack.c.h.b16 %v2466
        %v3280 = vunpack.c.l.b16 %v2467
        %v3281 = vunpack.c.h.b16 %v2467
        %v3282 = vunpack.c.l.b16 %v2468
        %v3283 = vunpack.c.h.b16 %v2468
        %v3284 = vunpack.c.l.b16 %v2469
        %v3285 = vunpack.c.h.b16 %v2469
        %v3286 = vunpack.c.l.b16 %v2470
        %v3287 = vunpack.c.h.b16 %v2470
        %v3288 = vunpack.c.l.b16 %v2471
        %v3289 = vunpack.c.h.b16 %v2471
        %v3290 = vunpack.c.l.b16 %v2472
        %v3291 = vunpack.c.h.b16 %v2472
        %v3292 = vunpack.c.l.b16 %v2473
        %v3293 = vunpack.c.h.b16 %v2473
        %v3294 = vunpack.c.l.b16 %v2474
        %v3295 = vunpack.c.h.b16 %v2474
        %v3296 = vunpack.c.l.b16 %v2475
        %v3297 = vunpack.c.h.b16 %v2475
        %v3298 = vunpack.c.l.b16 %v2476
        %v3299 = vunpack.c.h.b16 %v2476
        %v3300 = vunpack.c.l.b16 %v2477
        %v3301 = vunpack.c.h.b16 %v2477
        %v3302 = vunpack.c.l.b16 %v2478
        %v3303 = vunpack.c.h.b16 %v2478
        %v3304 = vunpack.c.l.b16 %v2479
        %v3305 = vunpack.c.h.b16 %v2479
        %v3306 = vunpack.c.l.b16 %v2480
        %v3307 = vunpack.c.h.b16 %v2480
        %v3308 = vunpack.c.l.b16 %v2481
        %v3309 = vunpack.c.h.b16 %v2481
        %v3310 = vunpack.c.l.b16 %v2482
        %v3311 = vunpack.c.h.b16 %v2482
        %v3312 = vunpack.c.l.b16 %v2483
        %v3313 = vunpack.c.h.b16 %v2483
        %v3314 = vunpack.c.l.b16 %v2484
        %v3315 = vunpack.c.h.b16 %v2484
        %v3316 = vunpack.c.l.b16 %v2485
        %v3317 = vunpack.c.h.b16 %v2485
        %v3318 = vunpack.c.l.b16 %v2486
        %v3319 = vunpack.c.h.b16 %v2486
        %v3320 = vunpack.c.l.b16 %v2487
        %v3321 = vunpack.c.h.b16 %v2487
        %v3322 = vunpack.c.l.b16 %v2488
        %v3323 = vunpack.c.h.b16 %v2488
        %v3324 = vunpack.c.l.b16 %v2489
        %v3325 = vunpack.c.h.b16 %v2489
        %v3326 = vunpack.c.l.b16 %v2490
        %v3327 = vunpack.c.h.b16 %v2490
        %v3328 = vunpack.c.l.b16 %v2491
        %v3329 = vunpack.c.h.b16 %v2491
        %v3330 = vunpack.c.l.b16 %v2492
        %v3331 = vunpack.c.h.b16 %v2492
        %v3332 = vunpack.c.l.b16 %v2493
        %v3333 = vunpack.c.h.b16 %v2493
        %v3334 = vunpack.c.l.b16 %v2494
        %v3335 = vunpack.c.h.b16 %v2494
        %v3336 = vunpack.c.l.b16 %v2495
        %v3337 = vunpack.c.h.b16 %v2495
        %v3338 = vunpack.c.l.b16 %v2496
        %v3339 = vunpack.c.h.b16 %v2496
        %v3340 = vunpack.c.l.b16 %v2497
        %v3341 = vunpack.c.h.b16 %v2497
        %v3342 = vunpack.c.l.b16 %v2498
        %v3343 = vunpack.c.h.b16 %v2498
        %v3344 = vunpack.c.l.b16 %v2499
        %v3345 = vunpack.c.h.b16 %v2499
        %v3346 = vunpack.c.l.b16 %v2500
        %v3347 = vunpack.c.h.b16 %v2500
        %v3348 = vunpack.c.l.b16 %v2501
        %v3349 = vunpack.c.h.b16 %v2501
        %v3350 = vunpack.c.l.b16 %v2502
        %v3351 = vunpack.c.h.b16 %v2502
        %v3352 = vunpack.c.l.b16 %v2503
        %v3353 = vunpack.c.h.b16 %v2503
        %v3354 = vunpack.c.l.b16 %v2504
        %v3355 = vunpack.c.h.b16 %v2504
        %v3356 = vunpack.c.l.b16 %v2505
        %v3357 = vunpack.c.h.b16 %v2505
        %v3358 = vunpack.c.l.b16 %v2506
        %v3359 = vunpack.c.h.b16 %v2506
        %v3360 = vunpack.c.l.b16 %v2507
        %v3361 = vunpack.c.h.b16 %v2507
        %v3362 = vunpack.c.l.b16 %v2508
        %v3363 = vunpack.c.h.b16 %v2508
        %v3364 = vunpack.c.l.b16 %v2509
        %v3365 = vunpack.c.h.b16 %v2509
        %v3366 = vunpack.c.l.b16 %v2510
        %v3367 = vunpack.c.h.b16 %v2510
        %v3368 = vunpack.c.l.b16 %v2511
        %v3369 = vunpack.c.h.b16 %v2511
        %v3370 = vunpack.c.l.b16 %v2512
        %v3371 = vunpack.c.h.b16 %v2512
        %v3372 = vunpack.c.l.b16 %v2513
        %v3373 = vunpack.c.h.b16 %v2513
        %v3374 = vunpack.c.l.b16 %v2514
        %v3375 = vunpack.c.h.b16 %v2514
        %v3376 = vunpack.c.l.b16 %v2515
        %v3377 = vunpack.c.h.b16 %v2515
        %v3378 = vunpack.c.l.b16 %v2516
        %v3379 = vunpack.c.h.b16 %v2516
        %v3380 = vunpack.c.l.b16 %v2517
        %v3381 = vunpack.c.h.b16 %v2517
        %v3382 = vpack.c.b16 %v2812, %v2806
        %v3383 = vpack.c.b16 %v2813, %v2807
        %v3384 = vpack.c.b16 %v2814, %v2808
        %v3385 = vpack.c.b16 %v2815, %v2809
        %v3386 = vpack.c.b16 %v2816, %v2810
        %v3387 = vpack.c.b16 %v2817, %v2811
        %v3388 = vpack.c.b16 %v2824, %v2818
        %v3389 = vpack.c.b16 %v2825, %v2819
        %v3390 = vpack.c.b16 %v2826, %v2820
        %v3391 = vpack.c.b16 %v2827, %v2821
        %v3392 = vpack.c.b16 %v2828, %v2822
        %v3393 = vpack.c.b16 %v2829, %v2823
        %v3394 = vpack.c.b16 %v2836, %v2830
        %v3395 = vpack.c.b16 %v2837, %v2831
        %v3396 = vpack.c.b16 %v2838, %v2832
        %v3397 = vpack.c.b16 %v2839, %v2833
        %v3398 = vpack.c.b16 %v2840, %v2834
        %v3399 = vpack.c.b16 %v2841, %v2835
        %v3400 = vpack.c.b16 %v2848, %v2842
        %v3401 = vpack.c.b16 %v2849, %v2843
        %v3402 = vpack.c.b16 %v2850, %v2844
        %v3403 = vpack.c.b16 %v2851, %v2845
        %v3404 = vpack.c.b16 %v2852, %v2846
        %v3405 = vpack.c.b16 %v2853, %v2847
        %v3406 = vpack.c.b16 %v2860, %v2854
        %v3407 = vpack.c.b16 %v2861, %v2855
        %v3408 = vpack.c.b16 %v2862, %v2856
        %v3409 = vpack.c.b16 %v2863, %v2857
        %v3410 = vpack.c.b16 %v2864, %v2858
        %v3411 = vpack.c.b16 %v2865, %v2859
        %v3412 = vpack.c.b16 %v2872, %v2866
        %v3413 = vpack.c.b16 %v2873, %v2867
        %v3414 = vpack.c.b16 %v2874, %v2868
        %v3415 = vpack.c.b16 %v2875, %v2869
        %v3416 = vpack.c.b16 %v2876, %v2870
        %v3417 = vpack.c.b16 %v2877, %v2871
        %v3418 = vpack.c.b16 %v2884, %v2878
        %v3419 = vpack.c.b16 %v2885, %v2879
        %v3420 = vpack.c.b16 %v2886, %v2880
        %v3421 = vpack.c.b16 %v2887, %v2881
        %v3422 = vpack.c.b16 %v2888, %v2882
        %v3423 = vpack.c.b16 %v2889, %v2883
        %v3424 = vpack.c.b16 %v2896, %v2890
        %v3425 = vpack.c.b16 %v2897, %v2891
        %v3426 = vpack.c.b16 %v2898, %v2892
        %v3427 = vpack.c.b16 %v2899, %v2893
        %v3428 = vpack.c.b16 %v2900, %v2894
        %v3429 = vpack.c.b16 %v2901, %v2895
        %v3430 = vpack.c.b16 %v2908, %v2902
        %v3431 = vpack.c.b16 %v2909, %v2903
        %v3432 = vpack.c.b16 %v2910, %v2904
        %v3433 = vpack.c.b16 %v2911, %v2905
        %v3434 = vpack.c.b16 %v2912, %v2906
        %v3435 = vpack.c.b16 %v2913, %v2907
        %v3436 = vpack.c.b16 %v2920, %v2914
        %v3437 = vpack.c.b16 %v2921, %v2915
        %v3438 = vpack.c.b16 %v2922, %v2916
        %v3439 = vpack.c.b16 %v2923, %v2917
        %v3440 = vpack.c.b16 %v2924, %v2918
        %v3441 = vpack.c.b16 %v2925, %v2919
        %v3442 = vpack.c.b16 %v2932, %v2926
        %v3443 = vpack.c.b16 %v2933, %v2927
        %v3444 = vpack.c.b16 %v2934, %v2928
        %v3445 = vpack.c.b16 %v2935, %v2929
        %v3446 = vpack.c.b16 %v2936, %v2930
        %v3447 = vpack.c.b16 %v2937, %v2931
        %v3448 = vpack.c.b16 %v2944, %v2938
        %v3449 = vpack.c.b16 %v2945, %v2939
        %v3450 = vpack.c.b16 %v2946, %v2940
        %v3451 = vpack.c.b16 %v2947, %v2941
        %v3452 = vpack.c.b16 %v2948, %v2942
        %v3453 = vpack.c.b16 %v2949, %v2943
        %v3454 = vpack.c.b16 %v2956, %v2950
        %v3455 = vpack.c.b16 %v2957, %v2951
        %v3456 = vpack.c.b16 %v2958, %v2952
        %v3457 = vpack.c.b16 %v2959, %v2953
        %v3458 = vpack.c.b16 %v2960, %v2954
        %v3459 = vpack.c.b16 %v2961, %v2955
        %v3460 = vpack.c.b16 %v2968, %v2962
        %v3461 = vpack.c.b16 %v2969, %v2963
        %v3462 = vpack.c.b16 %v2970, %v2964
        %v3463 = vpack.c.b16 %v2971, %v2965
        %v3464 = vpack.c.b16 %v2972, %v2966
        %v3465 = vpack.c.b16 %v2973, %v2967
        %v3466 = vpack.c.b16 %v2980, %v2974
        %v3467 = vpack.c.b16 %v2981, %v2975
        %v3468 = vpack.c.b16 %v2982, %v2976
        %v3469 = vpack.c.b16 %v2983, %v2977
        %v3470 = vpack.c.b16 %v2984, %v2978
        %v3471 = vpack.c.b16 %v2985, %v2979
        %v3472 = vpack.c.b16 %v2992, %v2986
        %v3473 = vpack.c.b16 %v2993, %v2987
        %v3474 = vpack.c.b16 %v2994, %v2988
        %v3475 = vpack.c.b16 %v2995, %v2989
        %v3476 = vpack.c.b16 %v2996, %v2990
        %v3477 = vpack.c.b16 %v2997, %v2991
        %v3478 = vpack.c.b16 %v3004, %v2998
        %v3479 = vpack.c.b16 %v3005, %v2999
        %v3480 = vpack.c.b16 %v3006, %v3000
        %v3481 = vpack.c.b16 %v3007, %v3001
        %v3482 = vpack.c.b16 %v3008, %v3002
        %v3483 = vpack.c.b16 %v3009, %v3003
        %v3484 = vpack.c.b16 %v3016, %v3010
        %v3485 = vpack.c.b16 %v3017, %v3011
        %v3486 = vpack.c.b16 %v3018, %v3012
        %v3487 = vpack.c.b16 %v3019, %v3013
        %v3488 = vpack.c.b16 %v3020, %v3014
        %v3489 = vpack.c.b16 %v3021, %v3015
        %v3490 = vpack.c.b16 %v3028, %v3022
        %v3491 = vpack.c.b16 %v3029, %v3023
        %v3492 = vpack.c.b16 %v3030, %v3024
        %v3493 = vpack.c.b16 %v3031, %v3025
        %v3494 = vpack.c.b16 %v3032, %v3026
        %v3495 = vpack.c.b16 %v3033, %v3027
        %v3496 = vpack.c.b16 %v3040, %v3034
        %v3497 = vpack.c.b16 %v3041, %v3035
        %v3498 = vpack.c.b16 %v3042, %v3036
        %v3499 = vpack.c.b16 %v3043, %v3037
        %v3500 = vpack.c.b16 %v3044, %v3038
        %v3501 = vpack.c.b16 %v3045, %v3039
        %v3502 = vpack.c.b16 %v3052, %v3046
        %v3503 = vpack.c.b16 %v3053, %v3047
        %v3504 = vpack.c.b16 %v3054, %v3048
        %v3505 = vpack.c.b16 %v3055, %v3049
        %v3506 = vpack.c.b16 %v3056, %v3050
        %v3507 = vpack.c.b16 %v3057, %v3051
        %v3508 = vpack.c.b16 %v3064, %v3058
        %v3509 = vpack.c.b16 %v3065, %v3059
        %v3510 = vpack.c.b16 %v3066, %v3060
        %v3511 = vpack.c.b16 %v3067, %v3061
        %v3512 = vpack.c.b16 %v3068, %v3062
        %v3513 = vpack.c.b16 %v3069, %v3063
        %v3514 = vpack.c.b16 %v3076, %v3070
        %v3515 = vpack.c.b16 %v3077, %v3071
        %v3516 = vpack.c.b16 %v3078, %v3072
        %v3517 = vpack.c.b16 %v3079, %v3073
        %v3518 = vpack.c.b16 %v3080, %v3074
        %v3519 = vpack.c.b16 %v3081, %v3075
        %v3520 = vpack.c.b16 %v3088, %v3082
        %v3521 = vpack.c.b16 %v3089, %v3083
        %v3522 = vpack.c.b16 %v3090, %v3084
        %v3523 = vpack.c.b16 %v3091, %v3085
        %v3524 = vpack.c.b16 %v3092, %v3086
        %v3525 = vpack.c.b16 %v3093, %v3087
        %v3526 = vpack.c.b16 %v3100, %v3094
        %v3527 = vpack.c.b16 %v3101, %v3095
        %v3528 = vpack.c.b16 %v3102, %v3096
        %v3529 = vpack.c.b16 %v3103, %v3097
        %v3530 = vpack.c.b16 %v3104, %v3098
        %v3531 = vpack.c.b16 %v3105, %v3099
        %v3532 = vpack.c.b16 %v3112, %v3106
        %v3533 = vpack.c.b16 %v3113, %v3107
        %v3534 = vpack.c.b16 %v3114, %v3108
        %v3535 = vpack.c.b16 %v3115, %v3109
        %v3536 = vpack.c.b16 %v3116, %v3110
        %v3537 = vpack.c.b16 %v3117, %v3111
        %v3538 = vpack.c.b16 %v3124, %v3118
        %v3539 = vpack.c.b16 %v3125, %v3119
        %v3540 = vpack.c.b16 %v3126, %v3120
        %v3541 = vpack.c.b16 %v3127, %v3121
        %v3542 = vpack.c.b16 %v3128, %v3122
        %v3543 = vpack.c.b16 %v3129, %v3123
        %v3544 = vpack.c.b16 %v3136, %v3130
        %v3545 = vpack.c.b16 %v3137, %v3131
        %v3546 = vpack.c.b16 %v3138, %v3132
        %v3547 = vpack.c.b16 %v3139, %v3133
        %v3548 = vpack.c.b16 %v3140, %v3134
        %v3549 = vpack.c.b16 %v3141, %v3135
        %v3550 = vpack.c.b16 %v3148, %v3142
        %v3551 = vpack.c.b16 %v3149, %v3143
        %v3552 = vpack.c.b16 %v3150, %v3144
        %v3553 = vpack.c.b16 %v3151, %v3145
        %v3554 = vpack.c.b16 %v3152, %v3146
        %v3555 = vpack.c.b16 %v3153, %v3147
        %v3556 = vpack.c.b16 %v3160, %v3154
        %v3557 = vpack.c.b16 %v3161, %v3155
        %v3558 = vpack.c.b16 %v3162, %v3156
        %v3559 = vpack.c.b16 %v3163, %v3157
        %v3560 = vpack.c.b16 %v3164, %v3158
        %v3561 = vpack.c.b16 %v3165, %v3159
        %v3562 = vpack.c.b16 %v3172, %v3166
        %v3563 = vpack.c.b16 %v3173, %v3167
        %v3564 = vpack.c.b16 %v3174, %v3168
        %v3565 = vpack.c.b16 %v3175, %v3169
        %v3566 = vpack.c.b16 %v3176, %v3170
        %v3567 = vpack.c.b16 %v3177, %v3171
        %v3568 = vpack.c.b16 %v3184, %v3178
        %v3569 = vpack.c.b16 %v3185, %v3179
        %v3570 = vpack.c.b16 %v3186, %v3180
        %v3571 = vpack.c.b16 %v3187, %v3181
        %v3572 = vpack.c.b16 %v3188, %v3182
        %v3573 = vpack.c.b16 %v3189, %v3183
        %v3574 = vpack.c.b16 %v3196, %v3190
        %v3575 = vpack.c.b16 %v3197, %v3191
        %v3576 = vpack.c.b16 %v3198, %v3192
        %v3577 = vpack.c.b16 %v3199, %v3193
        %v3578 = vpack.c.b16 %v3200, %v3194
        %v3579 = vpack.c.b16 %v3201, %v3195
        %v3580 = vpack.c.b16 %v3208, %v3202
        %v3581 = vpack.c.b16 %v3209, %v3203
        %v3582 = vpack.c.b16 %v3210, %v3204
        %v3583 = vpack.c.b16 %v3211, %v3205
        %v3584 = vpack.c.b16 %v3212, %v3206
        %v3585 = vpack.c.b16 %v3213, %v3207
        %v3586 = vpack.c.b16 %v3220, %v3214
        %v3587 = vpack.c.b16 %v3221, %v3215
        %v3588 = vpack.c.b16 %v3222, %v3216
        %v3589 = vpack.c.b16 %v3223, %v3217
        %v3590 = vpack.c.b16 %v3224, %v3218
        %v3591 = vpack.c.b16 %v3225, %v3219
        %v3592 = vpack.c.b16 %v3232, %v3226
        %v3593 = vpack.c.b16 %v3233, %v3227
        %v3594 = vpack.c.b16 %v3234, %v3228
        %v3595 = vpack.c.b16 %v3235, %v3229
        %v3596 = vpack.c.b16 %v3236, %v3230
        %v3597 = vpack.c.b16 %v3237, %v3231
        %v3598 = vpack.c.b16 %v3244, %v3238
        %v3599 = vpack.c.b16 %v3245, %v3239
        %v3600 = vpack.c.b16 %v3246, %v3240
        %v3601 = vpack.c.b16 %v3247, %v3241
        %v3602 = vpack.c.b16 %v3248, %v3242
        %v3603 = vpack.c.b16 %v3249, %v3243
        %v3604 = vpack.c.b16 %v3256, %v3250
        %v3605 = vpack.c.b16 %v3257, %v3251
        %v3606 = vpack.c.b16 %v3258, %v3252
        %v3607 = vpack.c.b16 %v3259, %v3253
        %v3608 = vpack.c.b16 %v3260, %v3254
        %v3609 = vpack.c.b16 %v3261, %v3255
        %v3610 = vpack.c.b16 %v3268, %v3262
        %v3611 = vpack.c.b16 %v3269, %v3263
        %v3612 = vpack.c.b16 %v3270, %v3264
        %v3613 = vpack.c.b16 %v3271, %v3265
        %v3614 = vpack.c.b16 %v3272, %v3266
        %v3615 = vpack.c.b16 %v3273, %v3267
        %v3616 = vpack.c.b16 %v3280, %v3274
        %v3617 = vpack.c.b16 %v3281, %v3275
        %v3618 = vpack.c.b16 %v3282, %v3276
        %v3619 = vpack.c.b16 %v3283, %v3277
        %v3620 = vpack.c.b16 %v3284, %v3278
        %v3621 = vpack.c.b16 %v3285, %v3279
        %v3622 = vpack.c.b16 %v3292, %v3286
        %v3623 = vpack.c.b16 %v3293, %v3287
        %v3624 = vpack.c.b16 %v3294, %v3288
        %v3625 = vpack.c.b16 %v3295, %v3289
        %v3626 = vpack.c.b16 %v3296, %v3290
        %v3627 = vpack.c.b16 %v3297, %v3291
        %v3628 = vpack.c.b16 %v3304, %v3298
        %v3629 = vpack.c.b16 %v3305, %v3299
        %v3630 = vpack.c.b16 %v3306, %v3300
        %v3631 = vpack.c.b16 %v3307, %v3301
        %v3632 = vpack.c.b16 %v3308, %v3302
        %v3633 = vpack.c.b16 %v3309, %v3303
        %v3634 = vpack.c.b16 %v3316, %v3310
        %v3635 = vpack.c.b16 %v3317, %v3311
        %v3636 = vpack.c.b16 %v3318, %v3312
        %v3637 = vpack.c.b16 %v3319, %v3313
        %v3638 = vpack.c.b16 %v3320, %v3314
        %v3639 = vpack.c.b16 %v3321, %v3315
        %v3640 = vpack.c.b16 %v3328, %v3322
        %v3641 = vpack.c.b16 %v3329, %v3323
        %v3642 = vpack.c.b16 %v3330, %v3324
        %v3643 = vpack.c.b16 %v3331, %v3325
        %v3644 = vpack.c.b16 %v3332, %v3326
        %v3645 = vpack.c.b16 %v3333, %v3327
        %v3646 = vpack.c.b16 %v3340, %v3334
        %v3647 = vpack.c.b16 %v3341, %v3335
        %v3648 = vpack.c.b16 %v3342, %v3336
        %v3649 = vpack.c.b16 %v3343, %v3337
        %v3650 = vpack.c.b16 %v3344, %v3338
        %v3651 = vpack.c.b16 %v3345, %v3339
        %v3652 = vpack.c.b16 %v3352, %v3346
        %v3653 = vpack.c.b16 %v3353, %v3347
        %v3654 = vpack.c.b16 %v3354, %v3348
        %v3655 = vpack.c.b16 %v3355, %v3349
        %v3656 = vpack.c.b16 %v3356, %v3350
        %v3657 = vpack.c.b16 %v3357, %v3351
        %v3658 = vpack.c.b16 %v3364, %v3358
        %v3659 = vpack.c.b16 %v3365, %v3359
        %v3660 = vpack.c.b16 %v3366, %v3360
        %v3661 = vpack.c.b16 %v3367, %v3361
        %v3662 = vpack.c.b16 %v3368, %v3362
        %v3663 = vpack.c.b16 %v3369, %v3363
        %v3664 = vpack.c.b16 %v3376, %v3370
        %v3665 = vpack.c.b16 %v3377, %v3371
        %v3666 = vpack.c.b16 %v3378, %v3372
        %v3667 = vpack.c.b16 %v3379, %v3373
        %v3668 = vpack.c.b16 %v3380, %v3374
        %v3669 = vpack.c.b16 %v3381, %v3375
        %3958 = vmatprep.subr.bf16.mxu0 %v3383
        %3959 = vmatpush1.bf16.msra.mxu0 %v3382
        %3960 = vmatprep.subr.bf16.mxu0 %v3389
        %3961 = vmatpush1.bf16.msra.mxu0 %v3388
        %3962 = vmatprep.subr.bf16.mxu0 %v3395
        %3963 = vmatpush1.bf16.msra.mxu0 %v3394
        %3964 = vmatprep.subr.bf16.mxu0 %v3401
        %3965 = vmatpush1.bf16.msra.mxu0 %v3400
        %3966 = vmatprep.subr.bf16.mxu0 %v3407
        %3967 = vmatpush1.bf16.msra.mxu0 %v3406
        %3968 = vmatprep.subr.bf16.mxu0 %v3413
        %3969 = vmatpush1.bf16.msra.mxu0 %v3412
        %3970 = vmatprep.subr.bf16.mxu0 %v3419
        %3971 = vmatpush1.bf16.msra.mxu0 %v3418
        %3972 = vmatprep.subr.bf16.mxu0 %v3425
        %3973 = vmatpush1.bf16.msra.mxu0 %v3424
        %3974 = vmatprep.subr.bf16.mxu0 %v3431
        %3975 = vmatpush1.bf16.msra.mxu0 %v3430
        %3976 = vmatprep.subr.bf16.mxu0 %v3437
        %3977 = vmatpush1.bf16.msra.mxu0 %v3436
        %3978 = vmatprep.subr.bf16.mxu0 %v3443
        %3979 = vmatpush1.bf16.msra.mxu0 %v3442
        %3980 = vmatprep.subr.bf16.mxu0 %v3449
        %3981 = vmatpush1.bf16.msra.mxu0 %v3448
        %3982 = vmatprep.subr.bf16.mxu0 %v3455
        %3983 = vmatpush1.bf16.msra.mxu0 %v3454
        %3984 = vmatprep.subr.bf16.mxu0 %v3461
        %3985 = vmatpush1.bf16.msra.mxu0 %v3460
        %3986 = vmatprep.subr.bf16.mxu0 %v3467
        %3987 = vmatpush1.bf16.msra.mxu0 %v3466
        %3988 = vmatprep.subr.bf16.mxu0 %v3473
        %3989 = vmatpush1.bf16.msra.mxu0 %v3472
        %3990 = vmatprep.mubr.bf16.mxu0 %v2135
        %3991 = vmatmul.mubr.bf16.gmra.mrb[0].mxu0 %v2134
        %v3992 = vpop.f32.mrb[0].mxu0
        %v3993 = vadd.f32 0.0, %v3992
        %v3994 = vpop.f32.mrb[0].mxu0
        %v3995 = vadd.f32 0.0, %v3994
        %v3996 = vpop.f32.mrb[0].mxu0
        %v3997 = vadd.f32 0.0, %v3996
        %v3998 = vpop.f32.mrb[0].mxu0
        %v3999 = vadd.f32 0.0, %v3998
        %4000 = vmatprep.mubr.bf16.mxu0 %v2141
        %4001 = vmatmul.mubr.bf16.gmra.mrb[0].mxu0 %v2140
        %v4002 = vpop.f32.mrb[0].mxu0
        %v4003 = vadd.f32 0.0, %v4002
        %v4004 = vpop.f32.mrb[0].mxu0
        %v4005 = vadd.f32 0.0, %v4004
        %v4006 = vpop.f32.mrb[0].mxu0
        %v4007 = vadd.f32 0.0, %v4006
        %v4008 = vpop.f32.mrb[0].mxu0
        %v4009 = vadd.f32 0.0, %v4008
        %4010 = vmatprep.mubr.bf16.mxu0 %v2147
        %4011 = vmatmul.mubr.bf16.gmra.mrb[0].mxu0 %v2146
        %v4012 = vpop.f32.mrb[0].mxu0
        %v4013 = vadd.f32 0.0, %v4012
        %v4014 = vpop.f32.mrb[0].mxu0
        %v4015 = vadd.f32 0.0, %v4014
        %v4016 = vpop.f32.mrb[0].mxu0
        %v4017 = vadd.f32 0.0, %v4016
        %v4018 = vpop.f32.mrb[0].mxu0
        %v4019 = vadd.f32 0.0, %v4018
        %4020 = vmatprep.mubr.bf16.mxu0 %v2153
        %4021 = vmatmul.mubr.bf16.gmra.mrb[0].mxu0 %v2152
        %v4022 = vpop.f32.mrb[0].mxu0
        %v4023 = vadd.f32 0.0, %v4022
        %v4024 = vpop.f32.mrb[0].mxu0
        %v4025 = vadd.f32 0.0, %v4024
        %v4026 = vpop.f32.mrb[0].mxu0
        %v4027 = vadd.f32 0.0, %v4026
        %v4028 = vpop.f32.mrb[0].mxu0
        %v4029 = vadd.f32 0.0, %v4028
        %4030 = vmatprep.mubr.bf16.mxu0 %v2159
        %4031 = vmatmul.mubr.bf16.gmra.mrb[0].mxu0 %v2158
        %v4032 = vpop.f32.mrb[0].mxu0
        %v4033 = vadd.f32 0.0, %v4032
        %v4034 = vpop.f32.mrb[0].mxu0
        %v4035 = vadd.f32 0.0, %v4034
        %v4036 = vpop.f32.mrb[0].mxu0
        %v4037 = vadd.f32 0.0, %v4036
        %v4038 = vpop.f32.mrb[0].mxu0
        %v4039 = vadd.f32 0.0, %v4038
        %4040 = vmatprep.mubr.bf16.mxu0 %v2165
        %4041 = vmatmul.mubr.bf16.gmra.mrb[0].mxu0 %v2164
        %v4042 = vpop.f32.mrb[0].mxu0
        %v4043 = vadd.f32 0.0, %v4042
        %v4044 = vpop.f32.mrb[0].mxu0
        %v4045 = vadd.f32 0.0, %v4044
        %v4046 = vpop.f32.mrb[0].mxu0
        %v4047 = vadd.f32 0.0, %v4046
        %v4048 = vpop.f32.mrb[0].mxu0
        %v4049 = vadd.f32 0.0, %v4048
        %4050 = vmatprep.mubr.bf16.mxu0 %v2171
        %4051 = vmatmul.mubr.bf16.gmra.mrb[0].mxu0 %v2170
        %v4052 = vpop.f32.mrb[0].mxu0
        %v4053 = vadd.f32 0.0, %v4052
        %v4054 = vpop.f32.mrb[0].mxu0
        %v4055 = vadd.f32 0.0, %v4054
        %v4056 = vpop.f32.mrb[0].mxu0
        %v4057 = vadd.f32 0.0, %v4056
        %v4058 = vpop.f32.mrb[0].mxu0
        %v4059 = vadd.f32 0.0, %v4058
        %4060 = vmatprep.mubr.bf16.mxu0 %v2177
        %4061 = vmatmul.mubr.bf16.gmra.mrb[0].mxu0 %v2176
        %v4062 = vpop.f32.mrb[0].mxu0
        %v4063 = vadd.f32 0.0, %v4062
        %v4064 = vpop.f32.mrb[0].mxu0
        %v4065 = vadd.f32 0.0, %v4064
        %v4066 = vpop.f32.mrb[0].mxu0
        %v4067 = vadd.f32 0.0, %v4066
        %v4068 = vpop.f32.mrb[0].mxu0
        %v4069 = vadd.f32 0.0, %v4068
        %4070 = vmatprep.mubr.bf16.mxu0 %v2183
        %4071 = vmatmul.mubr.bf16.gmra.mrb[0].mxu0 %v2182
        %v4072 = vpop.f32.mrb[0].mxu0
        %v4073 = vadd.f32 0.0, %v4072
        %v4074 = vpop.f32.mrb[0].mxu0
        %v4075 = vadd.f32 0.0, %v4074
        %v4076 = vpop.f32.mrb[0].mxu0
        %v4077 = vadd.f32 0.0, %v4076
        %v4078 = vpop.f32.mrb[0].mxu0
        %v4079 = vadd.f32 0.0, %v4078
        %4080 = vmatprep.mubr.bf16.mxu0 %v2189
        %4081 = vmatmul.mubr.bf16.gmra.mrb[0].mxu0 %v2188
        %v4082 = vpop.f32.mrb[0].mxu0
        %v4083 = vadd.f32 0.0, %v4082
        %v4084 = vpop.f32.mrb[0].mxu0
        %v4085 = vadd.f32 0.0, %v4084
        %v4086 = vpop.f32.mrb[0].mxu0
        %v4087 = vadd.f32 0.0, %v4086
        %v4088 = vpop.f32.mrb[0].mxu0
        %v4089 = vadd.f32 0.0, %v4088
        %4090 = vmatprep.mubr.bf16.mxu0 %v2195
        %4091 = vmatmul.mubr.bf16.gmra.mrb[0].mxu0 %v2194
        %v4092 = vpop.f32.mrb[0].mxu0
        %v4093 = vadd.f32 0.0, %v4092
        %v4094 = vpop.f32.mrb[0].mxu0
        %v4095 = vadd.f32 0.0, %v4094
        %v4096 = vpop.f32.mrb[0].mxu0
        %v4097 = vadd.f32 0.0, %v4096
        %v4098 = vpop.f32.mrb[0].mxu0
        %v4099 = vadd.f32 0.0, %v4098
        %4100 = vmatprep.mubr.bf16.mxu0 %v2201
        %4101 = vmatmul.mubr.bf16.gmra.mrb[0].mxu0 %v2200
        %v4102 = vpop.f32.mrb[0].mxu0
        %v4103 = vadd.f32 0.0, %v4102
        %v4104 = vpop.f32.mrb[0].mxu0
        %v4105 = vadd.f32 0.0, %v4104
        %v4106 = vpop.f32.mrb[0].mxu0
        %v4107 = vadd.f32 0.0, %v4106
        %v4108 = vpop.f32.mrb[0].mxu0
        %v4109 = vadd.f32 0.0, %v4108
        %4110 = vmatprep.mubr.bf16.mxu0 %v2207
        %4111 = vmatmul.mubr.bf16.gmra.mrb[0].mxu0 %v2206
        %v4112 = vpop.f32.mrb[0].mxu0
        %v4113 = vadd.f32 0.0, %v4112
        %v4114 = vpop.f32.mrb[0].mxu0
        %v4115 = vadd.f32 0.0, %v4114
        %v4116 = vpop.f32.mrb[0].mxu0
        %v4117 = vadd.f32 0.0, %v4116
        %v4118 = vpop.f32.mrb[0].mxu0
        %v4119 = vadd.f32 0.0, %v4118
        %4120 = vmatprep.mubr.bf16.mxu0 %v2213
        %4121 = vmatmul.mubr.bf16.gmra.mrb[0].mxu0 %v2212
        %v4122 = vpop.f32.mrb[0].mxu0
        %v4123 = vadd.f32 0.0, %v4122
        %v4124 = vpop.f32.mrb[0].mxu0
        %v4125 = vadd.f32 0.0, %v4124
        %v4126 = vpop.f32.mrb[0].mxu0
        %v4127 = vadd.f32 0.0, %v4126
        %v4128 = vpop.f32.mrb[0].mxu0
        %v4129 = vadd.f32 0.0, %v4128
        %4130 = vmatprep.mubr.bf16.mxu0 %v2219
        %4131 = vmatmul.mubr.bf16.gmra.mrb[0].mxu0 %v2218
        %v4132 = vpop.f32.mrb[0].mxu0
        %v4133 = vadd.f32 0.0, %v4132
        %v4134 = vpop.f32.mrb[0].mxu0
        %v4135 = vadd.f32 0.0, %v4134
        %v4136 = vpop.f32.mrb[0].mxu0
        %v4137 = vadd.f32 0.0, %v4136
        %v4138 = vpop.f32.mrb[0].mxu0
        %v4139 = vadd.f32 0.0, %v4138
        %4140 = vmatprep.mubr.bf16.mxu0 %v2225
        %4141 = vmatmul.mubr.bf16.gmra.mrb[0].mxu0 %v2224
        %v4142 = vpop.f32.mrb[0].mxu0
        %v4143 = vadd.f32 0.0, %v4142
        %v4144 = vpop.f32.mrb[0].mxu0
        %v4145 = vadd.f32 0.0, %v4144
        %v4146 = vpop.f32.mrb[0].mxu0
        %v4147 = vadd.f32 0.0, %v4146
        %v4148 = vpop.f32.mrb[0].mxu0
        %v4149 = vadd.f32 0.0, %v4148
        %4150 = vdwg.mxu0
        %4151 = vmatprep.subr.bf16.mxu0 %v3479
        %4152 = vmatpush1.bf16.msra.mxu0 %v3478
        %4153 = vmatprep.subr.bf16.mxu0 %v3485
        %4154 = vmatpush1.bf16.msra.mxu0 %v3484
        %4155 = vmatprep.subr.bf16.mxu0 %v3491
        %4156 = vmatpush1.bf16.msra.mxu0 %v3490
        %4157 = vmatprep.subr.bf16.mxu0 %v3497
        %4158 = vmatpush1.bf16.msra.mxu0 %v3496
        %4159 = vmatprep.subr.bf16.mxu0 %v3503
        %4160 = vmatpush1.bf16.msra.mxu0 %v3502
        %4161 = vmatprep.subr.bf16.mxu0 %v3509
        %4162 = vmatpush1.bf16.msra.mxu0 %v3508
        %4163 = vmatprep.subr.bf16.mxu0 %v3515
        %4164 = vmatpush1.bf16.msra.mxu0 %v3514
        %4165 = vmatprep.subr.bf16.mxu0 %v3521
        %4166 = vmatpush1.bf16.msra.mxu0 %v3520
        %4167 = vmatprep.subr.bf16.mxu0 %v3527
        %4168 = vmatpush1.bf16.msra.mxu0 %v3526
        %4169 = vmatprep.subr.bf16.mxu0 %v3533
        %4170 = vmatpush1.bf16.msra.mxu0 %v3532
        %4171 = vmatprep.subr.bf16.mxu0 %v3539
        %4172 = vmatpush1.bf16.msra.mxu0 %v3538
        %4173 = vmatprep.subr.bf16.mxu0 %v3545
        %4174 = vmatpush1.bf16.msra.mxu0 %v3544
        %4175 = vmatprep.subr.bf16.mxu0 %v3551
        %4176 = vmatpush1.bf16.msra.mxu0 %v3550
        %4177 = vmatprep.subr.bf16.mxu0 %v3557
        %4178 = vmatpush1.bf16.msra.mxu0 %v3556
        %4179 = vmatprep.subr.bf16.mxu0 %v3563
        %4180 = vmatpush1.bf16.msra.mxu0 %v3562
        %4181 = vmatprep.subr.bf16.mxu0 %v3569
        %4182 = vmatpush1.bf16.msra.mxu0 %v3568
        %4183 = vmatprep.mubr.bf16.mxu0 %v2137
        %4184 = vmatmul.mubr.bf16.gmra.mrb[0].mxu0 %v2136
        %v4185 = vpop.f32.mrb[0].mxu0
        %v4186 = vadd.f32 %v3993, %v4185
        %v4187 = vpop.f32.mrb[0].mxu0
        %v4188 = vadd.f32 %v3995, %v4187
        %v4189 = vpop.f32.mrb[0].mxu0
        %v4190 = vadd.f32 %v3997, %v4189
        %v4191 = vpop.f32.mrb[0].mxu0
        %v4192 = vadd.f32 %v3999, %v4191
        %4193 = vmatprep.mubr.bf16.mxu0 %v2143
        %4194 = vmatmul.mubr.bf16.gmra.mrb[0].mxu0 %v2142
        %v4195 = vpop.f32.mrb[0].mxu0
        %v4196 = vadd.f32 %v4003, %v4195
        %v4197 = vpop.f32.mrb[0].mxu0
        %v4198 = vadd.f32 %v4005, %v4197
        %v4199 = vpop.f32.mrb[0].mxu0
        %v4200 = vadd.f32 %v4007, %v4199
        %v4201 = vpop.f32.mrb[0].mxu0
        %v4202 = vadd.f32 %v4009, %v4201
        %4203 = vmatprep.mubr.bf16.mxu0 %v2149
        %4204 = vmatmul.mubr.bf16.gmra.mrb[0].mxu0 %v2148
        %v4205 = vpop.f32.mrb[0].mxu0
        %v4206 = vadd.f32 %v4013, %v4205
        %v4207 = vpop.f32.mrb[0].mxu0
        %v4208 = vadd.f32 %v4015, %v4207
        %v4209 = vpop.f32.mrb[0].mxu0
        %v4210 = vadd.f32 %v4017, %v4209
        %v4211 = vpop.f32.mrb[0].mxu0
        %v4212 = vadd.f32 %v4019, %v4211
        %4213 = vmatprep.mubr.bf16.mxu0 %v2155
        %4214 = vmatmul.mubr.bf16.gmra.mrb[0].mxu0 %v2154
        %v4215 = vpop.f32.mrb[0].mxu0
        %v4216 = vadd.f32 %v4023, %v4215
        %v4217 = vpop.f32.mrb[0].mxu0
        %v4218 = vadd.f32 %v4025, %v4217
        %v4219 = vpop.f32.mrb[0].mxu0
        %v4220 = vadd.f32 %v4027, %v4219
        %v4221 = vpop.f32.mrb[0].mxu0
        %v4222 = vadd.f32 %v4029, %v4221
        %4223 = vmatprep.mubr.bf16.mxu0 %v2161
        %4224 = vmatmul.mubr.bf16.gmra.mrb[0].mxu0 %v2160
        %v4225 = vpop.f32.mrb[0].mxu0
        %v4226 = vadd.f32 %v4033, %v4225
        %v4227 = vpop.f32.mrb[0].mxu0
        %v4228 = vadd.f32 %v4035, %v4227
        %v4229 = vpop.f32.mrb[0].mxu0
        %v4230 = vadd.f32 %v4037, %v4229
        %v4231 = vpop.f32.mrb[0].mxu0
        %v4232 = vadd.f32 %v4039, %v4231
        %4233 = vmatprep.mubr.bf16.mxu0 %v2167
        %4234 = vmatmul.mubr.bf16.gmra.mrb[0].mxu0 %v2166
        %v4235 = vpop.f32.mrb[0].mxu0
        %v4236 = vadd.f32 %v4043, %v4235
        %v4237 = vpop.f32.mrb[0].mxu0
        %v4238 = vadd.f32 %v4045, %v4237
        %v4239 = vpop.f32.mrb[0].mxu0
        %v4240 = vadd.f32 %v4047, %v4239
        %v4241 = vpop.f32.mrb[0].mxu0
        %v4242 = vadd.f32 %v4049, %v4241
        %4243 = vmatprep.mubr.bf16.mxu0 %v2173
        %4244 = vmatmul.mubr.bf16.gmra.mrb[0].mxu0 %v2172
        %v4245 = vpop.f32.mrb[0].mxu0
        %v4246 = vadd.f32 %v4053, %v4245
        %v4247 = vpop.f32.mrb[0].mxu0
        %v4248 = vadd.f32 %v4055, %v4247
        %v4249 = vpop.f32.mrb[0].mxu0
        %v4250 = vadd.f32 %v4057, %v4249
        %v4251 = vpop.f32.mrb[0].mxu0
        %v4252 = vadd.f32 %v4059, %v4251
        %4253 = vmatprep.mubr.bf16.mxu0 %v2179
        %4254 = vmatmul.mubr.bf16.gmra.mrb[0].mxu0 %v2178
        %v4255 = vpop.f32.mrb[0].mxu0
        %v4256 = vadd.f32 %v4063, %v4255
        %v4257 = vpop.f32.mrb[0].mxu0
        %v4258 = vadd.f32 %v4065, %v4257
        %v4259 = vpop.f32.mrb[0].mxu0
        %v4260 = vadd.f32 %v4067, %v4259
        %v4261 = vpop.f32.mrb[0].mxu0
        %v4262 = vadd.f32 %v4069, %v4261
        %4263 = vmatprep.mubr.bf16.mxu0 %v2185
        %4264 = vmatmul.mubr.bf16.gmra.mrb[0].mxu0 %v2184
        %v4265 = vpop.f32.mrb[0].mxu0
        %v4266 = vadd.f32 %v4073, %v4265
        %v4267 = vpop.f32.mrb[0].mxu0
        %v4268 = vadd.f32 %v4075, %v4267
        %v4269 = vpop.f32.mrb[0].mxu0
        %v4270 = vadd.f32 %v4077, %v4269
        %v4271 = vpop.f32.mrb[0].mxu0
        %v4272 = vadd.f32 %v4079, %v4271
        %4273 = vmatprep.mubr.bf16.mxu0 %v2191
        %4274 = vmatmul.mubr.bf16.gmra.mrb[0].mxu0 %v2190
        %v4275 = vpop.f32.mrb[0].mxu0
        %v4276 = vadd.f32 %v4083, %v4275
        %v4277 = vpop.f32.mrb[0].mxu0
        %v4278 = vadd.f32 %v4085, %v4277
        %v4279 = vpop.f32.mrb[0].mxu0
        %v4280 = vadd.f32 %v4087, %v4279
        %v4281 = vpop.f32.mrb[0].mxu0
        %v4282 = vadd.f32 %v4089, %v4281
        %4283 = vmatprep.mubr.bf16.mxu0 %v2197
        %4284 = vmatmul.mubr.bf16.gmra.mrb[0].mxu0 %v2196
        %v4285 = vpop.f32.mrb[0].mxu0
        %v4286 = vadd.f32 %v4093, %v4285
        %v4287 = vpop.f32.mrb[0].mxu0
        %v4288 = vadd.f32 %v4095, %v4287
        %v4289 = vpop.f32.mrb[0].mxu0
        %v4290 = vadd.f32 %v4097, %v4289
        %v4291 = vpop.f32.mrb[0].mxu0
        %v4292 = vadd.f32 %v4099, %v4291
        %4293 = vmatprep.mubr.bf16.mxu0 %v2203
        %4294 = vmatmul.mubr.bf16.gmra.mrb[0].mxu0 %v2202
        %v4295 = vpop.f32.mrb[0].mxu0
        %v4296 = vadd.f32 %v4103, %v4295
        %v4297 = vpop.f32.mrb[0].mxu0
        %v4298 = vadd.f32 %v4105, %v4297
        %v4299 = vpop.f32.mrb[0].mxu0
        %v4300 = vadd.f32 %v4107, %v4299
        %v4301 = vpop.f32.mrb[0].mxu0
        %v4302 = vadd.f32 %v4109, %v4301
        %4303 = vmatprep.mubr.bf16.mxu0 %v2209
        %4304 = vmatmul.mubr.bf16.gmra.mrb[0].mxu0 %v2208
        %v4305 = vpop.f32.mrb[0].mxu0
        %v4306 = vadd.f32 %v4113, %v4305
        %v4307 = vpop.f32.mrb[0].mxu0
        %v4308 = vadd.f32 %v4115, %v4307
        %v4309 = vpop.f32.mrb[0].mxu0
        %v4310 = vadd.f32 %v4117, %v4309
        %v4311 = vpop.f32.mrb[0].mxu0
        %v4312 = vadd.f32 %v4119, %v4311
        %4313 = vmatprep.mubr.bf16.mxu0 %v2215
        %4314 = vmatmul.mubr.bf16.gmra.mrb[0].mxu0 %v2214
        %v4315 = vpop.f32.mrb[0].mxu0
        %v4316 = vadd.f32 %v4123, %v4315
        %v4317 = vpop.f32.mrb[0].mxu0
        %v4318 = vadd.f32 %v4125, %v4317
        %v4319 = vpop.f32.mrb[0].mxu0
        %v4320 = vadd.f32 %v4127, %v4319
        %v4321 = vpop.f32.mrb[0].mxu0
        %v4322 = vadd.f32 %v4129, %v4321
        %4323 = vmatprep.mubr.bf16.mxu0 %v2221
        %4324 = vmatmul.mubr.bf16.gmra.mrb[0].mxu0 %v2220
        %v4325 = vpop.f32.mrb[0].mxu0
        %v4326 = vadd.f32 %v4133, %v4325
        %v4327 = vpop.f32.mrb[0].mxu0
        %v4328 = vadd.f32 %v4135, %v4327
        %v4329 = vpop.f32.mrb[0].mxu0
        %v4330 = vadd.f32 %v4137, %v4329
        %v4331 = vpop.f32.mrb[0].mxu0
        %v4332 = vadd.f32 %v4139, %v4331
        %4333 = vmatprep.mubr.bf16.mxu0 %v2227
        %4334 = vmatmul.mubr.bf16.gmra.mrb[0].mxu0 %v2226
        %v4335 = vpop.f32.mrb[0].mxu0
        %v4336 = vadd.f32 %v4143, %v4335
        %v4337 = vpop.f32.mrb[0].mxu0
        %v4338 = vadd.f32 %v4145, %v4337
        %v4339 = vpop.f32.mrb[0].mxu0
        %v4340 = vadd.f32 %v4147, %v4339
        %v4341 = vpop.f32.mrb[0].mxu0
        %v4342 = vadd.f32 %v4149, %v4341
        %4343 = vdwg.mxu0
        %4344 = vmatprep.subr.bf16.mxu0 %v3575
        %4345 = vmatpush1.bf16.msra.mxu0 %v3574
        %4346 = vmatprep.subr.bf16.mxu0 %v3581
        %4347 = vmatpush1.bf16.msra.mxu0 %v3580
        %4348 = vmatprep.subr.bf16.mxu0 %v3587
        %4349 = vmatpush1.bf16.msra.mxu0 %v3586
        %4350 = vmatprep.subr.bf16.mxu0 %v3593
        %4351 = vmatpush1.bf16.msra.mxu0 %v3592
        %4352 = vmatprep.subr.bf16.mxu0 %v3599
        %4353 = vmatpush1.bf16.msra.mxu0 %v3598
        %4354 = vmatprep.subr.bf16.mxu0 %v3605
        %4355 = vmatpush1.bf16.msra.mxu0 %v3604
        %4356 = vmatprep.subr.bf16.mxu0 %v3611
        %4357 = vmatpush1.bf16.msra.mxu0 %v3610
        %4358 = vmatprep.subr.bf16.mxu0 %v3617
        %4359 = vmatpush1.bf16.msra.mxu0 %v3616
        %4360 = vmatprep.subr.bf16.mxu0 %v3623
        %4361 = vmatpush1.bf16.msra.mxu0 %v3622
        %4362 = vmatprep.subr.bf16.mxu0 %v3629
        %4363 = vmatpush1.bf16.msra.mxu0 %v3628
        %4364 = vmatprep.subr.bf16.mxu0 %v3635
        %4365 = vmatpush1.bf16.msra.mxu0 %v3634
        %4366 = vmatprep.subr.bf16.mxu0 %v3641
        %4367 = vmatpush1.bf16.msra.mxu0 %v3640
        %4368 = vmatprep.subr.bf16.mxu0 %v3647
        %4369 = vmatpush1.bf16.msra.mxu0 %v3646
        %4370 = vmatprep.subr.bf16.mxu0 %v3653
        %4371 = vmatpush1.bf16.msra.mxu0 %v3652
        %4372 = vmatprep.subr.bf16.mxu0 %v3659
        %4373 = vmatpush1.bf16.msra.mxu0 %v3658
        %4374 = vmatprep.subr.bf16.mxu0 %v3665
        %4375 = vmatpush1.bf16.msra.mxu0 %v3664
        %4376 = vmatprep.mubr.bf16.mxu0 %v2139
        %4377 = vmatmul.mubr.bf16.gmra.mrb[0].mxu0 %v2138
        %v4378 = vpop.f32.mrb[0].mxu0
        %v4379 = vadd.f32 %v4186, %v4378
        %v4380 = vpop.f32.mrb[0].mxu0
        %v4381 = vadd.f32 %v4188, %v4380
        %v4382 = vpop.f32.mrb[0].mxu0
        %v4383 = vadd.f32 %v4190, %v4382
        %v4384 = vpop.f32.mrb[0].mxu0
        %v4385 = vadd.f32 %v4192, %v4384
        %4386 = vmatprep.mubr.bf16.mxu0 %v2145
        %4387 = vmatmul.mubr.bf16.gmra.mrb[0].mxu0 %v2144
        %v4388 = vpop.f32.mrb[0].mxu0
        %v4389 = vadd.f32 %v4196, %v4388
        %v4390 = vpop.f32.mrb[0].mxu0
        %v4391 = vadd.f32 %v4198, %v4390
        %v4392 = vpop.f32.mrb[0].mxu0
        %v4393 = vadd.f32 %v4200, %v4392
        %v4394 = vpop.f32.mrb[0].mxu0
        %v4395 = vadd.f32 %v4202, %v4394
        %4396 = vmatprep.mubr.bf16.mxu0 %v2151
        %4397 = vmatmul.mubr.bf16.gmra.mrb[0].mxu0 %v2150
        %v4398 = vpop.f32.mrb[0].mxu0
        %v4399 = vadd.f32 %v4206, %v4398
        %v4400 = vpop.f32.mrb[0].mxu0
        %v4401 = vadd.f32 %v4208, %v4400
        %v4402 = vpop.f32.mrb[0].mxu0
        %v4403 = vadd.f32 %v4210, %v4402
        %v4404 = vpop.f32.mrb[0].mxu0
        %v4405 = vadd.f32 %v4212, %v4404
        %4406 = vmatprep.mubr.bf16.mxu0 %v2157
        %4407 = vmatmul.mubr.bf16.gmra.mrb[0].mxu0 %v2156
        %v4408 = vpop.f32.mrb[0].mxu0
        %v4409 = vadd.f32 %v4216, %v4408
        %v4410 = vpop.f32.mrb[0].mxu0
        %v4411 = vadd.f32 %v4218, %v4410
        %v4412 = vpop.f32.mrb[0].mxu0
        %v4413 = vadd.f32 %v4220, %v4412
        %v4414 = vpop.f32.mrb[0].mxu0
        %v4415 = vadd.f32 %v4222, %v4414
        %4416 = vmatprep.mubr.bf16.mxu0 %v2163
        %4417 = vmatmul.mubr.bf16.gmra.mrb[0].mxu0 %v2162
        %v4418 = vpop.f32.mrb[0].mxu0
        %v4419 = vadd.f32 %v4226, %v4418
        %v4420 = vpop.f32.mrb[0].mxu0
        %v4421 = vadd.f32 %v4228, %v4420
        %v4422 = vpop.f32.mrb[0].mxu0
        %v4423 = vadd.f32 %v4230, %v4422
        %v4424 = vpop.f32.mrb[0].mxu0
        %v4425 = vadd.f32 %v4232, %v4424
        %4426 = vmatprep.mubr.bf16.mxu0 %v2169
        %4427 = vmatmul.mubr.bf16.gmra.mrb[0].mxu0 %v2168
        %v4428 = vpop.f32.mrb[0].mxu0
        %v4429 = vadd.f32 %v4236, %v4428
        %v4430 = vpop.f32.mrb[0].mxu0
        %v4431 = vadd.f32 %v4238, %v4430
        %v4432 = vpop.f32.mrb[0].mxu0
        %v4433 = vadd.f32 %v4240, %v4432
        %v4434 = vpop.f32.mrb[0].mxu0
        %v4435 = vadd.f32 %v4242, %v4434
        %4436 = vmatprep.mubr.bf16.mxu0 %v2175
        %4437 = vmatmul.mubr.bf16.gmra.mrb[0].mxu0 %v2174
        %v4438 = vpop.f32.mrb[0].mxu0
        %v4439 = vadd.f32 %v4246, %v4438
        %v4440 = vpop.f32.mrb[0].mxu0
        %v4441 = vadd.f32 %v4248, %v4440
        %v4442 = vpop.f32.mrb[0].mxu0
        %v4443 = vadd.f32 %v4250, %v4442
        %v4444 = vpop.f32.mrb[0].mxu0
        %v4445 = vadd.f32 %v4252, %v4444
        %4446 = vmatprep.mubr.bf16.mxu0 %v2181
        %4447 = vmatmul.mubr.bf16.gmra.mrb[0].mxu0 %v2180
        %v4448 = vpop.f32.mrb[0].mxu0
        %v4449 = vadd.f32 %v4256, %v4448
        %v4450 = vpop.f32.mrb[0].mxu0
        %v4451 = vadd.f32 %v4258, %v4450
        %v4452 = vpop.f32.mrb[0].mxu0
        %v4453 = vadd.f32 %v4260, %v4452
        %v4454 = vpop.f32.mrb[0].mxu0
        %v4455 = vadd.f32 %v4262, %v4454
        %4456 = vmatprep.mubr.bf16.mxu0 %v2187
        %4457 = vmatmul.mubr.bf16.gmra.mrb[0].mxu0 %v2186
        %v4458 = vpop.f32.mrb[0].mxu0
        %v4459 = vadd.f32 %v4266, %v4458
        %v4460 = vpop.f32.mrb[0].mxu0
        %v4461 = vadd.f32 %v4268, %v4460
        %v4462 = vpop.f32.mrb[0].mxu0
        %v4463 = vadd.f32 %v4270, %v4462
        %v4464 = vpop.f32.mrb[0].mxu0
        %v4465 = vadd.f32 %v4272, %v4464
        %4466 = vmatprep.mubr.bf16.mxu0 %v2193
        %4467 = vmatmul.mubr.bf16.gmra.mrb[0].mxu0 %v2192
        %v4468 = vpop.f32.mrb[0].mxu0
        %v4469 = vadd.f32 %v4276, %v4468
        %v4470 = vpop.f32.mrb[0].mxu0
        %v4471 = vadd.f32 %v4278, %v4470
        %v4472 = vpop.f32.mrb[0].mxu0
        %v4473 = vadd.f32 %v4280, %v4472
        %v4474 = vpop.f32.mrb[0].mxu0
        %v4475 = vadd.f32 %v4282, %v4474
        %4476 = vmatprep.mubr.bf16.mxu0 %v2199
        %4477 = vmatmul.mubr.bf16.gmra.mrb[0].mxu0 %v2198
        %v4478 = vpop.f32.mrb[0].mxu0
        %v4479 = vadd.f32 %v4286, %v4478
        %v4480 = vpop.f32.mrb[0].mxu0
        %v4481 = vadd.f32 %v4288, %v4480
        %v4482 = vpop.f32.mrb[0].mxu0
        %v4483 = vadd.f32 %v4290, %v4482
        %v4484 = vpop.f32.mrb[0].mxu0
        %v4485 = vadd.f32 %v4292, %v4484
        %4486 = vmatprep.mubr.bf16.mxu0 %v2205
        %4487 = vmatmul.mubr.bf16.gmra.mrb[0].mxu0 %v2204
        %v4488 = vpop.f32.mrb[0].mxu0
        %v4489 = vadd.f32 %v4296, %v4488
        %v4490 = vpop.f32.mrb[0].mxu0
        %v4491 = vadd.f32 %v4298, %v4490
        %v4492 = vpop.f32.mrb[0].mxu0
        %v4493 = vadd.f32 %v4300, %v4492
        %v4494 = vpop.f32.mrb[0].mxu0
        %v4495 = vadd.f32 %v4302, %v4494
        %4496 = vmatprep.mubr.bf16.mxu0 %v2211
        %4497 = vmatmul.mubr.bf16.gmra.mrb[0].mxu0 %v2210
        %v4498 = vpop.f32.mrb[0].mxu0
        %v4499 = vadd.f32 %v4306, %v4498
        %v4500 = vpop.f32.mrb[0].mxu0
        %v4501 = vadd.f32 %v4308, %v4500
        %v4502 = vpop.f32.mrb[0].mxu0
        %v4503 = vadd.f32 %v4310, %v4502
        %v4504 = vpop.f32.mrb[0].mxu0
        %v4505 = vadd.f32 %v4312, %v4504
        %4506 = vmatprep.mubr.bf16.mxu0 %v2217
        %4507 = vmatmul.mubr.bf16.gmra.mrb[0].mxu0 %v2216
        %v4508 = vpop.f32.mrb[0].mxu0
        %v4509 = vadd.f32 %v4316, %v4508
        %v4510 = vpop.f32.mrb[0].mxu0
        %v4511 = vadd.f32 %v4318, %v4510
        %v4512 = vpop.f32.mrb[0].mxu0
        %v4513 = vadd.f32 %v4320, %v4512
        %v4514 = vpop.f32.mrb[0].mxu0
        %v4515 = vadd.f32 %v4322, %v4514
        %4516 = vmatprep.mubr.bf16.mxu0 %v2223
        %4517 = vmatmul.mubr.bf16.gmra.mrb[0].mxu0 %v2222
        %v4518 = vpop.f32.mrb[0].mxu0
        %v4519 = vadd.f32 %v4326, %v4518
        %v4520 = vpop.f32.mrb[0].mxu0
        %v4521 = vadd.f32 %v4328, %v4520
        %v4522 = vpop.f32.mrb[0].mxu0
        %v4523 = vadd.f32 %v4330, %v4522
        %v4524 = vpop.f32.mrb[0].mxu0
        %v4525 = vadd.f32 %v4332, %v4524
        %4526 = vmatprep.mubr.bf16.mxu0 %v2229
        %4527 = vmatmul.mubr.bf16.gmra.mrb[0].mxu0 %v2228
        %v4528 = vpop.f32.mrb[0].mxu0
        %v4529 = vadd.f32 %v4336, %v4528
        %v4530 = vpop.f32.mrb[0].mxu0
        %v4531 = vadd.f32 %v4338, %v4530
        %v4532 = vpop.f32.mrb[0].mxu0
        %v4533 = vadd.f32 %v4340, %v4532
        %v4534 = vpop.f32.mrb[0].mxu0
        %v4535 = vadd.f32 %v4342, %v4534
        %4536 = vdwg.mxu0
        %4537 = vmatprep.subr.bf16.mxu0 %v3385
        %4538 = vmatpush1.bf16.msra.mxu0 %v3384
        %4539 = vmatprep.subr.bf16.mxu0 %v3391
        %4540 = vmatpush1.bf16.msra.mxu0 %v3390
        %4541 = vmatprep.subr.bf16.mxu0 %v3397
        %4542 = vmatpush1.bf16.msra.mxu0 %v3396
        %4543 = vmatprep.subr.bf16.mxu0 %v3403
        %4544 = vmatpush1.bf16.msra.mxu0 %v3402
        %4545 = vmatprep.subr.bf16.mxu0 %v3409
        %4546 = vmatpush1.bf16.msra.mxu0 %v3408
        %4547 = vmatprep.subr.bf16.mxu0 %v3415
        %4548 = vmatpush1.bf16.msra.mxu0 %v3414
        %4549 = vmatprep.subr.bf16.mxu0 %v3421
        %4550 = vmatpush1.bf16.msra.mxu0 %v3420
        %4551 = vmatprep.subr.bf16.mxu0 %v3427
        %4552 = vmatpush1.bf16.msra.mxu0 %v3426
        %4553 = vmatprep.subr.bf16.mxu0 %v3433
        %4554 = vmatpush1.bf16.msra.mxu0 %v3432
        %4555 = vmatprep.subr.bf16.mxu0 %v3439
        %4556 = vmatpush1.bf16.msra.mxu0 %v3438
        %4557 = vmatprep.subr.bf16.mxu0 %v3445
        %4558 = vmatpush1.bf16.msra.mxu0 %v3444
        %4559 = vmatprep.subr.bf16.mxu0 %v3451
        %4560 = vmatpush1.bf16.msra.mxu0 %v3450
        %4561 = vmatprep.subr.bf16.mxu0 %v3457
        %4562 = vmatpush1.bf16.msra.mxu0 %v3456
        %4563 = vmatprep.subr.bf16.mxu0 %v3463
        %4564 = vmatpush1.bf16.msra.mxu0 %v3462
        %4565 = vmatprep.subr.bf16.mxu0 %v3469
        %4566 = vmatpush1.bf16.msra.mxu0 %v3468
        %4567 = vmatprep.subr.bf16.mxu0 %v3475
        %4568 = vmatpush1.bf16.msra.mxu0 %v3474
        %4569 = vmatprep.mubr.bf16.mxu0 %v2135
        %4570 = vmatmul.mubr.bf16.gmra.mrb[0].mxu0 %v2134
        %v4571 = vpop.f32.mrb[0].mxu0
        %v4572 = vadd.f32 0.0, %v4571
        %v4573 = vpop.f32.mrb[0].mxu0
        %v4574 = vadd.f32 0.0, %v4573
        %v4575 = vpop.f32.mrb[0].mxu0
        %v4576 = vadd.f32 0.0, %v4575
        %v4577 = vpop.f32.mrb[0].mxu0
        %v4578 = vadd.f32 0.0, %v4577
        %4579 = vmatprep.mubr.bf16.mxu0 %v2141
        %4580 = vmatmul.mubr.bf16.gmra.mrb[0].mxu0 %v2140
        %v4581 = vpop.f32.mrb[0].mxu0
        %v4582 = vadd.f32 0.0, %v4581
        %v4583 = vpop.f32.mrb[0].mxu0
        %v4584 = vadd.f32 0.0, %v4583
        %v4585 = vpop.f32.mrb[0].mxu0
        %v4586 = vadd.f32 0.0, %v4585
        %v4587 = vpop.f32.mrb[0].mxu0
        %v4588 = vadd.f32 0.0, %v4587
        %4589 = vmatprep.mubr.bf16.mxu0 %v2147
        %4590 = vmatmul.mubr.bf16.gmra.mrb[0].mxu0 %v2146
        %v4591 = vpop.f32.mrb[0].mxu0
        %v4592 = vadd.f32 0.0, %v4591
        %v4593 = vpop.f32.mrb[0].mxu0
        %v4594 = vadd.f32 0.0, %v4593
        %v4595 = vpop.f32.mrb[0].mxu0
        %v4596 = vadd.f32 0.0, %v4595
        %v4597 = vpop.f32.mrb[0].mxu0
        %v4598 = vadd.f32 0.0, %v4597
        %4599 = vmatprep.mubr.bf16.mxu0 %v2153
        %4600 = vmatmul.mubr.bf16.gmra.mrb[0].mxu0 %v2152
        %v4601 = vpop.f32.mrb[0].mxu0
        %v4602 = vadd.f32 0.0, %v4601
        %v4603 = vpop.f32.mrb[0].mxu0
        %v4604 = vadd.f32 0.0, %v4603
        %v4605 = vpop.f32.mrb[0].mxu0
        %v4606 = vadd.f32 0.0, %v4605
        %v4607 = vpop.f32.mrb[0].mxu0
        %v4608 = vadd.f32 0.0, %v4607
        %4609 = vmatprep.mubr.bf16.mxu0 %v2159
        %4610 = vmatmul.mubr.bf16.gmra.mrb[0].mxu0 %v2158
        %v4611 = vpop.f32.mrb[0].mxu0
        %v4612 = vadd.f32 0.0, %v4611
        %v4613 = vpop.f32.mrb[0].mxu0
        %v4614 = vadd.f32 0.0, %v4613
        %v4615 = vpop.f32.mrb[0].mxu0
        %v4616 = vadd.f32 0.0, %v4615
        %v4617 = vpop.f32.mrb[0].mxu0
        %v4618 = vadd.f32 0.0, %v4617
        %4619 = vmatprep.mubr.bf16.mxu0 %v2165
        %4620 = vmatmul.mubr.bf16.gmra.mrb[0].mxu0 %v2164
        %v4621 = vpop.f32.mrb[0].mxu0
        %v4622 = vadd.f32 0.0, %v4621
        %v4623 = vpop.f32.mrb[0].mxu0
        %v4624 = vadd.f32 0.0, %v4623
        %v4625 = vpop.f32.mrb[0].mxu0
        %v4626 = vadd.f32 0.0, %v4625
        %v4627 = vpop.f32.mrb[0].mxu0
        %v4628 = vadd.f32 0.0, %v4627
        %4629 = vmatprep.mubr.bf16.mxu0 %v2171
        %4630 = vmatmul.mubr.bf16.gmra.mrb[0].mxu0 %v2170
        %v4631 = vpop.f32.mrb[0].mxu0
        %v4632 = vadd.f32 0.0, %v4631
        %v4633 = vpop.f32.mrb[0].mxu0
        %v4634 = vadd.f32 0.0, %v4633
        %v4635 = vpop.f32.mrb[0].mxu0
        %v4636 = vadd.f32 0.0, %v4635
        %v4637 = vpop.f32.mrb[0].mxu0
        %v4638 = vadd.f32 0.0, %v4637
        %4639 = vmatprep.mubr.bf16.mxu0 %v2177
        %4640 = vmatmul.mubr.bf16.gmra.mrb[0].mxu0 %v2176
        %v4641 = vpop.f32.mrb[0].mxu0
        %v4642 = vadd.f32 0.0, %v4641
        %v4643 = vpop.f32.mrb[0].mxu0
        %v4644 = vadd.f32 0.0, %v4643
        %v4645 = vpop.f32.mrb[0].mxu0
        %v4646 = vadd.f32 0.0, %v4645
        %v4647 = vpop.f32.mrb[0].mxu0
        %v4648 = vadd.f32 0.0, %v4647
        %4649 = vmatprep.mubr.bf16.mxu0 %v2183
        %4650 = vmatmul.mubr.bf16.gmra.mrb[0].mxu0 %v2182
        %v4651 = vpop.f32.mrb[0].mxu0
        %v4652 = vadd.f32 0.0, %v4651
        %v4653 = vpop.f32.mrb[0].mxu0
        %v4654 = vadd.f32 0.0, %v4653
        %v4655 = vpop.f32.mrb[0].mxu0
        %v4656 = vadd.f32 0.0, %v4655
        %v4657 = vpop.f32.mrb[0].mxu0
        %v4658 = vadd.f32 0.0, %v4657
        %4659 = vmatprep.mubr.bf16.mxu0 %v2189
        %4660 = vmatmul.mubr.bf16.gmra.mrb[0].mxu0 %v2188
        %v4661 = vpop.f32.mrb[0].mxu0
        %v4662 = vadd.f32 0.0, %v4661
        %v4663 = vpop.f32.mrb[0].mxu0
        %v4664 = vadd.f32 0.0, %v4663
        %v4665 = vpop.f32.mrb[0].mxu0
        %v4666 = vadd.f32 0.0, %v4665
        %v4667 = vpop.f32.mrb[0].mxu0
        %v4668 = vadd.f32 0.0, %v4667
        %4669 = vmatprep.mubr.bf16.mxu0 %v2195
        %4670 = vmatmul.mubr.bf16.gmra.mrb[0].mxu0 %v2194
        %v4671 = vpop.f32.mrb[0].mxu0
        %v4672 = vadd.f32 0.0, %v4671
        %v4673 = vpop.f32.mrb[0].mxu0
        %v4674 = vadd.f32 0.0, %v4673
        %v4675 = vpop.f32.mrb[0].mxu0
        %v4676 = vadd.f32 0.0, %v4675
        %v4677 = vpop.f32.mrb[0].mxu0
        %v4678 = vadd.f32 0.0, %v4677
        %4679 = vmatprep.mubr.bf16.mxu0 %v2201
        %4680 = vmatmul.mubr.bf16.gmra.mrb[0].mxu0 %v2200
        %v4681 = vpop.f32.mrb[0].mxu0
        %v4682 = vadd.f32 0.0, %v4681
        %v4683 = vpop.f32.mrb[0].mxu0
        %v4684 = vadd.f32 0.0, %v4683
        %v4685 = vpop.f32.mrb[0].mxu0
        %v4686 = vadd.f32 0.0, %v4685
        %v4687 = vpop.f32.mrb[0].mxu0
        %v4688 = vadd.f32 0.0, %v4687
        %4689 = vmatprep.mubr.bf16.mxu0 %v2207
        %4690 = vmatmul.mubr.bf16.gmra.mrb[0].mxu0 %v2206
        %v4691 = vpop.f32.mrb[0].mxu0
        %v4692 = vadd.f32 0.0, %v4691
        %v4693 = vpop.f32.mrb[0].mxu0
        %v4694 = vadd.f32 0.0, %v4693
        %v4695 = vpop.f32.mrb[0].mxu0
        %v4696 = vadd.f32 0.0, %v4695
        %v4697 = vpop.f32.mrb[0].mxu0
        %v4698 = vadd.f32 0.0, %v4697
        %4699 = vmatprep.mubr.bf16.mxu0 %v2213
        %4700 = vmatmul.mubr.bf16.gmra.mrb[0].mxu0 %v2212
        %v4701 = vpop.f32.mrb[0].mxu0
        %v4702 = vadd.f32 0.0, %v4701
        %v4703 = vpop.f32.mrb[0].mxu0
        %v4704 = vadd.f32 0.0, %v4703
        %v4705 = vpop.f32.mrb[0].mxu0
        %v4706 = vadd.f32 0.0, %v4705
        %v4707 = vpop.f32.mrb[0].mxu0
        %v4708 = vadd.f32 0.0, %v4707
        %4709 = vmatprep.mubr.bf16.mxu0 %v2219
        %4710 = vmatmul.mubr.bf16.gmra.mrb[0].mxu0 %v2218
        %v4711 = vpop.f32.mrb[0].mxu0
        %v4712 = vadd.f32 0.0, %v4711
        %v4713 = vpop.f32.mrb[0].mxu0
        %v4714 = vadd.f32 0.0, %v4713
        %v4715 = vpop.f32.mrb[0].mxu0
        %v4716 = vadd.f32 0.0, %v4715
        %v4717 = vpop.f32.mrb[0].mxu0
        %v4718 = vadd.f32 0.0, %v4717
        %4719 = vmatprep.mubr.bf16.mxu0 %v2225
        %4720 = vmatmul.mubr.bf16.gmra.mrb[0].mxu0 %v2224
        %v4721 = vpop.f32.mrb[0].mxu0
        %v4722 = vadd.f32 0.0, %v4721
        %v4723 = vpop.f32.mrb[0].mxu0
        %v4724 = vadd.f32 0.0, %v4723
        %v4725 = vpop.f32.mrb[0].mxu0
        %v4726 = vadd.f32 0.0, %v4725
        %v4727 = vpop.f32.mrb[0].mxu0
        %v4728 = vadd.f32 0.0, %v4727
        %4729 = vdwg.mxu0
        %4730 = vmatprep.subr.bf16.mxu0 %v3481
        %4731 = vmatpush1.bf16.msra.mxu0 %v3480
        %4732 = vmatprep.subr.bf16.mxu0 %v3487
        %4733 = vmatpush1.bf16.msra.mxu0 %v3486
        %4734 = vmatprep.subr.bf16.mxu0 %v3493
        %4735 = vmatpush1.bf16.msra.mxu0 %v3492
        %4736 = vmatprep.subr.bf16.mxu0 %v3499
        %4737 = vmatpush1.bf16.msra.mxu0 %v3498
        %4738 = vmatprep.subr.bf16.mxu0 %v3505
        %4739 = vmatpush1.bf16.msra.mxu0 %v3504
        %4740 = vmatprep.subr.bf16.mxu0 %v3511
        %4741 = vmatpush1.bf16.msra.mxu0 %v3510
        %4742 = vmatprep.subr.bf16.mxu0 %v3517
        %4743 = vmatpush1.bf16.msra.mxu0 %v3516
        %4744 = vmatprep.subr.bf16.mxu0 %v3523
        %4745 = vmatpush1.bf16.msra.mxu0 %v3522
        %4746 = vmatprep.subr.bf16.mxu0 %v3529
        %4747 = vmatpush1.bf16.msra.mxu0 %v3528
        %4748 = vmatprep.subr.bf16.mxu0 %v3535
        %4749 = vmatpush1.bf16.msra.mxu0 %v3534
        %4750 = vmatprep.subr.bf16.mxu0 %v3541
        %4751 = vmatpush1.bf16.msra.mxu0 %v3540
        %4752 = vmatprep.subr.bf16.mxu0 %v3547
        %4753 = vmatpush1.bf16.msra.mxu0 %v3546
        %4754 = vmatprep.subr.bf16.mxu0 %v3553
        %4755 = vmatpush1.bf16.msra.mxu0 %v3552
        %4756 = vmatprep.subr.bf16.mxu0 %v3559
        %4757 = vmatpush1.bf16.msra.mxu0 %v3558
        %4758 = vmatprep.subr.bf16.mxu0 %v3565
        %4759 = vmatpush1.bf16.msra.mxu0 %v3564
        %4760 = vmatprep.subr.bf16.mxu0 %v3571
        %4761 = vmatpush1.bf16.msra.mxu0 %v3570
        %4762 = vmatprep.mubr.bf16.mxu0 %v2137
        %4763 = vmatmul.mubr.bf16.gmra.mrb[0].mxu0 %v2136
        %v4764 = vpop.f32.mrb[0].mxu0
        %v4765 = vadd.f32 %v4572, %v4764
        %v4766 = vpop.f32.mrb[0].mxu0
        %v4767 = vadd.f32 %v4574, %v4766
        %v4768 = vpop.f32.mrb[0].mxu0
        %v4769 = vadd.f32 %v4576, %v4768
        %v4770 = vpop.f32.mrb[0].mxu0
        %v4771 = vadd.f32 %v4578, %v4770
        %4772 = vmatprep.mubr.bf16.mxu0 %v2143
        %4773 = vmatmul.mubr.bf16.gmra.mrb[0].mxu0 %v2142
        %v4774 = vpop.f32.mrb[0].mxu0
        %v4775 = vadd.f32 %v4582, %v4774
        %v4776 = vpop.f32.mrb[0].mxu0
        %v4777 = vadd.f32 %v4584, %v4776
        %v4778 = vpop.f32.mrb[0].mxu0
        %v4779 = vadd.f32 %v4586, %v4778
        %v4780 = vpop.f32.mrb[0].mxu0
        %v4781 = vadd.f32 %v4588, %v4780
        %4782 = vmatprep.mubr.bf16.mxu0 %v2149
        %4783 = vmatmul.mubr.bf16.gmra.mrb[0].mxu0 %v2148
        %v4784 = vpop.f32.mrb[0].mxu0
        %v4785 = vadd.f32 %v4592, %v4784
        %v4786 = vpop.f32.mrb[0].mxu0
        %v4787 = vadd.f32 %v4594, %v4786
        %v4788 = vpop.f32.mrb[0].mxu0
        %v4789 = vadd.f32 %v4596, %v4788
        %v4790 = vpop.f32.mrb[0].mxu0
        %v4791 = vadd.f32 %v4598, %v4790
        %4792 = vmatprep.mubr.bf16.mxu0 %v2155
        %4793 = vmatmul.mubr.bf16.gmra.mrb[0].mxu0 %v2154
        %v4794 = vpop.f32.mrb[0].mxu0
        %v4795 = vadd.f32 %v4602, %v4794
        %v4796 = vpop.f32.mrb[0].mxu0
        %v4797 = vadd.f32 %v4604, %v4796
        %v4798 = vpop.f32.mrb[0].mxu0
        %v4799 = vadd.f32 %v4606, %v4798
        %v4800 = vpop.f32.mrb[0].mxu0
        %v4801 = vadd.f32 %v4608, %v4800
        %4802 = vmatprep.mubr.bf16.mxu0 %v2161
        %4803 = vmatmul.mubr.bf16.gmra.mrb[0].mxu0 %v2160
        %v4804 = vpop.f32.mrb[0].mxu0
        %v4805 = vadd.f32 %v4612, %v4804
        %v4806 = vpop.f32.mrb[0].mxu0
        %v4807 = vadd.f32 %v4614, %v4806
        %v4808 = vpop.f32.mrb[0].mxu0
        %v4809 = vadd.f32 %v4616, %v4808
        %v4810 = vpop.f32.mrb[0].mxu0
        %v4811 = vadd.f32 %v4618, %v4810
        %4812 = vmatprep.mubr.bf16.mxu0 %v2167
        %4813 = vmatmul.mubr.bf16.gmra.mrb[0].mxu0 %v2166
        %v4814 = vpop.f32.mrb[0].mxu0
        %v4815 = vadd.f32 %v4622, %v4814
        %v4816 = vpop.f32.mrb[0].mxu0
        %v4817 = vadd.f32 %v4624, %v4816
        %v4818 = vpop.f32.mrb[0].mxu0
        %v4819 = vadd.f32 %v4626, %v4818
        %v4820 = vpop.f32.mrb[0].mxu0
        %v4821 = vadd.f32 %v4628, %v4820
        %4822 = vmatprep.mubr.bf16.mxu0 %v2173
        %4823 = vmatmul.mubr.bf16.gmra.mrb[0].mxu0 %v2172
        %v4824 = vpop.f32.mrb[0].mxu0
        %v4825 = vadd.f32 %v4632, %v4824
        %v4826 = vpop.f32.mrb[0].mxu0
        %v4827 = vadd.f32 %v4634, %v4826
        %v4828 = vpop.f32.mrb[0].mxu0
        %v4829 = vadd.f32 %v4636, %v4828
        %v4830 = vpop.f32.mrb[0].mxu0
        %v4831 = vadd.f32 %v4638, %v4830
        %4832 = vmatprep.mubr.bf16.mxu0 %v2179
        %4833 = vmatmul.mubr.bf16.gmra.mrb[0].mxu0 %v2178
        %v4834 = vpop.f32.mrb[0].mxu0
        %v4835 = vadd.f32 %v4642, %v4834
        %v4836 = vpop.f32.mrb[0].mxu0
        %v4837 = vadd.f32 %v4644, %v4836
        %v4838 = vpop.f32.mrb[0].mxu0
        %v4839 = vadd.f32 %v4646, %v4838
        %v4840 = vpop.f32.mrb[0].mxu0
        %v4841 = vadd.f32 %v4648, %v4840
        %4842 = vmatprep.mubr.bf16.mxu0 %v2185
        %4843 = vmatmul.mubr.bf16.gmra.mrb[0].mxu0 %v2184
        %v4844 = vpop.f32.mrb[0].mxu0
        %v4845 = vadd.f32 %v4652, %v4844
        %v4846 = vpop.f32.mrb[0].mxu0
        %v4847 = vadd.f32 %v4654, %v4846
        %v4848 = vpop.f32.mrb[0].mxu0
        %v4849 = vadd.f32 %v4656, %v4848
        %v4850 = vpop.f32.mrb[0].mxu0
        %v4851 = vadd.f32 %v4658, %v4850
        %4852 = vmatprep.mubr.bf16.mxu0 %v2191
        %4853 = vmatmul.mubr.bf16.gmra.mrb[0].mxu0 %v2190
        %v4854 = vpop.f32.mrb[0].mxu0
        %v4855 = vadd.f32 %v4662, %v4854
        %v4856 = vpop.f32.mrb[0].mxu0
        %v4857 = vadd.f32 %v4664, %v4856
        %v4858 = vpop.f32.mrb[0].mxu0
        %v4859 = vadd.f32 %v4666, %v4858
        %v4860 = vpop.f32.mrb[0].mxu0
        %v4861 = vadd.f32 %v4668, %v4860
        %4862 = vmatprep.mubr.bf16.mxu0 %v2197
        %4863 = vmatmul.mubr.bf16.gmra.mrb[0].mxu0 %v2196
        %v4864 = vpop.f32.mrb[0].mxu0
        %v4865 = vadd.f32 %v4672, %v4864
        %v4866 = vpop.f32.mrb[0].mxu0
        %v4867 = vadd.f32 %v4674, %v4866
        %v4868 = vpop.f32.mrb[0].mxu0
        %v4869 = vadd.f32 %v4676, %v4868
        %v4870 = vpop.f32.mrb[0].mxu0
        %v4871 = vadd.f32 %v4678, %v4870
        %4872 = vmatprep.mubr.bf16.mxu0 %v2203
        %4873 = vmatmul.mubr.bf16.gmra.mrb[0].mxu0 %v2202
        %v4874 = vpop.f32.mrb[0].mxu0
        %v4875 = vadd.f32 %v4682, %v4874
        %v4876 = vpop.f32.mrb[0].mxu0
        %v4877 = vadd.f32 %v4684, %v4876
        %v4878 = vpop.f32.mrb[0].mxu0
        %v4879 = vadd.f32 %v4686, %v4878
        %v4880 = vpop.f32.mrb[0].mxu0
        %v4881 = vadd.f32 %v4688, %v4880
        %4882 = vmatprep.mubr.bf16.mxu0 %v2209
        %4883 = vmatmul.mubr.bf16.gmra.mrb[0].mxu0 %v2208
        %v4884 = vpop.f32.mrb[0].mxu0
        %v4885 = vadd.f32 %v4692, %v4884
        %v4886 = vpop.f32.mrb[0].mxu0
        %v4887 = vadd.f32 %v4694, %v4886
        %v4888 = vpop.f32.mrb[0].mxu0
        %v4889 = vadd.f32 %v4696, %v4888
        %v4890 = vpop.f32.mrb[0].mxu0
        %v4891 = vadd.f32 %v4698, %v4890
        %4892 = vmatprep.mubr.bf16.mxu0 %v2215
        %4893 = vmatmul.mubr.bf16.gmra.mrb[0].mxu0 %v2214
        %v4894 = vpop.f32.mrb[0].mxu0
        %v4895 = vadd.f32 %v4702, %v4894
        %v4896 = vpop.f32.mrb[0].mxu0
        %v4897 = vadd.f32 %v4704, %v4896
        %v4898 = vpop.f32.mrb[0].mxu0
        %v4899 = vadd.f32 %v4706, %v4898
        %v4900 = vpop.f32.mrb[0].mxu0
        %v4901 = vadd.f32 %v4708, %v4900
        %4902 = vmatprep.mubr.bf16.mxu0 %v2221
        %4903 = vmatmul.mubr.bf16.gmra.mrb[0].mxu0 %v2220
        %v4904 = vpop.f32.mrb[0].mxu0
        %v4905 = vadd.f32 %v4712, %v4904
        %v4906 = vpop.f32.mrb[0].mxu0
        %v4907 = vadd.f32 %v4714, %v4906
        %v4908 = vpop.f32.mrb[0].mxu0
        %v4909 = vadd.f32 %v4716, %v4908
        %v4910 = vpop.f32.mrb[0].mxu0
        %v4911 = vadd.f32 %v4718, %v4910
        %4912 = vmatprep.mubr.bf16.mxu0 %v2227
        %4913 = vmatmul.mubr.bf16.gmra.mrb[0].mxu0 %v2226
        %v4914 = vpop.f32.mrb[0].mxu0
        %v4915 = vadd.f32 %v4722, %v4914
        %v4916 = vpop.f32.mrb[0].mxu0
        %v4917 = vadd.f32 %v4724, %v4916
        %v4918 = vpop.f32.mrb[0].mxu0
        %v4919 = vadd.f32 %v4726, %v4918
        %v4920 = vpop.f32.mrb[0].mxu0
        %v4921 = vadd.f32 %v4728, %v4920
        %4922 = vdwg.mxu0
        %4923 = vmatprep.subr.bf16.mxu0 %v3577
        %4924 = vmatpush1.bf16.msra.mxu0 %v3576
        %4925 = vmatprep.subr.bf16.mxu0 %v3583
        %4926 = vmatpush1.bf16.msra.mxu0 %v3582
        %4927 = vmatprep.subr.bf16.mxu0 %v3589
        %4928 = vmatpush1.bf16.msra.mxu0 %v3588
        %4929 = vmatprep.subr.bf16.mxu0 %v3595
        %4930 = vmatpush1.bf16.msra.mxu0 %v3594
        %4931 = vmatprep.subr.bf16.mxu0 %v3601
        %4932 = vmatpush1.bf16.msra.mxu0 %v3600
        %4933 = vmatprep.subr.bf16.mxu0 %v3607
        %4934 = vmatpush1.bf16.msra.mxu0 %v3606
        %4935 = vmatprep.subr.bf16.mxu0 %v3613
        %4936 = vmatpush1.bf16.msra.mxu0 %v3612
        %4937 = vmatprep.subr.bf16.mxu0 %v3619
        %4938 = vmatpush1.bf16.msra.mxu0 %v3618
        %4939 = vmatprep.subr.bf16.mxu0 %v3625
        %4940 = vmatpush1.bf16.msra.mxu0 %v3624
        %4941 = vmatprep.subr.bf16.mxu0 %v3631
        %4942 = vmatpush1.bf16.msra.mxu0 %v3630
        %4943 = vmatprep.subr.bf16.mxu0 %v3637
        %4944 = vmatpush1.bf16.msra.mxu0 %v3636
        %4945 = vmatprep.subr.bf16.mxu0 %v3643
        %4946 = vmatpush1.bf16.msra.mxu0 %v3642
        %4947 = vmatprep.subr.bf16.mxu0 %v3649
        %4948 = vmatpush1.bf16.msra.mxu0 %v3648
        %4949 = vmatprep.subr.bf16.mxu0 %v3655
        %4950 = vmatpush1.bf16.msra.mxu0 %v3654
        %4951 = vmatprep.subr.bf16.mxu0 %v3661
        %4952 = vmatpush1.bf16.msra.mxu0 %v3660
        %4953 = vmatprep.subr.bf16.mxu0 %v3667
        %4954 = vmatpush1.bf16.msra.mxu0 %v3666
        %4955 = vmatprep.mubr.bf16.mxu0 %v2139
        %4956 = vmatmul.mubr.bf16.gmra.mrb[0].mxu0 %v2138
        %v4957 = vpop.f32.mrb[0].mxu0
        %v4958 = vadd.f32 %v4765, %v4957
        %v4959 = vpop.f32.mrb[0].mxu0
        %v4960 = vadd.f32 %v4767, %v4959
        %v4961 = vpop.f32.mrb[0].mxu0
        %v4962 = vadd.f32 %v4769, %v4961
        %v4963 = vpop.f32.mrb[0].mxu0
        %v4964 = vadd.f32 %v4771, %v4963
        %4965 = vmatprep.mubr.bf16.mxu0 %v2145
        %4966 = vmatmul.mubr.bf16.gmra.mrb[0].mxu0 %v2144
        %v4967 = vpop.f32.mrb[0].mxu0
        %v4968 = vadd.f32 %v4775, %v4967
        %v4969 = vpop.f32.mrb[0].mxu0
        %v4970 = vadd.f32 %v4777, %v4969
        %v4971 = vpop.f32.mrb[0].mxu0
        %v4972 = vadd.f32 %v4779, %v4971
        %v4973 = vpop.f32.mrb[0].mxu0
        %v4974 = vadd.f32 %v4781, %v4973
        %4975 = vmatprep.mubr.bf16.mxu0 %v2151
        %4976 = vmatmul.mubr.bf16.gmra.mrb[0].mxu0 %v2150
        %v4977 = vpop.f32.mrb[0].mxu0
        %v4978 = vadd.f32 %v4785, %v4977
        %v4979 = vpop.f32.mrb[0].mxu0
        %v4980 = vadd.f32 %v4787, %v4979
        %v4981 = vpop.f32.mrb[0].mxu0
        %v4982 = vadd.f32 %v4789, %v4981
        %v4983 = vpop.f32.mrb[0].mxu0
        %v4984 = vadd.f32 %v4791, %v4983
        %4985 = vmatprep.mubr.bf16.mxu0 %v2157
        %4986 = vmatmul.mubr.bf16.gmra.mrb[0].mxu0 %v2156
        %v4987 = vpop.f32.mrb[0].mxu0
        %v4988 = vadd.f32 %v4795, %v4987
        %v4989 = vpop.f32.mrb[0].mxu0
        %v4990 = vadd.f32 %v4797, %v4989
        %v4991 = vpop.f32.mrb[0].mxu0
        %v4992 = vadd.f32 %v4799, %v4991
        %v4993 = vpop.f32.mrb[0].mxu0
        %v4994 = vadd.f32 %v4801, %v4993
        %4995 = vmatprep.mubr.bf16.mxu0 %v2163
        %4996 = vmatmul.mubr.bf16.gmra.mrb[0].mxu0 %v2162
        %v4997 = vpop.f32.mrb[0].mxu0
        %v4998 = vadd.f32 %v4805, %v4997
        %v4999 = vpop.f32.mrb[0].mxu0
        %v5000 = vadd.f32 %v4807, %v4999
        %v5001 = vpop.f32.mrb[0].mxu0
        %v5002 = vadd.f32 %v4809, %v5001
        %v5003 = vpop.f32.mrb[0].mxu0
        %v5004 = vadd.f32 %v4811, %v5003
        %5005 = vmatprep.mubr.bf16.mxu0 %v2169
        %5006 = vmatmul.mubr.bf16.gmra.mrb[0].mxu0 %v2168
        %v5007 = vpop.f32.mrb[0].mxu0
        %v5008 = vadd.f32 %v4815, %v5007
        %v5009 = vpop.f32.mrb[0].mxu0
        %v5010 = vadd.f32 %v4817, %v5009
        %v5011 = vpop.f32.mrb[0].mxu0
        %v5012 = vadd.f32 %v4819, %v5011
        %v5013 = vpop.f32.mrb[0].mxu0
        %v5014 = vadd.f32 %v4821, %v5013
        %5015 = vmatprep.mubr.bf16.mxu0 %v2175
        %5016 = vmatmul.mubr.bf16.gmra.mrb[0].mxu0 %v2174
        %v5017 = vpop.f32.mrb[0].mxu0
        %v5018 = vadd.f32 %v4825, %v5017
        %v5019 = vpop.f32.mrb[0].mxu0
        %v5020 = vadd.f32 %v4827, %v5019
        %v5021 = vpop.f32.mrb[0].mxu0
        %v5022 = vadd.f32 %v4829, %v5021
        %v5023 = vpop.f32.mrb[0].mxu0
        %v5024 = vadd.f32 %v4831, %v5023
        %5025 = vmatprep.mubr.bf16.mxu0 %v2181
        %5026 = vmatmul.mubr.bf16.gmra.mrb[0].mxu0 %v2180
        %v5027 = vpop.f32.mrb[0].mxu0
        %v5028 = vadd.f32 %v4835, %v5027
        %v5029 = vpop.f32.mrb[0].mxu0
        %v5030 = vadd.f32 %v4837, %v5029
        %v5031 = vpop.f32.mrb[0].mxu0
        %v5032 = vadd.f32 %v4839, %v5031
        %v5033 = vpop.f32.mrb[0].mxu0
        %v5034 = vadd.f32 %v4841, %v5033
        %5035 = vmatprep.mubr.bf16.mxu0 %v2187
        %5036 = vmatmul.mubr.bf16.gmra.mrb[0].mxu0 %v2186
        %v5037 = vpop.f32.mrb[0].mxu0
        %v5038 = vadd.f32 %v4845, %v5037
        %v5039 = vpop.f32.mrb[0].mxu0
        %v5040 = vadd.f32 %v4847, %v5039
        %v5041 = vpop.f32.mrb[0].mxu0
        %v5042 = vadd.f32 %v4849, %v5041
        %v5043 = vpop.f32.mrb[0].mxu0
        %v5044 = vadd.f32 %v4851, %v5043
        %5045 = vmatprep.mubr.bf16.mxu0 %v2193
        %5046 = vmatmul.mubr.bf16.gmra.mrb[0].mxu0 %v2192
        %v5047 = vpop.f32.mrb[0].mxu0
        %v5048 = vadd.f32 %v4855, %v5047
        %v5049 = vpop.f32.mrb[0].mxu0
        %v5050 = vadd.f32 %v4857, %v5049
        %v5051 = vpop.f32.mrb[0].mxu0
        %v5052 = vadd.f32 %v4859, %v5051
        %v5053 = vpop.f32.mrb[0].mxu0
        %v5054 = vadd.f32 %v4861, %v5053
        %5055 = vmatprep.mubr.bf16.mxu0 %v2199
        %5056 = vmatmul.mubr.bf16.gmra.mrb[0].mxu0 %v2198
        %v5057 = vpop.f32.mrb[0].mxu0
        %v5058 = vadd.f32 %v4865, %v5057
        %v5059 = vpop.f32.mrb[0].mxu0
        %v5060 = vadd.f32 %v4867, %v5059
        %v5061 = vpop.f32.mrb[0].mxu0
        %v5062 = vadd.f32 %v4869, %v5061
        %v5063 = vpop.f32.mrb[0].mxu0
        %v5064 = vadd.f32 %v4871, %v5063
        %5065 = vmatprep.mubr.bf16.mxu0 %v2205
        %5066 = vmatmul.mubr.bf16.gmra.mrb[0].mxu0 %v2204
        %v5067 = vpop.f32.mrb[0].mxu0
        %v5068 = vadd.f32 %v4875, %v5067
        %v5069 = vpop.f32.mrb[0].mxu0
        %v5070 = vadd.f32 %v4877, %v5069
        %v5071 = vpop.f32.mrb[0].mxu0
        %v5072 = vadd.f32 %v4879, %v5071
        %v5073 = vpop.f32.mrb[0].mxu0
        %v5074 = vadd.f32 %v4881, %v5073
        %5075 = vmatprep.mubr.bf16.mxu0 %v2211
        %5076 = vmatmul.mubr.bf16.gmra.mrb[0].mxu0 %v2210
        %v5077 = vpop.f32.mrb[0].mxu0
        %v5078 = vadd.f32 %v4885, %v5077
        %v5079 = vpop.f32.mrb[0].mxu0
        %v5080 = vadd.f32 %v4887, %v5079
        %v5081 = vpop.f32.mrb[0].mxu0
        %v5082 = vadd.f32 %v4889, %v5081
        %v5083 = vpop.f32.mrb[0].mxu0
        %v5084 = vadd.f32 %v4891, %v5083
        %5085 = vmatprep.mubr.bf16.mxu0 %v2217
        %5086 = vmatmul.mubr.bf16.gmra.mrb[0].mxu0 %v2216
        %v5087 = vpop.f32.mrb[0].mxu0
        %v5088 = vadd.f32 %v4895, %v5087
        %v5089 = vpop.f32.mrb[0].mxu0
        %v5090 = vadd.f32 %v4897, %v5089
        %v5091 = vpop.f32.mrb[0].mxu0
        %v5092 = vadd.f32 %v4899, %v5091
        %v5093 = vpop.f32.mrb[0].mxu0
        %v5094 = vadd.f32 %v4901, %v5093
        %5095 = vmatprep.mubr.bf16.mxu0 %v2223
        %5096 = vmatmul.mubr.bf16.gmra.mrb[0].mxu0 %v2222
        %v5097 = vpop.f32.mrb[0].mxu0
        %v5098 = vadd.f32 %v4905, %v5097
        %v5099 = vpop.f32.mrb[0].mxu0
        %v5100 = vadd.f32 %v4907, %v5099
        %v5101 = vpop.f32.mrb[0].mxu0
        %v5102 = vadd.f32 %v4909, %v5101
        %v5103 = vpop.f32.mrb[0].mxu0
        %v5104 = vadd.f32 %v4911, %v5103
        %5105 = vmatprep.mubr.bf16.mxu0 %v2229
        %5106 = vmatmul.mubr.bf16.gmra.mrb[0].mxu0 %v2228
        %v5107 = vpop.f32.mrb[0].mxu0
        %v5108 = vadd.f32 %v4915, %v5107
        %v5109 = vpop.f32.mrb[0].mxu0
        %v5110 = vadd.f32 %v4917, %v5109
        %v5111 = vpop.f32.mrb[0].mxu0
        %v5112 = vadd.f32 %v4919, %v5111
        %v5113 = vpop.f32.mrb[0].mxu0
        %v5114 = vadd.f32 %v4921, %v5113
        %5115 = vdwg.mxu0
        %5116 = vmatprep.subr.bf16.mxu0 %v3387
        %5117 = vmatpush1.bf16.msra.mxu0 %v3386
        %5118 = vmatprep.subr.bf16.mxu0 %v3393
        %5119 = vmatpush1.bf16.msra.mxu0 %v3392
        %5120 = vmatprep.subr.bf16.mxu0 %v3399
        %5121 = vmatpush1.bf16.msra.mxu0 %v3398
        %5122 = vmatprep.subr.bf16.mxu0 %v3405
        %5123 = vmatpush1.bf16.msra.mxu0 %v3404
        %5124 = vmatprep.subr.bf16.mxu0 %v3411
        %5125 = vmatpush1.bf16.msra.mxu0 %v3410
        %5126 = vmatprep.subr.bf16.mxu0 %v3417
        %5127 = vmatpush1.bf16.msra.mxu0 %v3416
        %5128 = vmatprep.subr.bf16.mxu0 %v3423
        %5129 = vmatpush1.bf16.msra.mxu0 %v3422
        %5130 = vmatprep.subr.bf16.mxu0 %v3429
        %5131 = vmatpush1.bf16.msra.mxu0 %v3428
        %5132 = vmatprep.subr.bf16.mxu0 %v3435
        %5133 = vmatpush1.bf16.msra.mxu0 %v3434
        %5134 = vmatprep.subr.bf16.mxu0 %v3441
        %5135 = vmatpush1.bf16.msra.mxu0 %v3440
        %5136 = vmatprep.subr.bf16.mxu0 %v3447
        %5137 = vmatpush1.bf16.msra.mxu0 %v3446
        %5138 = vmatprep.subr.bf16.mxu0 %v3453
        %5139 = vmatpush1.bf16.msra.mxu0 %v3452
        %5140 = vmatprep.subr.bf16.mxu0 %v3459
        %5141 = vmatpush1.bf16.msra.mxu0 %v3458
        %5142 = vmatprep.subr.bf16.mxu0 %v3465
        %5143 = vmatpush1.bf16.msra.mxu0 %v3464
        %5144 = vmatprep.subr.bf16.mxu0 %v3471
        %5145 = vmatpush1.bf16.msra.mxu0 %v3470
        %5146 = vmatprep.subr.bf16.mxu0 %v3477
        %5147 = vmatpush1.bf16.msra.mxu0 %v3476
        %5148 = vmatprep.mubr.bf16.mxu0 %v2135
        %5149 = vmatmul.mubr.bf16.gmra.mrb[0].mxu0 %v2134
        %v5150 = vpop.f32.mrb[0].mxu0
        %v5151 = vadd.f32 0.0, %v5150
        %v5152 = vpop.f32.mrb[0].mxu0
        %v5153 = vadd.f32 0.0, %v5152
        %v5154 = vpop.f32.mrb[0].mxu0
        %v5155 = vadd.f32 0.0, %v5154
        %v5156 = vpop.f32.mrb[0].mxu0
        %v5157 = vadd.f32 0.0, %v5156
        %5158 = vmatprep.mubr.bf16.mxu0 %v2141
        %5159 = vmatmul.mubr.bf16.gmra.mrb[0].mxu0 %v2140
        %v5160 = vpop.f32.mrb[0].mxu0
        %v5161 = vadd.f32 0.0, %v5160
        %v5162 = vpop.f32.mrb[0].mxu0
        %v5163 = vadd.f32 0.0, %v5162
        %v5164 = vpop.f32.mrb[0].mxu0
        %v5165 = vadd.f32 0.0, %v5164
        %v5166 = vpop.f32.mrb[0].mxu0
        %v5167 = vadd.f32 0.0, %v5166
        %5168 = vmatprep.mubr.bf16.mxu0 %v2147
        %5169 = vmatmul.mubr.bf16.gmra.mrb[0].mxu0 %v2146
        %v5170 = vpop.f32.mrb[0].mxu0
        %v5171 = vadd.f32 0.0, %v5170
        %v5172 = vpop.f32.mrb[0].mxu0
        %v5173 = vadd.f32 0.0, %v5172
        %v5174 = vpop.f32.mrb[0].mxu0
        %v5175 = vadd.f32 0.0, %v5174
        %v5176 = vpop.f32.mrb[0].mxu0
        %v5177 = vadd.f32 0.0, %v5176
        %5178 = vmatprep.mubr.bf16.mxu0 %v2153
        %5179 = vmatmul.mubr.bf16.gmra.mrb[0].mxu0 %v2152
        %v5180 = vpop.f32.mrb[0].mxu0
        %v5181 = vadd.f32 0.0, %v5180
        %v5182 = vpop.f32.mrb[0].mxu0
        %v5183 = vadd.f32 0.0, %v5182
        %v5184 = vpop.f32.mrb[0].mxu0
        %v5185 = vadd.f32 0.0, %v5184
        %v5186 = vpop.f32.mrb[0].mxu0
        %v5187 = vadd.f32 0.0, %v5186
        %5188 = vmatprep.mubr.bf16.mxu0 %v2159
        %5189 = vmatmul.mubr.bf16.gmra.mrb[0].mxu0 %v2158
        %v5190 = vpop.f32.mrb[0].mxu0
        %v5191 = vadd.f32 0.0, %v5190
        %v5192 = vpop.f32.mrb[0].mxu0
        %v5193 = vadd.f32 0.0, %v5192
        %v5194 = vpop.f32.mrb[0].mxu0
        %v5195 = vadd.f32 0.0, %v5194
        %v5196 = vpop.f32.mrb[0].mxu0
        %v5197 = vadd.f32 0.0, %v5196
        %5198 = vmatprep.mubr.bf16.mxu0 %v2165
        %5199 = vmatmul.mubr.bf16.gmra.mrb[0].mxu0 %v2164
        %v5200 = vpop.f32.mrb[0].mxu0
        %v5201 = vadd.f32 0.0, %v5200
        %v5202 = vpop.f32.mrb[0].mxu0
        %v5203 = vadd.f32 0.0, %v5202
        %v5204 = vpop.f32.mrb[0].mxu0
        %v5205 = vadd.f32 0.0, %v5204
        %v5206 = vpop.f32.mrb[0].mxu0
        %v5207 = vadd.f32 0.0, %v5206
        %5208 = vmatprep.mubr.bf16.mxu0 %v2171
        %5209 = vmatmul.mubr.bf16.gmra.mrb[0].mxu0 %v2170
        %v5210 = vpop.f32.mrb[0].mxu0
        %v5211 = vadd.f32 0.0, %v5210
        %v5212 = vpop.f32.mrb[0].mxu0
        %v5213 = vadd.f32 0.0, %v5212
        %v5214 = vpop.f32.mrb[0].mxu0
        %v5215 = vadd.f32 0.0, %v5214
        %v5216 = vpop.f32.mrb[0].mxu0
        %v5217 = vadd.f32 0.0, %v5216
        %5218 = vmatprep.mubr.bf16.mxu0 %v2177
        %5219 = vmatmul.mubr.bf16.gmra.mrb[0].mxu0 %v2176
        %v5220 = vpop.f32.mrb[0].mxu0
        %v5221 = vadd.f32 0.0, %v5220
        %v5222 = vpop.f32.mrb[0].mxu0
        %v5223 = vadd.f32 0.0, %v5222
        %v5224 = vpop.f32.mrb[0].mxu0
        %v5225 = vadd.f32 0.0, %v5224
        %v5226 = vpop.f32.mrb[0].mxu0
        %v5227 = vadd.f32 0.0, %v5226
        %5228 = vmatprep.mubr.bf16.mxu0 %v2183
        %5229 = vmatmul.mubr.bf16.gmra.mrb[0].mxu0 %v2182
        %v5230 = vpop.f32.mrb[0].mxu0
        %v5231 = vadd.f32 0.0, %v5230
        %v5232 = vpop.f32.mrb[0].mxu0
        %v5233 = vadd.f32 0.0, %v5232
        %v5234 = vpop.f32.mrb[0].mxu0
        %v5235 = vadd.f32 0.0, %v5234
        %v5236 = vpop.f32.mrb[0].mxu0
        %v5237 = vadd.f32 0.0, %v5236
        %5238 = vmatprep.mubr.bf16.mxu0 %v2189
        %5239 = vmatmul.mubr.bf16.gmra.mrb[0].mxu0 %v2188
        %v5240 = vpop.f32.mrb[0].mxu0
        %v5241 = vadd.f32 0.0, %v5240
        %v5242 = vpop.f32.mrb[0].mxu0
        %v5243 = vadd.f32 0.0, %v5242
        %v5244 = vpop.f32.mrb[0].mxu0
        %v5245 = vadd.f32 0.0, %v5244
        %v5246 = vpop.f32.mrb[0].mxu0
        %v5247 = vadd.f32 0.0, %v5246
        %5248 = vmatprep.mubr.bf16.mxu0 %v2195
        %5249 = vmatmul.mubr.bf16.gmra.mrb[0].mxu0 %v2194
        %v5250 = vpop.f32.mrb[0].mxu0
        %v5251 = vadd.f32 0.0, %v5250
        %v5252 = vpop.f32.mrb[0].mxu0
        %v5253 = vadd.f32 0.0, %v5252
        %v5254 = vpop.f32.mrb[0].mxu0
        %v5255 = vadd.f32 0.0, %v5254
        %v5256 = vpop.f32.mrb[0].mxu0
        %v5257 = vadd.f32 0.0, %v5256
        %5258 = vmatprep.mubr.bf16.mxu0 %v2201
        %5259 = vmatmul.mubr.bf16.gmra.mrb[0].mxu0 %v2200
        %v5260 = vpop.f32.mrb[0].mxu0
        %v5261 = vadd.f32 0.0, %v5260
        %v5262 = vpop.f32.mrb[0].mxu0
        %v5263 = vadd.f32 0.0, %v5262
        %v5264 = vpop.f32.mrb[0].mxu0
        %v5265 = vadd.f32 0.0, %v5264
        %v5266 = vpop.f32.mrb[0].mxu0
        %v5267 = vadd.f32 0.0, %v5266
        %5268 = vmatprep.mubr.bf16.mxu0 %v2207
        %5269 = vmatmul.mubr.bf16.gmra.mrb[0].mxu0 %v2206
        %v5270 = vpop.f32.mrb[0].mxu0
        %v5271 = vadd.f32 0.0, %v5270
        %v5272 = vpop.f32.mrb[0].mxu0
        %v5273 = vadd.f32 0.0, %v5272
        %v5274 = vpop.f32.mrb[0].mxu0
        %v5275 = vadd.f32 0.0, %v5274
        %v5276 = vpop.f32.mrb[0].mxu0
        %v5277 = vadd.f32 0.0, %v5276
        %5278 = vmatprep.mubr.bf16.mxu0 %v2213
        %5279 = vmatmul.mubr.bf16.gmra.mrb[0].mxu0 %v2212
        %v5280 = vpop.f32.mrb[0].mxu0
        %v5281 = vadd.f32 0.0, %v5280
        %v5282 = vpop.f32.mrb[0].mxu0
        %v5283 = vadd.f32 0.0, %v5282
        %v5284 = vpop.f32.mrb[0].mxu0
        %v5285 = vadd.f32 0.0, %v5284
        %v5286 = vpop.f32.mrb[0].mxu0
        %v5287 = vadd.f32 0.0, %v5286
        %5288 = vmatprep.mubr.bf16.mxu0 %v2219
        %5289 = vmatmul.mubr.bf16.gmra.mrb[0].mxu0 %v2218
        %v5290 = vpop.f32.mrb[0].mxu0
        %v5291 = vadd.f32 0.0, %v5290
        %v5292 = vpop.f32.mrb[0].mxu0
        %v5293 = vadd.f32 0.0, %v5292
        %v5294 = vpop.f32.mrb[0].mxu0
        %v5295 = vadd.f32 0.0, %v5294
        %v5296 = vpop.f32.mrb[0].mxu0
        %v5297 = vadd.f32 0.0, %v5296
        %5298 = vmatprep.mubr.bf16.mxu0 %v2225
        %5299 = vmatmul.mubr.bf16.gmra.mrb[0].mxu0 %v2224
        %v5300 = vpop.f32.mrb[0].mxu0
        %v5301 = vadd.f32 0.0, %v5300
        %v5302 = vpop.f32.mrb[0].mxu0
        %v5303 = vadd.f32 0.0, %v5302
        %v5304 = vpop.f32.mrb[0].mxu0
        %v5305 = vadd.f32 0.0, %v5304
        %v5306 = vpop.f32.mrb[0].mxu0
        %v5307 = vadd.f32 0.0, %v5306
        %5308 = vdwg.mxu0
        %5309 = vmatprep.subr.bf16.mxu0 %v3483
        %5310 = vmatpush1.bf16.msra.mxu0 %v3482
        %5311 = vmatprep.subr.bf16.mxu0 %v3489
        %5312 = vmatpush1.bf16.msra.mxu0 %v3488
        %5313 = vmatprep.subr.bf16.mxu0 %v3495
        %5314 = vmatpush1.bf16.msra.mxu0 %v3494
        %5315 = vmatprep.subr.bf16.mxu0 %v3501
        %5316 = vmatpush1.bf16.msra.mxu0 %v3500
        %5317 = vmatprep.subr.bf16.mxu0 %v3507
        %5318 = vmatpush1.bf16.msra.mxu0 %v3506
        %5319 = vmatprep.subr.bf16.mxu0 %v3513
        %5320 = vmatpush1.bf16.msra.mxu0 %v3512
        %5321 = vmatprep.subr.bf16.mxu0 %v3519
        %5322 = vmatpush1.bf16.msra.mxu0 %v3518
        %5323 = vmatprep.subr.bf16.mxu0 %v3525
        %5324 = vmatpush1.bf16.msra.mxu0 %v3524
        %5325 = vmatprep.subr.bf16.mxu0 %v3531
        %5326 = vmatpush1.bf16.msra.mxu0 %v3530
        %5327 = vmatprep.subr.bf16.mxu0 %v3537
        %5328 = vmatpush1.bf16.msra.mxu0 %v3536
        %5329 = vmatprep.subr.bf16.mxu0 %v3543
        %5330 = vmatpush1.bf16.msra.mxu0 %v3542
        %5331 = vmatprep.subr.bf16.mxu0 %v3549
        %5332 = vmatpush1.bf16.msra.mxu0 %v3548
        %5333 = vmatprep.subr.bf16.mxu0 %v3555
        %5334 = vmatpush1.bf16.msra.mxu0 %v3554
        %5335 = vmatprep.subr.bf16.mxu0 %v3561
        %5336 = vmatpush1.bf16.msra.mxu0 %v3560
        %5337 = vmatprep.subr.bf16.mxu0 %v3567
        %5338 = vmatpush1.bf16.msra.mxu0 %v3566
        %5339 = vmatprep.subr.bf16.mxu0 %v3573
        %5340 = vmatpush1.bf16.msra.mxu0 %v3572
        %5341 = vmatprep.mubr.bf16.mxu0 %v2137
        %5342 = vmatmul.mubr.bf16.gmra.mrb[0].mxu0 %v2136
        %v5343 = vpop.f32.mrb[0].mxu0
        %v5344 = vadd.f32 %v5151, %v5343
        %v5345 = vpop.f32.mrb[0].mxu0
        %v5346 = vadd.f32 %v5153, %v5345
        %v5347 = vpop.f32.mrb[0].mxu0
        %v5348 = vadd.f32 %v5155, %v5347
        %v5349 = vpop.f32.mrb[0].mxu0
        %v5350 = vadd.f32 %v5157, %v5349
        %5351 = vmatprep.mubr.bf16.mxu0 %v2143
        %5352 = vmatmul.mubr.bf16.gmra.mrb[0].mxu0 %v2142
        %v5353 = vpop.f32.mrb[0].mxu0
        %v5354 = vadd.f32 %v5161, %v5353
        %v5355 = vpop.f32.mrb[0].mxu0
        %v5356 = vadd.f32 %v5163, %v5355
        %v5357 = vpop.f32.mrb[0].mxu0
        %v5358 = vadd.f32 %v5165, %v5357
        %v5359 = vpop.f32.mrb[0].mxu0
        %v5360 = vadd.f32 %v5167, %v5359
        %5361 = vmatprep.mubr.bf16.mxu0 %v2149
        %5362 = vmatmul.mubr.bf16.gmra.mrb[0].mxu0 %v2148
        %v5363 = vpop.f32.mrb[0].mxu0
        %v5364 = vadd.f32 %v5171, %v5363
        %v5365 = vpop.f32.mrb[0].mxu0
        %v5366 = vadd.f32 %v5173, %v5365
        %v5367 = vpop.f32.mrb[0].mxu0
        %v5368 = vadd.f32 %v5175, %v5367
        %v5369 = vpop.f32.mrb[0].mxu0
        %v5370 = vadd.f32 %v5177, %v5369
        %5371 = vmatprep.mubr.bf16.mxu0 %v2155
        %5372 = vmatmul.mubr.bf16.gmra.mrb[0].mxu0 %v2154
        %v5373 = vpop.f32.mrb[0].mxu0
        %v5374 = vadd.f32 %v5181, %v5373
        %v5375 = vpop.f32.mrb[0].mxu0
        %v5376 = vadd.f32 %v5183, %v5375
        %v5377 = vpop.f32.mrb[0].mxu0
        %v5378 = vadd.f32 %v5185, %v5377
        %v5379 = vpop.f32.mrb[0].mxu0
        %v5380 = vadd.f32 %v5187, %v5379
        %5381 = vmatprep.mubr.bf16.mxu0 %v2161
        %5382 = vmatmul.mubr.bf16.gmra.mrb[0].mxu0 %v2160
        %v5383 = vpop.f32.mrb[0].mxu0
        %v5384 = vadd.f32 %v5191, %v5383
        %v5385 = vpop.f32.mrb[0].mxu0
        %v5386 = vadd.f32 %v5193, %v5385
        %v5387 = vpop.f32.mrb[0].mxu0
        %v5388 = vadd.f32 %v5195, %v5387
        %v5389 = vpop.f32.mrb[0].mxu0
        %v5390 = vadd.f32 %v5197, %v5389
        %5391 = vmatprep.mubr.bf16.mxu0 %v2167
        %5392 = vmatmul.mubr.bf16.gmra.mrb[0].mxu0 %v2166
        %v5393 = vpop.f32.mrb[0].mxu0
        %v5394 = vadd.f32 %v5201, %v5393
        %v5395 = vpop.f32.mrb[0].mxu0
        %v5396 = vadd.f32 %v5203, %v5395
        %v5397 = vpop.f32.mrb[0].mxu0
        %v5398 = vadd.f32 %v5205, %v5397
        %v5399 = vpop.f32.mrb[0].mxu0
        %v5400 = vadd.f32 %v5207, %v5399
        %5401 = vmatprep.mubr.bf16.mxu0 %v2173
        %5402 = vmatmul.mubr.bf16.gmra.mrb[0].mxu0 %v2172
        %v5403 = vpop.f32.mrb[0].mxu0
        %v5404 = vadd.f32 %v5211, %v5403
        %v5405 = vpop.f32.mrb[0].mxu0
        %v5406 = vadd.f32 %v5213, %v5405
        %v5407 = vpop.f32.mrb[0].mxu0
        %v5408 = vadd.f32 %v5215, %v5407
        %v5409 = vpop.f32.mrb[0].mxu0
        %v5410 = vadd.f32 %v5217, %v5409
        %5411 = vmatprep.mubr.bf16.mxu0 %v2179
        %5412 = vmatmul.mubr.bf16.gmra.mrb[0].mxu0 %v2178
        %v5413 = vpop.f32.mrb[0].mxu0
        %v5414 = vadd.f32 %v5221, %v5413
        %v5415 = vpop.f32.mrb[0].mxu0
        %v5416 = vadd.f32 %v5223, %v5415
        %v5417 = vpop.f32.mrb[0].mxu0
        %v5418 = vadd.f32 %v5225, %v5417
        %v5419 = vpop.f32.mrb[0].mxu0
        %v5420 = vadd.f32 %v5227, %v5419
        %5421 = vmatprep.mubr.bf16.mxu0 %v2185
        %5422 = vmatmul.mubr.bf16.gmra.mrb[0].mxu0 %v2184
        %v5423 = vpop.f32.mrb[0].mxu0
        %v5424 = vadd.f32 %v5231, %v5423
        %v5425 = vpop.f32.mrb[0].mxu0
        %v5426 = vadd.f32 %v5233, %v5425
        %v5427 = vpop.f32.mrb[0].mxu0
        %v5428 = vadd.f32 %v5235, %v5427
        %v5429 = vpop.f32.mrb[0].mxu0
        %v5430 = vadd.f32 %v5237, %v5429
        %5431 = vmatprep.mubr.bf16.mxu0 %v2191
        %5432 = vmatmul.mubr.bf16.gmra.mrb[0].mxu0 %v2190
        %v5433 = vpop.f32.mrb[0].mxu0
        %v5434 = vadd.f32 %v5241, %v5433
        %v5435 = vpop.f32.mrb[0].mxu0
        %v5436 = vadd.f32 %v5243, %v5435
        %v5437 = vpop.f32.mrb[0].mxu0
        %v5438 = vadd.f32 %v5245, %v5437
        %v5439 = vpop.f32.mrb[0].mxu0
        %v5440 = vadd.f32 %v5247, %v5439
        %5441 = vmatprep.mubr.bf16.mxu0 %v2197
        %5442 = vmatmul.mubr.bf16.gmra.mrb[0].mxu0 %v2196
        %v5443 = vpop.f32.mrb[0].mxu0
        %v5444 = vadd.f32 %v5251, %v5443
        %v5445 = vpop.f32.mrb[0].mxu0
        %v5446 = vadd.f32 %v5253, %v5445
        %v5447 = vpop.f32.mrb[0].mxu0
        %v5448 = vadd.f32 %v5255, %v5447
        %v5449 = vpop.f32.mrb[0].mxu0
        %v5450 = vadd.f32 %v5257, %v5449
        %5451 = vmatprep.mubr.bf16.mxu0 %v2203
        %5452 = vmatmul.mubr.bf16.gmra.mrb[0].mxu0 %v2202
        %v5453 = vpop.f32.mrb[0].mxu0
        %v5454 = vadd.f32 %v5261, %v5453
        %v5455 = vpop.f32.mrb[0].mxu0
        %v5456 = vadd.f32 %v5263, %v5455
        %v5457 = vpop.f32.mrb[0].mxu0
        %v5458 = vadd.f32 %v5265, %v5457
        %v5459 = vpop.f32.mrb[0].mxu0
        %v5460 = vadd.f32 %v5267, %v5459
        %5461 = vmatprep.mubr.bf16.mxu0 %v2209
        %5462 = vmatmul.mubr.bf16.gmra.mrb[0].mxu0 %v2208
        %v5463 = vpop.f32.mrb[0].mxu0
        %v5464 = vadd.f32 %v5271, %v5463
        %v5465 = vpop.f32.mrb[0].mxu0
        %v5466 = vadd.f32 %v5273, %v5465
        %v5467 = vpop.f32.mrb[0].mxu0
        %v5468 = vadd.f32 %v5275, %v5467
        %v5469 = vpop.f32.mrb[0].mxu0
        %v5470 = vadd.f32 %v5277, %v5469
        %5471 = vmatprep.mubr.bf16.mxu0 %v2215
        %5472 = vmatmul.mubr.bf16.gmra.mrb[0].mxu0 %v2214
        %v5473 = vpop.f32.mrb[0].mxu0
        %v5474 = vadd.f32 %v5281, %v5473
        %v5475 = vpop.f32.mrb[0].mxu0
        %v5476 = vadd.f32 %v5283, %v5475
        %v5477 = vpop.f32.mrb[0].mxu0
        %v5478 = vadd.f32 %v5285, %v5477
        %v5479 = vpop.f32.mrb[0].mxu0
        %v5480 = vadd.f32 %v5287, %v5479
        %5481 = vmatprep.mubr.bf16.mxu0 %v2221
        %5482 = vmatmul.mubr.bf16.gmra.mrb[0].mxu0 %v2220
        %v5483 = vpop.f32.mrb[0].mxu0
        %v5484 = vadd.f32 %v5291, %v5483
        %v5485 = vpop.f32.mrb[0].mxu0
        %v5486 = vadd.f32 %v5293, %v5485
        %v5487 = vpop.f32.mrb[0].mxu0
        %v5488 = vadd.f32 %v5295, %v5487
        %v5489 = vpop.f32.mrb[0].mxu0
        %v5490 = vadd.f32 %v5297, %v5489
        %5491 = vmatprep.mubr.bf16.mxu0 %v2227
        %5492 = vmatmul.mubr.bf16.gmra.mrb[0].mxu0 %v2226
        %v5493 = vpop.f32.mrb[0].mxu0
        %v5494 = vadd.f32 %v5301, %v5493
        %v5495 = vpop.f32.mrb[0].mxu0
        %v5496 = vadd.f32 %v5303, %v5495
        %v5497 = vpop.f32.mrb[0].mxu0
        %v5498 = vadd.f32 %v5305, %v5497
        %v5499 = vpop.f32.mrb[0].mxu0
        %v5500 = vadd.f32 %v5307, %v5499
        %5501 = vdwg.mxu0
        %5502 = vmatprep.subr.bf16.mxu0 %v3579
        %5503 = vmatpush1.bf16.msra.mxu0 %v3578
        %5504 = vmatprep.subr.bf16.mxu0 %v3585
        %5505 = vmatpush1.bf16.msra.mxu0 %v3584
        %5506 = vmatprep.subr.bf16.mxu0 %v3591
        %5507 = vmatpush1.bf16.msra.mxu0 %v3590
        %5508 = vmatprep.subr.bf16.mxu0 %v3597
        %5509 = vmatpush1.bf16.msra.mxu0 %v3596
        %5510 = vmatprep.subr.bf16.mxu0 %v3603
        %5511 = vmatpush1.bf16.msra.mxu0 %v3602
        %5512 = vmatprep.subr.bf16.mxu0 %v3609
        %5513 = vmatpush1.bf16.msra.mxu0 %v3608
        %5514 = vmatprep.subr.bf16.mxu0 %v3615
        %5515 = vmatpush1.bf16.msra.mxu0 %v3614
        %5516 = vmatprep.subr.bf16.mxu0 %v3621
        %5517 = vmatpush1.bf16.msra.mxu0 %v3620
        %5518 = vmatprep.subr.bf16.mxu0 %v3627
        %5519 = vmatpush1.bf16.msra.mxu0 %v3626
        %5520 = vmatprep.subr.bf16.mxu0 %v3633
        %5521 = vmatpush1.bf16.msra.mxu0 %v3632
        %5522 = vmatprep.subr.bf16.mxu0 %v3639
        %5523 = vmatpush1.bf16.msra.mxu0 %v3638
        %5524 = vmatprep.subr.bf16.mxu0 %v3645
        %5525 = vmatpush1.bf16.msra.mxu0 %v3644
        %5526 = vmatprep.subr.bf16.mxu0 %v3651
        %5527 = vmatpush1.bf16.msra.mxu0 %v3650
        %5528 = vmatprep.subr.bf16.mxu0 %v3657
        %5529 = vmatpush1.bf16.msra.mxu0 %v3656
        %5530 = vmatprep.subr.bf16.mxu0 %v3663
        %5531 = vmatpush1.bf16.msra.mxu0 %v3662
        %5532 = vmatprep.subr.bf16.mxu0 %v3669
        %5533 = vmatpush1.bf16.msra.mxu0 %v3668
        %5534 = vmatprep.mubr.bf16.mxu0 %v2139
        %5535 = vmatmul.mubr.bf16.gmra.mrb[0].mxu0 %v2138
        %v5536 = vpop.f32.mrb[0].mxu0
        %v5537 = vadd.f32 %v5344, %v5536
        %v5538 = vpop.f32.mrb[0].mxu0
        %v5539 = vadd.f32 %v5346, %v5538
        %v5540 = vpop.f32.mrb[0].mxu0
        %v5541 = vadd.f32 %v5348, %v5540
        %v5542 = vpop.f32.mrb[0].mxu0
        %v5543 = vadd.f32 %v5350, %v5542
        %5544 = vmatprep.mubr.bf16.mxu0 %v2145
        %5545 = vmatmul.mubr.bf16.gmra.mrb[0].mxu0 %v2144
        %v5546 = vpop.f32.mrb[0].mxu0
        %v5547 = vadd.f32 %v5354, %v5546
        %v5548 = vpop.f32.mrb[0].mxu0
        %v5549 = vadd.f32 %v5356, %v5548
        %v5550 = vpop.f32.mrb[0].mxu0
        %v5551 = vadd.f32 %v5358, %v5550
        %v5552 = vpop.f32.mrb[0].mxu0
        %v5553 = vadd.f32 %v5360, %v5552
        %5554 = vmatprep.mubr.bf16.mxu0 %v2151
        %5555 = vmatmul.mubr.bf16.gmra.mrb[0].mxu0 %v2150
        %v5556 = vpop.f32.mrb[0].mxu0
        %v5557 = vadd.f32 %v5364, %v5556
        %v5558 = vpop.f32.mrb[0].mxu0
        %v5559 = vadd.f32 %v5366, %v5558
        %v5560 = vpop.f32.mrb[0].mxu0
        %v5561 = vadd.f32 %v5368, %v5560
        %v5562 = vpop.f32.mrb[0].mxu0
        %v5563 = vadd.f32 %v5370, %v5562
        %5564 = vmatprep.mubr.bf16.mxu0 %v2157
        %5565 = vmatmul.mubr.bf16.gmra.mrb[0].mxu0 %v2156
        %v5566 = vpop.f32.mrb[0].mxu0
        %v5567 = vadd.f32 %v5374, %v5566
        %v5568 = vpop.f32.mrb[0].mxu0
        %v5569 = vadd.f32 %v5376, %v5568
        %v5570 = vpop.f32.mrb[0].mxu0
        %v5571 = vadd.f32 %v5378, %v5570
        %v5572 = vpop.f32.mrb[0].mxu0
        %v5573 = vadd.f32 %v5380, %v5572
        %5574 = vmatprep.mubr.bf16.mxu0 %v2163
        %5575 = vmatmul.mubr.bf16.gmra.mrb[0].mxu0 %v2162
        %v5576 = vpop.f32.mrb[0].mxu0
        %v5577 = vadd.f32 %v5384, %v5576
        %v5578 = vpop.f32.mrb[0].mxu0
        %v5579 = vadd.f32 %v5386, %v5578
        %v5580 = vpop.f32.mrb[0].mxu0
        %v5581 = vadd.f32 %v5388, %v5580
        %v5582 = vpop.f32.mrb[0].mxu0
        %v5583 = vadd.f32 %v5390, %v5582
        %5584 = vmatprep.mubr.bf16.mxu0 %v2169
        %5585 = vmatmul.mubr.bf16.gmra.mrb[0].mxu0 %v2168
        %v5586 = vpop.f32.mrb[0].mxu0
        %v5587 = vadd.f32 %v5394, %v5586
        %v5588 = vpop.f32.mrb[0].mxu0
        %v5589 = vadd.f32 %v5396, %v5588
        %v5590 = vpop.f32.mrb[0].mxu0
        %v5591 = vadd.f32 %v5398, %v5590
        %v5592 = vpop.f32.mrb[0].mxu0
        %v5593 = vadd.f32 %v5400, %v5592
        %5594 = vmatprep.mubr.bf16.mxu0 %v2175
        %5595 = vmatmul.mubr.bf16.gmra.mrb[0].mxu0 %v2174
        %v5596 = vpop.f32.mrb[0].mxu0
        %v5597 = vadd.f32 %v5404, %v5596
        %v5598 = vpop.f32.mrb[0].mxu0
        %v5599 = vadd.f32 %v5406, %v5598
        %v5600 = vpop.f32.mrb[0].mxu0
        %v5601 = vadd.f32 %v5408, %v5600
        %v5602 = vpop.f32.mrb[0].mxu0
        %v5603 = vadd.f32 %v5410, %v5602
        %5604 = vmatprep.mubr.bf16.mxu0 %v2181
        %5605 = vmatmul.mubr.bf16.gmra.mrb[0].mxu0 %v2180
        %v5606 = vpop.f32.mrb[0].mxu0
        %v5607 = vadd.f32 %v5414, %v5606
        %v5608 = vpop.f32.mrb[0].mxu0
        %v5609 = vadd.f32 %v5416, %v5608
        %v5610 = vpop.f32.mrb[0].mxu0
        %v5611 = vadd.f32 %v5418, %v5610
        %v5612 = vpop.f32.mrb[0].mxu0
        %v5613 = vadd.f32 %v5420, %v5612
        %5614 = vmatprep.mubr.bf16.mxu0 %v2187
        %5615 = vmatmul.mubr.bf16.gmra.mrb[0].mxu0 %v2186
        %v5616 = vpop.f32.mrb[0].mxu0
        %v5617 = vadd.f32 %v5424, %v5616
        %v5618 = vpop.f32.mrb[0].mxu0
        %v5619 = vadd.f32 %v5426, %v5618
        %v5620 = vpop.f32.mrb[0].mxu0
        %v5621 = vadd.f32 %v5428, %v5620
        %v5622 = vpop.f32.mrb[0].mxu0
        %v5623 = vadd.f32 %v5430, %v5622
        %5624 = vmatprep.mubr.bf16.mxu0 %v2193
        %5625 = vmatmul.mubr.bf16.gmra.mrb[0].mxu0 %v2192
        %v5626 = vpop.f32.mrb[0].mxu0
        %v5627 = vadd.f32 %v5434, %v5626
        %v5628 = vpop.f32.mrb[0].mxu0
        %v5629 = vadd.f32 %v5436, %v5628
        %v5630 = vpop.f32.mrb[0].mxu0
        %v5631 = vadd.f32 %v5438, %v5630
        %v5632 = vpop.f32.mrb[0].mxu0
        %v5633 = vadd.f32 %v5440, %v5632
        %5634 = vmatprep.mubr.bf16.mxu0 %v2199
        %5635 = vmatmul.mubr.bf16.gmra.mrb[0].mxu0 %v2198
        %v5636 = vpop.f32.mrb[0].mxu0
        %v5637 = vadd.f32 %v5444, %v5636
        %v5638 = vpop.f32.mrb[0].mxu0
        %v5639 = vadd.f32 %v5446, %v5638
        %v5640 = vpop.f32.mrb[0].mxu0
        %v5641 = vadd.f32 %v5448, %v5640
        %v5642 = vpop.f32.mrb[0].mxu0
        %v5643 = vadd.f32 %v5450, %v5642
        %5644 = vmatprep.mubr.bf16.mxu0 %v2205
        %5645 = vmatmul.mubr.bf16.gmra.mrb[0].mxu0 %v2204
        %v5646 = vpop.f32.mrb[0].mxu0
        %v5647 = vadd.f32 %v5454, %v5646
        %v5648 = vpop.f32.mrb[0].mxu0
        %v5649 = vadd.f32 %v5456, %v5648
        %v5650 = vpop.f32.mrb[0].mxu0
        %v5651 = vadd.f32 %v5458, %v5650
        %v5652 = vpop.f32.mrb[0].mxu0
        %v5653 = vadd.f32 %v5460, %v5652
        %5654 = vmatprep.mubr.bf16.mxu0 %v2211
        %5655 = vmatmul.mubr.bf16.gmra.mrb[0].mxu0 %v2210
        %v5656 = vpop.f32.mrb[0].mxu0
        %v5657 = vadd.f32 %v5464, %v5656
        %v5658 = vpop.f32.mrb[0].mxu0
        %v5659 = vadd.f32 %v5466, %v5658
        %v5660 = vpop.f32.mrb[0].mxu0
        %v5661 = vadd.f32 %v5468, %v5660
        %v5662 = vpop.f32.mrb[0].mxu0
        %v5663 = vadd.f32 %v5470, %v5662
        %5664 = vmatprep.mubr.bf16.mxu0 %v2217
        %5665 = vmatmul.mubr.bf16.gmra.mrb[0].mxu0 %v2216
        %v5666 = vpop.f32.mrb[0].mxu0
        %v5667 = vadd.f32 %v5474, %v5666
        %v5668 = vpop.f32.mrb[0].mxu0
        %v5669 = vadd.f32 %v5476, %v5668
        %v5670 = vpop.f32.mrb[0].mxu0
        %v5671 = vadd.f32 %v5478, %v5670
        %v5672 = vpop.f32.mrb[0].mxu0
        %v5673 = vadd.f32 %v5480, %v5672
        %5674 = vmatprep.mubr.bf16.mxu0 %v2223
        %5675 = vmatmul.mubr.bf16.gmra.mrb[0].mxu0 %v2222
        %v5676 = vpop.f32.mrb[0].mxu0
        %v5677 = vadd.f32 %v5484, %v5676
        %v5678 = vpop.f32.mrb[0].mxu0
        %v5679 = vadd.f32 %v5486, %v5678
        %v5680 = vpop.f32.mrb[0].mxu0
        %v5681 = vadd.f32 %v5488, %v5680
        %v5682 = vpop.f32.mrb[0].mxu0
        %v5683 = vadd.f32 %v5490, %v5682
        %5684 = vmatprep.mubr.bf16.mxu0 %v2229
        %5685 = vmatmul.mubr.bf16.gmra.mrb[0].mxu0 %v2228
        %v5686 = vpop.f32.mrb[0].mxu0
        %v5687 = vadd.f32 %v5494, %v5686
        %v5688 = vpop.f32.mrb[0].mxu0
        %v5689 = vadd.f32 %v5496, %v5688
        %v5690 = vpop.f32.mrb[0].mxu0
        %v5691 = vadd.f32 %v5498, %v5690
        %v5692 = vpop.f32.mrb[0].mxu0
        %v5693 = vadd.f32 %v5500, %v5692
        %5694 = vdwg.mxu0
        %v5695 = vpack.c.bf16 %v4383, %v4379
        %v5696 = vpack.c.bf16 %v4385, %v4381
        %v5697 = vpack.c.bf16 %v4962, %v4958
        %v5698 = vpack.c.bf16 %v4964, %v4960
        %v5699 = vpack.c.bf16 %v5541, %v5537
        %v5700 = vpack.c.bf16 %v5543, %v5539
        %v5701 = vpack.c.bf16 %v4393, %v4389
        %v5702 = vpack.c.bf16 %v4395, %v4391
        %v5703 = vpack.c.bf16 %v4972, %v4968
        %v5704 = vpack.c.bf16 %v4974, %v4970
        %v5705 = vpack.c.bf16 %v5551, %v5547
        %v5706 = vpack.c.bf16 %v5553, %v5549
        %v5707 = vpack.c.bf16 %v4403, %v4399
        %v5708 = vpack.c.bf16 %v4405, %v4401
        %v5709 = vpack.c.bf16 %v4982, %v4978
        %v5710 = vpack.c.bf16 %v4984, %v4980
        %v5711 = vpack.c.bf16 %v5561, %v5557
        %v5712 = vpack.c.bf16 %v5563, %v5559
        %v5713 = vpack.c.bf16 %v4413, %v4409
        %v5714 = vpack.c.bf16 %v4415, %v4411
        %v5715 = vpack.c.bf16 %v4992, %v4988
        %v5716 = vpack.c.bf16 %v4994, %v4990
        %v5717 = vpack.c.bf16 %v5571, %v5567
        %v5718 = vpack.c.bf16 %v5573, %v5569
        %v5719 = vpack.c.bf16 %v4423, %v4419
        %v5720 = vpack.c.bf16 %v4425, %v4421
        %v5721 = vpack.c.bf16 %v5002, %v4998
        %v5722 = vpack.c.bf16 %v5004, %v5000
        %v5723 = vpack.c.bf16 %v5581, %v5577
        %v5724 = vpack.c.bf16 %v5583, %v5579
        %v5725 = vpack.c.bf16 %v4433, %v4429
        %v5726 = vpack.c.bf16 %v4435, %v4431
        %v5727 = vpack.c.bf16 %v5012, %v5008
        %v5728 = vpack.c.bf16 %v5014, %v5010
        %v5729 = vpack.c.bf16 %v5591, %v5587
        %v5730 = vpack.c.bf16 %v5593, %v5589
        %v5731 = vpack.c.bf16 %v4443, %v4439
        %v5732 = vpack.c.bf16 %v4445, %v4441
        %v5733 = vpack.c.bf16 %v5022, %v5018
        %v5734 = vpack.c.bf16 %v5024, %v5020
        %v5735 = vpack.c.bf16 %v5601, %v5597
        %v5736 = vpack.c.bf16 %v5603, %v5599
        %v5737 = vpack.c.bf16 %v4453, %v4449
        %v5738 = vpack.c.bf16 %v4455, %v4451
        %v5739 = vpack.c.bf16 %v5032, %v5028
        %v5740 = vpack.c.bf16 %v5034, %v5030
        %v5741 = vpack.c.bf16 %v5611, %v5607
        %v5742 = vpack.c.bf16 %v5613, %v5609
        %v5743 = vpack.c.bf16 %v4463, %v4459
        %v5744 = vpack.c.bf16 %v4465, %v4461
        %v5745 = vpack.c.bf16 %v5042, %v5038
        %v5746 = vpack.c.bf16 %v5044, %v5040
        %v5747 = vpack.c.bf16 %v5621, %v5617
        %v5748 = vpack.c.bf16 %v5623, %v5619
        %v5749 = vpack.c.bf16 %v4473, %v4469
        %v5750 = vpack.c.bf16 %v4475, %v4471
        %v5751 = vpack.c.bf16 %v5052, %v5048
        %v5752 = vpack.c.bf16 %v5054, %v5050
        %v5753 = vpack.c.bf16 %v5631, %v5627
        %v5754 = vpack.c.bf16 %v5633, %v5629
        %v5755 = vpack.c.bf16 %v4483, %v4479
        %v5756 = vpack.c.bf16 %v4485, %v4481
        %v5757 = vpack.c.bf16 %v5062, %v5058
        %v5758 = vpack.c.bf16 %v5064, %v5060
        %v5759 = vpack.c.bf16 %v5641, %v5637
        %v5760 = vpack.c.bf16 %v5643, %v5639
        %v5761 = vpack.c.bf16 %v4493, %v4489
        %v5762 = vpack.c.bf16 %v4495, %v4491
        %v5763 = vpack.c.bf16 %v5072, %v5068
        %v5764 = vpack.c.bf16 %v5074, %v5070
        %v5765 = vpack.c.bf16 %v5651, %v5647
        %v5766 = vpack.c.bf16 %v5653, %v5649
        %v5767 = vpack.c.bf16 %v4503, %v4499
        %v5768 = vpack.c.bf16 %v4505, %v4501
        %v5769 = vpack.c.bf16 %v5082, %v5078
        %v5770 = vpack.c.bf16 %v5084, %v5080
        %v5771 = vpack.c.bf16 %v5661, %v5657
        %v5772 = vpack.c.bf16 %v5663, %v5659
        %v5773 = vpack.c.bf16 %v4513, %v4509
        %v5774 = vpack.c.bf16 %v4515, %v4511
        %v5775 = vpack.c.bf16 %v5092, %v5088
        %v5776 = vpack.c.bf16 %v5094, %v5090
        %v5777 = vpack.c.bf16 %v5671, %v5667
        %v5778 = vpack.c.bf16 %v5673, %v5669
        %v5779 = vpack.c.bf16 %v4523, %v4519
        %v5780 = vpack.c.bf16 %v4525, %v4521
        %v5781 = vpack.c.bf16 %v5102, %v5098
        %v5782 = vpack.c.bf16 %v5104, %v5100
        %v5783 = vpack.c.bf16 %v5681, %v5677
        %v5784 = vpack.c.bf16 %v5683, %v5679
        %v5785 = vpack.c.bf16 %v4533, %v4529
        %v5786 = vpack.c.bf16 %v4535, %v4531
        %v5787 = vpack.c.bf16 %v5112, %v5108
        %v5788 = vpack.c.bf16 %v5114, %v5110
        %v5789 = vpack.c.bf16 %v5691, %v5687
        %v5790 = vpack.c.bf16 %v5693, %v5689
        %v5887 = vunpack.c.l.b16 %v5695
        %v5888 = vunpack.c.l.b16 %v5696
        %v5889 = vunpack.c.l.b16 %v5697
        %v5890 = vunpack.c.l.b16 %v5698
        %v5891 = vunpack.c.l.b16 %v5699
        %v5892 = vunpack.c.l.b16 %v5700
        %v5893 = vunpack.c.h.b16 %v5695
        %v5894 = vunpack.c.h.b16 %v5696
        %v5895 = vunpack.c.h.b16 %v5697
        %v5896 = vunpack.c.h.b16 %v5698
        %v5897 = vunpack.c.h.b16 %v5699
        %v5898 = vunpack.c.h.b16 %v5700
        %v5899 = vunpack.c.l.b16 %v5701
        %v5900 = vunpack.c.l.b16 %v5702
        %v5901 = vunpack.c.l.b16 %v5703
        %v5902 = vunpack.c.l.b16 %v5704
        %v5903 = vunpack.c.l.b16 %v5705
        %v5904 = vunpack.c.l.b16 %v5706
        %v5905 = vunpack.c.h.b16 %v5701
        %v5906 = vunpack.c.h.b16 %v5702
        %v5907 = vunpack.c.h.b16 %v5703
        %v5908 = vunpack.c.h.b16 %v5704
        %v5909 = vunpack.c.h.b16 %v5705
        %v5910 = vunpack.c.h.b16 %v5706
        %v5911 = vunpack.c.l.b16 %v5707
        %v5912 = vunpack.c.l.b16 %v5708
        %v5913 = vunpack.c.l.b16 %v5709
        %v5914 = vunpack.c.l.b16 %v5710
        %v5915 = vunpack.c.l.b16 %v5711
        %v5916 = vunpack.c.l.b16 %v5712
        %v5917 = vunpack.c.h.b16 %v5707
        %v5918 = vunpack.c.h.b16 %v5708
        %v5919 = vunpack.c.h.b16 %v5709
        %v5920 = vunpack.c.h.b16 %v5710
        %v5921 = vunpack.c.h.b16 %v5711
        %v5922 = vunpack.c.h.b16 %v5712
        %v5923 = vunpack.c.l.b16 %v5713
        %v5924 = vunpack.c.l.b16 %v5714
        %v5925 = vunpack.c.l.b16 %v5715
        %v5926 = vunpack.c.l.b16 %v5716
        %v5927 = vunpack.c.l.b16 %v5717
        %v5928 = vunpack.c.l.b16 %v5718
        %v5929 = vunpack.c.h.b16 %v5713
        %v5930 = vunpack.c.h.b16 %v5714
        %v5931 = vunpack.c.h.b16 %v5715
        %v5932 = vunpack.c.h.b16 %v5716
        %v5933 = vunpack.c.h.b16 %v5717
        %v5934 = vunpack.c.h.b16 %v5718
        %v5935 = vunpack.c.l.b16 %v5719
        %v5936 = vunpack.c.l.b16 %v5720
        %v5937 = vunpack.c.l.b16 %v5721
        %v5938 = vunpack.c.l.b16 %v5722
        %v5939 = vunpack.c.l.b16 %v5723
        %v5940 = vunpack.c.l.b16 %v5724
        %v5941 = vunpack.c.h.b16 %v5719
        %v5942 = vunpack.c.h.b16 %v5720
        %v5943 = vunpack.c.h.b16 %v5721
        %v5944 = vunpack.c.h.b16 %v5722
        %v5945 = vunpack.c.h.b16 %v5723
        %v5946 = vunpack.c.h.b16 %v5724
        %v5947 = vunpack.c.l.b16 %v5725
        %v5948 = vunpack.c.l.b16 %v5726
        %v5949 = vunpack.c.l.b16 %v5727
        %v5950 = vunpack.c.l.b16 %v5728
        %v5951 = vunpack.c.l.b16 %v5729
        %v5952 = vunpack.c.l.b16 %v5730
        %v5953 = vunpack.c.h.b16 %v5725
        %v5954 = vunpack.c.h.b16 %v5726
        %v5955 = vunpack.c.h.b16 %v5727
        %v5956 = vunpack.c.h.b16 %v5728
        %v5957 = vunpack.c.h.b16 %v5729
        %v5958 = vunpack.c.h.b16 %v5730
        %v5959 = vunpack.c.l.b16 %v5731
        %v5960 = vunpack.c.l.b16 %v5732
        %v5961 = vunpack.c.l.b16 %v5733
        %v5962 = vunpack.c.l.b16 %v5734
        %v5963 = vunpack.c.l.b16 %v5735
        %v5964 = vunpack.c.l.b16 %v5736
        %v5965 = vunpack.c.h.b16 %v5731
        %v5966 = vunpack.c.h.b16 %v5732
        %v5967 = vunpack.c.h.b16 %v5733
        %v5968 = vunpack.c.h.b16 %v5734
        %v5969 = vunpack.c.h.b16 %v5735
        %v5970 = vunpack.c.h.b16 %v5736
        %v5971 = vunpack.c.l.b16 %v5737
        %v5972 = vunpack.c.l.b16 %v5738
        %v5973 = vunpack.c.l.b16 %v5739
        %v5974 = vunpack.c.l.b16 %v5740
        %v5975 = vunpack.c.l.b16 %v5741
        %v5976 = vunpack.c.l.b16 %v5742
        %v5977 = vunpack.c.h.b16 %v5737
        %v5978 = vunpack.c.h.b16 %v5738
        %v5979 = vunpack.c.h.b16 %v5739
        %v5980 = vunpack.c.h.b16 %v5740
        %v5981 = vunpack.c.h.b16 %v5741
        %v5982 = vunpack.c.h.b16 %v5742
        %v5983 = vunpack.c.l.b16 %v5743
        %v5984 = vunpack.c.l.b16 %v5744
        %v5985 = vunpack.c.l.b16 %v5745
        %v5986 = vunpack.c.l.b16 %v5746
        %v5987 = vunpack.c.l.b16 %v5747
        %v5988 = vunpack.c.l.b16 %v5748
        %v5989 = vunpack.c.h.b16 %v5743
        %v5990 = vunpack.c.h.b16 %v5744
        %v5991 = vunpack.c.h.b16 %v5745
        %v5992 = vunpack.c.h.b16 %v5746
        %v5993 = vunpack.c.h.b16 %v5747
        %v5994 = vunpack.c.h.b16 %v5748
        %v5995 = vunpack.c.l.b16 %v5749
        %v5996 = vunpack.c.l.b16 %v5750
        %v5997 = vunpack.c.l.b16 %v5751
        %v5998 = vunpack.c.l.b16 %v5752
        %v5999 = vunpack.c.l.b16 %v5753
        %v6000 = vunpack.c.l.b16 %v5754
        %v6001 = vunpack.c.h.b16 %v5749
        %v6002 = vunpack.c.h.b16 %v5750
        %v6003 = vunpack.c.h.b16 %v5751
        %v6004 = vunpack.c.h.b16 %v5752
        %v6005 = vunpack.c.h.b16 %v5753
        %v6006 = vunpack.c.h.b16 %v5754
        %v6007 = vunpack.c.l.b16 %v5755
        %v6008 = vunpack.c.l.b16 %v5756
        %v6009 = vunpack.c.l.b16 %v5757
        %v6010 = vunpack.c.l.b16 %v5758
        %v6011 = vunpack.c.l.b16 %v5759
        %v6012 = vunpack.c.l.b16 %v5760
        %v6013 = vunpack.c.h.b16 %v5755
        %v6014 = vunpack.c.h.b16 %v5756
        %v6015 = vunpack.c.h.b16 %v5757
        %v6016 = vunpack.c.h.b16 %v5758
        %v6017 = vunpack.c.h.b16 %v5759
        %v6018 = vunpack.c.h.b16 %v5760
        %v6019 = vunpack.c.l.b16 %v5761
        %v6020 = vunpack.c.l.b16 %v5762
        %v6021 = vunpack.c.l.b16 %v5763
        %v6022 = vunpack.c.l.b16 %v5764
        %v6023 = vunpack.c.l.b16 %v5765
        %v6024 = vunpack.c.l.b16 %v5766
        %v6025 = vunpack.c.h.b16 %v5761
        %v6026 = vunpack.c.h.b16 %v5762
        %v6027 = vunpack.c.h.b16 %v5763
        %v6028 = vunpack.c.h.b16 %v5764
        %v6029 = vunpack.c.h.b16 %v5765
        %v6030 = vunpack.c.h.b16 %v5766
        %v6031 = vunpack.c.l.b16 %v5767
        %v6032 = vunpack.c.l.b16 %v5768
        %v6033 = vunpack.c.l.b16 %v5769
        %v6034 = vunpack.c.l.b16 %v5770
        %v6035 = vunpack.c.l.b16 %v5771
        %v6036 = vunpack.c.l.b16 %v5772
        %v6037 = vunpack.c.h.b16 %v5767
        %v6038 = vunpack.c.h.b16 %v5768
        %v6039 = vunpack.c.h.b16 %v5769
        %v6040 = vunpack.c.h.b16 %v5770
        %v6041 = vunpack.c.h.b16 %v5771
        %v6042 = vunpack.c.h.b16 %v5772
        %v6043 = vunpack.c.l.b16 %v5773
        %v6044 = vunpack.c.l.b16 %v5774
        %v6045 = vunpack.c.l.b16 %v5775
        %v6046 = vunpack.c.l.b16 %v5776
        %v6047 = vunpack.c.l.b16 %v5777
        %v6048 = vunpack.c.l.b16 %v5778
        %v6049 = vunpack.c.h.b16 %v5773
        %v6050 = vunpack.c.h.b16 %v5774
        %v6051 = vunpack.c.h.b16 %v5775
        %v6052 = vunpack.c.h.b16 %v5776
        %v6053 = vunpack.c.h.b16 %v5777
        %v6054 = vunpack.c.h.b16 %v5778
        %v6055 = vunpack.c.l.b16 %v5779
        %v6056 = vunpack.c.l.b16 %v5780
        %v6057 = vunpack.c.l.b16 %v5781
        %v6058 = vunpack.c.l.b16 %v5782
        %v6059 = vunpack.c.l.b16 %v5783
        %v6060 = vunpack.c.l.b16 %v5784
        %v6061 = vunpack.c.h.b16 %v5779
        %v6062 = vunpack.c.h.b16 %v5780
        %v6063 = vunpack.c.h.b16 %v5781
        %v6064 = vunpack.c.h.b16 %v5782
        %v6065 = vunpack.c.h.b16 %v5783
        %v6066 = vunpack.c.h.b16 %v5784
        %v6067 = vunpack.c.l.b16 %v5785
        %v6068 = vunpack.c.l.b16 %v5786
        %v6069 = vunpack.c.l.b16 %v5787
        %v6070 = vunpack.c.l.b16 %v5788
        %v6071 = vunpack.c.l.b16 %v5789
        %v6072 = vunpack.c.l.b16 %v5790
        %v6073 = vunpack.c.h.b16 %v5785
        %v6074 = vunpack.c.h.b16 %v5786
        %v6075 = vunpack.c.h.b16 %v5787
        %v6076 = vunpack.c.h.b16 %v5788
        %v6077 = vunpack.c.h.b16 %v5789
        %v6078 = vunpack.c.h.b16 %v5790
        %v6079 = vpack.c.b16 %v5888, %v5887
        %v6080 = vpack.c.b16 %v5890, %v5889
        %v6081 = vpack.c.b16 %v5892, %v5891
        %v6082 = vpack.c.b16 %v5894, %v5893
        %v6083 = vpack.c.b16 %v5896, %v5895
        %v6084 = vpack.c.b16 %v5898, %v5897
        %v6085 = vpack.c.b16 %v5900, %v5899
        %v6086 = vpack.c.b16 %v5902, %v5901
        %v6087 = vpack.c.b16 %v5904, %v5903
        %v6088 = vpack.c.b16 %v5906, %v5905
        %v6089 = vpack.c.b16 %v5908, %v5907
        %v6090 = vpack.c.b16 %v5910, %v5909
        %v6091 = vpack.c.b16 %v5912, %v5911
        %v6092 = vpack.c.b16 %v5914, %v5913
        %v6093 = vpack.c.b16 %v5916, %v5915
        %v6094 = vpack.c.b16 %v5918, %v5917
        %v6095 = vpack.c.b16 %v5920, %v5919
        %v6096 = vpack.c.b16 %v5922, %v5921
        %v6097 = vpack.c.b16 %v5924, %v5923
        %v6098 = vpack.c.b16 %v5926, %v5925
        %v6099 = vpack.c.b16 %v5928, %v5927
        %v6100 = vpack.c.b16 %v5930, %v5929
        %v6101 = vpack.c.b16 %v5932, %v5931
        %v6102 = vpack.c.b16 %v5934, %v5933
        %v6103 = vpack.c.b16 %v5936, %v5935
        %v6104 = vpack.c.b16 %v5938, %v5937
        %v6105 = vpack.c.b16 %v5940, %v5939
        %v6106 = vpack.c.b16 %v5942, %v5941
        %v6107 = vpack.c.b16 %v5944, %v5943
        %v6108 = vpack.c.b16 %v5946, %v5945
        %v6109 = vpack.c.b16 %v5948, %v5947
        %v6110 = vpack.c.b16 %v5950, %v5949
        %v6111 = vpack.c.b16 %v5952, %v5951
        %v6112 = vpack.c.b16 %v5954, %v5953
        %v6113 = vpack.c.b16 %v5956, %v5955
        %v6114 = vpack.c.b16 %v5958, %v5957
        %v6115 = vpack.c.b16 %v5960, %v5959
        %v6116 = vpack.c.b16 %v5962, %v5961
        %v6117 = vpack.c.b16 %v5964, %v5963
        %v6118 = vpack.c.b16 %v5966, %v5965
        %v6119 = vpack.c.b16 %v5968, %v5967
        %v6120 = vpack.c.b16 %v5970, %v5969
        %v6121 = vpack.c.b16 %v5972, %v5971
        %v6122 = vpack.c.b16 %v5974, %v5973
        %v6123 = vpack.c.b16 %v5976, %v5975
        %v6124 = vpack.c.b16 %v5978, %v5977
        %v6125 = vpack.c.b16 %v5980, %v5979
        %v6126 = vpack.c.b16 %v5982, %v5981
        %v6127 = vpack.c.b16 %v5984, %v5983
        %v6128 = vpack.c.b16 %v5986, %v5985
        %v6129 = vpack.c.b16 %v5988, %v5987
        %v6130 = vpack.c.b16 %v5990, %v5989
        %v6131 = vpack.c.b16 %v5992, %v5991
        %v6132 = vpack.c.b16 %v5994, %v5993
        %v6133 = vpack.c.b16 %v5996, %v5995
        %v6134 = vpack.c.b16 %v5998, %v5997
        %v6135 = vpack.c.b16 %v6000, %v5999
        %v6136 = vpack.c.b16 %v6002, %v6001
        %v6137 = vpack.c.b16 %v6004, %v6003
        %v6138 = vpack.c.b16 %v6006, %v6005
        %v6139 = vpack.c.b16 %v6008, %v6007
        %v6140 = vpack.c.b16 %v6010, %v6009
        %v6141 = vpack.c.b16 %v6012, %v6011
        %v6142 = vpack.c.b16 %v6014, %v6013
        %v6143 = vpack.c.b16 %v6016, %v6015
        %v6144 = vpack.c.b16 %v6018, %v6017
        %v6145 = vpack.c.b16 %v6020, %v6019
        %v6146 = vpack.c.b16 %v6022, %v6021
        %v6147 = vpack.c.b16 %v6024, %v6023
        %v6148 = vpack.c.b16 %v6026, %v6025
        %v6149 = vpack.c.b16 %v6028, %v6027
        %v6150 = vpack.c.b16 %v6030, %v6029
        %v6151 = vpack.c.b16 %v6032, %v6031
        %v6152 = vpack.c.b16 %v6034, %v6033
        %v6153 = vpack.c.b16 %v6036, %v6035
        %v6154 = vpack.c.b16 %v6038, %v6037
        %v6155 = vpack.c.b16 %v6040, %v6039
        %v6156 = vpack.c.b16 %v6042, %v6041
        %v6157 = vpack.c.b16 %v6044, %v6043
        %v6158 = vpack.c.b16 %v6046, %v6045
        %v6159 = vpack.c.b16 %v6048, %v6047
        %v6160 = vpack.c.b16 %v6050, %v6049
        %v6161 = vpack.c.b16 %v6052, %v6051
        %v6162 = vpack.c.b16 %v6054, %v6053
        %v6163 = vpack.c.b16 %v6056, %v6055
        %v6164 = vpack.c.b16 %v6058, %v6057
        %v6165 = vpack.c.b16 %v6060, %v6059
        %v6166 = vpack.c.b16 %v6062, %v6061
        %v6167 = vpack.c.b16 %v6064, %v6063
        %v6168 = vpack.c.b16 %v6066, %v6065
        %v6169 = vpack.c.b16 %v6068, %v6067
        %v6170 = vpack.c.b16 %v6070, %v6069
        %v6171 = vpack.c.b16 %v6072, %v6071
        %v6172 = vpack.c.b16 %v6074, %v6073
        %v6173 = vpack.c.b16 %v6076, %v6075
        %v6174 = vpack.c.b16 %v6078, %v6077
        %6271 = vst [vmem:[%s166] sm:$0xff] %v6079
        %6272 = vst [vmem:[%s166 + $0x8] sm:$0xff] %v6080
        %6273 = vst [vmem:[%s166 + $0x10] sm:$0xff] %v6081
        %6274 = vst [vmem:[%s166 + $0x18] sm:$0xff] %v6082
        %6275 = vst [vmem:[%s166 + $0x20] sm:$0xff] %v6083
        %6276 = vst [vmem:[%s166 + $0x28] sm:$0xff] %v6084
        %6277 = vst [vmem:[%s166 + $0x30] sm:$0xff] %v6085
        %6278 = vst [vmem:[%s166 + $0x38] sm:$0xff] %v6086
        %6279 = vst [vmem:[%s166 + $0x40] sm:$0xff] %v6087
        %6280 = vst [vmem:[%s166 + $0x48] sm:$0xff] %v6088
        %6281 = vst [vmem:[%s166 + $0x50] sm:$0xff] %v6089
        %6282 = vst [vmem:[%s166 + $0x58] sm:$0xff] %v6090
        %6283 = vst [vmem:[%s166 + $0x60] sm:$0xff] %v6091
        %6284 = vst [vmem:[%s166 + $0x68] sm:$0xff] %v6092
        %6285 = vst [vmem:[%s166 + $0x70] sm:$0xff] %v6093
        %6286 = vst [vmem:[%s166 + $0x78] sm:$0xff] %v6094
        %6287 = vst [vmem:[%s166 + $0x80] sm:$0xff] %v6095
        %6288 = vst [vmem:[%s166 + $0x88] sm:$0xff] %v6096
        %6289 = vst [vmem:[%s166 + $0x90] sm:$0xff] %v6097
        %6290 = vst [vmem:[%s166 + $0x98] sm:$0xff] %v6098
        %6291 = vst [vmem:[%s166 + $0xa0] sm:$0xff] %v6099
        %6292 = vst [vmem:[%s166 + $0xa8] sm:$0xff] %v6100
        %6293 = vst [vmem:[%s166 + $0xb0] sm:$0xff] %v6101
        %6294 = vst [vmem:[%s166 + $0xb8] sm:$0xff] %v6102
        %6295 = vst [vmem:[%s166 + $0xc0] sm:$0xff] %v6103
        %6296 = vst [vmem:[%s166 + $0xc8] sm:$0xff] %v6104
        %6297 = vst [vmem:[%s166 + $0xd0] sm:$0xff] %v6105
        %6298 = vst [vmem:[%s166 + $0xd8] sm:$0xff] %v6106
        %6299 = vst [vmem:[%s166 + $0xe0] sm:$0xff] %v6107
        %6300 = vst [vmem:[%s166 + $0xe8] sm:$0xff] %v6108
        %6301 = vst [vmem:[%s166 + $0xf0] sm:$0xff] %v6109
        %6302 = vst [vmem:[%s166 + $0xf8] sm:$0xff] %v6110
        %6303 = vst [vmem:[%s166 + $0x100] sm:$0xff] %v6111
        %6304 = vst [vmem:[%s166 + $0x108] sm:$0xff] %v6112
        %6305 = vst [vmem:[%s166 + $0x110] sm:$0xff] %v6113
        %6306 = vst [vmem:[%s166 + $0x118] sm:$0xff] %v6114
        %6307 = vst [vmem:[%s166 + $0x120] sm:$0xff] %v6115
        %6308 = vst [vmem:[%s166 + $0x128] sm:$0xff] %v6116
        %6309 = vst [vmem:[%s166 + $0x130] sm:$0xff] %v6117
        %6310 = vst [vmem:[%s166 + $0x138] sm:$0xff] %v6118
        %6311 = vst [vmem:[%s166 + $0x140] sm:$0xff] %v6119
        %6312 = vst [vmem:[%s166 + $0x148] sm:$0xff] %v6120
        %6313 = vst [vmem:[%s166 + $0x150] sm:$0xff] %v6121
        %6314 = vst [vmem:[%s166 + $0x158] sm:$0xff] %v6122
        %6315 = vst [vmem:[%s166 + $0x160] sm:$0xff] %v6123
        %6316 = vst [vmem:[%s166 + $0x168] sm:$0xff] %v6124
        %6317 = vst [vmem:[%s166 + $0x170] sm:$0xff] %v6125
        %6318 = vst [vmem:[%s166 + $0x178] sm:$0xff] %v6126
        %6319 = vst [vmem:[%s166 + $0x180] sm:$0xff] %v6127
        %6320 = vst [vmem:[%s166 + $0x188] sm:$0xff] %v6128
        %6321 = vst [vmem:[%s166 + $0x190] sm:$0xff] %v6129
        %6322 = vst [vmem:[%s166 + $0x198] sm:$0xff] %v6130
        %6323 = vst [vmem:[%s166 + $0x1a0] sm:$0xff] %v6131
        %6324 = vst [vmem:[%s166 + $0x1a8] sm:$0xff] %v6132
        %6325 = vst [vmem:[%s166 + $0x1b0] sm:$0xff] %v6133
        %6326 = vst [vmem:[%s166 + $0x1b8] sm:$0xff] %v6134
        %6327 = vst [vmem:[%s166 + $0x1c0] sm:$0xff] %v6135
        %6328 = vst [vmem:[%s166 + $0x1c8] sm:$0xff] %v6136
        %6329 = vst [vmem:[%s166 + $0x1d0] sm:$0xff] %v6137
        %6330 = vst [vmem:[%s166 + $0x1d8] sm:$0xff] %v6138
        %6331 = vst [vmem:[%s166 + $0x1e0] sm:$0xff] %v6139
        %6332 = vst [vmem:[%s166 + $0x1e8] sm:$0xff] %v6140
        %6333 = vst [vmem:[%s166 + $0x1f0] sm:$0xff] %v6141
        %6334 = vst [vmem:[%s166 + $0x1f8] sm:$0xff] %v6142
        %6335 = vst [vmem:[%s166 + $0x200] sm:$0xff] %v6143
        %6336 = vst [vmem:[%s166 + $0x208] sm:$0xff] %v6144
        %6337 = vst [vmem:[%s166 + $0x210] sm:$0xff] %v6145
        %6338 = vst [vmem:[%s166 + $0x218] sm:$0xff] %v6146
        %6339 = vst [vmem:[%s166 + $0x220] sm:$0xff] %v6147
        %6340 = vst [vmem:[%s166 + $0x228] sm:$0xff] %v6148
        %6341 = vst [vmem:[%s166 + $0x230] sm:$0xff] %v6149
        %6342 = vst [vmem:[%s166 + $0x238] sm:$0xff] %v6150
        %6343 = vst [vmem:[%s166 + $0x240] sm:$0xff] %v6151
        %6344 = vst [vmem:[%s166 + $0x248] sm:$0xff] %v6152
        %6345 = vst [vmem:[%s166 + $0x250] sm:$0xff] %v6153
        %6346 = vst [vmem:[%s166 + $0x258] sm:$0xff] %v6154
        %6347 = vst [vmem:[%s166 + $0x260] sm:$0xff] %v6155
        %6348 = vst [vmem:[%s166 + $0x268] sm:$0xff] %v6156
        %6349 = vst [vmem:[%s166 + $0x270] sm:$0xff] %v6157
        %6350 = vst [vmem:[%s166 + $0x278] sm:$0xff] %v6158
        %6351 = vst [vmem:[%s166 + $0x280] sm:$0xff] %v6159
        %6352 = vst [vmem:[%s166 + $0x288] sm:$0xff] %v6160
        %6353 = vst [vmem:[%s166 + $0x290] sm:$0xff] %v6161
        %6354 = vst [vmem:[%s166 + $0x298] sm:$0xff] %v6162
        %6355 = vst [vmem:[%s166 + $0x2a0] sm:$0xff] %v6163
        %6356 = vst [vmem:[%s166 + $0x2a8] sm:$0xff] %v6164
        %6357 = vst [vmem:[%s166 + $0x2b0] sm:$0xff] %v6165
        %6358 = vst [vmem:[%s166 + $0x2b8] sm:$0xff] %v6166
        %6359 = vst [vmem:[%s166 + $0x2c0] sm:$0xff] %v6167
        %6360 = vst [vmem:[%s166 + $0x2c8] sm:$0xff] %v6168
        %6361 = vst [vmem:[%s166 + $0x2d0] sm:$0xff] %v6169
        %6362 = vst [vmem:[%s166 + $0x2d8] sm:$0xff] %v6170
        %6363 = vst [vmem:[%s166 + $0x2e0] sm:$0xff] %v6171
        %6364 = vst [vmem:[%s166 + $0x2e8] sm:$0xff] %v6172
        %6365 = vst [vmem:[%s166 + $0x2f0] sm:$0xff] %v6173
        %6366 = vst [vmem:[%s166 + $0x2f8] sm:$0xff] %v6174
        %s6367 = sand.u32 %s93, 1
        %s6368 = scalar_lea.sflag [#allocation4], %s6367
        %s6369 = sand.u32 %s93, 1
        %s6370 = smul.addr %s6369, 768
        %s6371 = scalar_lea.vmem [#allocation3], %s6370
        // Predicated region
        $region33: #{gcn_forward.1} parent=31 // pred_check
          %p6372 = pneg %p103
        $region34: #{gcn_forward.1} parent=31 // pred_check_branch
          %6374 = sbr.rel (%p6372) target = $region36
        $region35: #{gcn_forward.1} parent=31 // pred_region
          %s6375 = smul.u32 32, %s17
          %s6377 = ssub.s32 12288, 12288
          %6378 = vsyncadd %s6368, %s6377
          %s6379 = smul.addr %s6375, 6
          %s6380 = smul.addr %s6379, 64
          %s6381 = scalar_lea.hbm %s3, %s6380
          %s6382 = sshll.u32 %s6371, 4
          %s6383 = int_to_ptr.vmem [resolvable:$true] %s6382
          %6388 = dma.vmem_to_hbm [thread:$0]  %s6383, 12288, %s6381, %s6368, 384, 384, 24
        $region36: #{gcn_forward.1} parent=31 // pred_fallthru
          _
      $region32: #{gcn_forward.1} parent=5 // pred_fallthru
        _
      %p6389 = scmp.le.s32.totalorder 2, %s12
      // Predicated region
      $region37: #{gcn_forward.1} parent=5 // pred_check
        %p6390 = pneg %p6389
      $region38: #{gcn_forward.1} parent=5 // pred_check_branch
        %6392 = sbr.rel (%p6390) target = $region40
      $region39: #{gcn_forward.1} parent=5 // pred_region
        %s6393 = ssub.s32 %s12, 2
        // Predicated region
        $region41: #{gcn_forward.1} parent=39 // pred_check
          %p6394 = pneg %p109
        $region42: #{gcn_forward.1} parent=39 // pred_check_branch
          %6396 = sbr.rel (%p6394) target = $region44
        $region43: #{gcn_forward.1} parent=39 // pred_region
          %s6397 = sand.u32 %s94, 1
          %s6398 = scalar_lea.sflag [#allocation4], %s6397
          %s6399 = sand.u32 %s94, 1
          %s6400 = smul.addr %s6399, 768
          %s6401 = scalar_lea.vmem [#allocation3], %s6400
          %6402 = dma.done %s6398, 12288
        $region44: #{gcn_forward.1} parent=39 // pred_fallthru
          _
      $region40: #{gcn_forward.1} parent=5 // pred_fallthru
        _
    $region6: #{gcn_forward.1} parent=1 // loop_footer
      %s16 = sadd.s32 1, %s12
    $region7: #{gcn_forward.1} parent=1 // loop_footer_branch
      %11 = sbr.rel target = $region3
    $region8: #{gcn_forward.1} parent=1 // loop_exit
      _
    %6403 = vsyncpa [#allocation4], 1
    %s6404 = scalar_lea.sflag [#allocation4], 1
    %6405 = vsyncpa %s6404, 1

</llo_original>
